<compile_context>
chip_gen: v7x
topology: tpu7x:2x2x1
jax: 0.10.0
libtpu: 0.0.40
codegen_flags: <defaults>
</compile_context>

<pallas_src>
import numpy as np

import jax
import jax.numpy as jnp
from jax.experimental import pallas as pl
from jax.experimental.pallas import tpu as pltpu


# ---------------------------------------------------------------------------
# In-kernel helpers
# ---------------------------------------------------------------------------
def _conv_k3(parts, w_refs, scale_ref, shift_ref, *, act):
    """k=3, pad=1 Conv1d + folded BN + LeakyReLU(0.2) in (C, L) orientation.

    parts  : list of (Ci, L) f32 value arrays (channel-split inputs; the
             PyTorch channel concat is realized as split matmuls summed into
             the same accumulator).
    w_refs : matching list of (3, Cout, Ci) bf16 per-tap weight refs.
    scale_ref/shift_ref : (Cout, 1) f32 folded BatchNorm (+conv bias) affine.
    """
    acc = None
    for x_f32, w_ref in zip(parts, w_refs):
        c, l = x_f32.shape
        z = jnp.zeros((c, 1), jnp.float32)
        # tap 0 sees x[:, l-1], tap 1 sees x[:, l], tap 2 sees x[:, l+1]
        taps = (jnp.concatenate([z, x_f32[:, :l - 1]], axis=1),
                x_f32,
                jnp.concatenate([x_f32[:, 1:], z], axis=1))
        for k in range(3):
            d = jnp.dot(w_ref[k], taps[k].astype(jnp.bfloat16),
                        preferred_element_type=jnp.float32)
            acc = d if acc is None else acc + d    # init with first dot
    y = acc * scale_ref[...] + shift_ref[...]      # (Cout, L) f32 affine
    if act:
        y = jnp.where(y >= 0.0, y, 0.2 * y)        # LeakyReLU(0.2)
    return y


def _decoder_kernel(
        x_ref, x3_ref, x2_ref, x1_ref,             # per-batch activations (C, L)
        g0_ref, m1_ref, m2_ref,                    # one-hot nearest-resize matrices
        w1a_x_ref, w1a_s_ref, sc1a_ref, sh1a_ref,  # stage-1 conv a (split weight)
        w1b_ref, sc1b_ref, sh1b_ref,               # stage-1 conv b
        w2a_h_ref, w2a_s_ref, sc2a_ref, sh2a_ref,  # stage-2 conv a
        w2b_ref, sc2b_ref, sh2b_ref,               # stage-2 conv b
        w3a_h_ref, w3a_s_ref, sc3a_ref, sh3a_ref,  # stage-3 conv a
        w3b_ref, sc3b_ref, sh3b_ref,               # stage-3 conv b
        wf_ref, bias_f_ref,                        # final 1x1 conv
        out_ref):
    # ---- stage 1: interp(x -> L3) as one-hot MXU gather, split-conv with x3
    x = x_ref[0]                                                     # (Cin, Lx)
    h = jnp.dot(x.astype(jnp.bfloat16), g0_ref[...],
                preferred_element_type=jnp.float32)                  # (Cin, L3)
    h = _conv_k3([h, x3_ref[0]], [w1a_x_ref, w1a_s_ref],
                 sc1a_ref, sh1a_ref, act=True)
    h = _conv_k3([h], [w1b_ref], sc1b_ref, sh1b_ref, act=True)

    # ---- stage 2: (upsample x2 then interp -> L2) folded into one matmul
    h = jnp.dot(h.astype(jnp.bfloat16), m1_ref[...],
                preferred_element_type=jnp.float32)                  # (C, L2)
    h = _conv_k3([h, x2_ref[0]], [w2a_h_ref, w2a_s_ref],
                 sc2a_ref, sh2a_ref, act=True)
    h = _conv_k3([h], [w2b_ref], sc2b_ref, sh2b_ref, act=True)

    # ---- stage 3
    h = jnp.dot(h.astype(jnp.bfloat16), m2_ref[...],
                preferred_element_type=jnp.float32)                  # (C, L1)
    h = _conv_k3([h, x1_ref[0]], [w3a_h_ref, w3a_s_ref],
                 sc3a_ref, sh3a_ref, act=True)
    h = _conv_k3([h], [w3b_ref], sc3b_ref, sh3b_ref, act=True)

    # ---- final 1x1 conv: single matmul + bias, no BN / activation
    y = jnp.dot(wf_ref[...], h.astype(jnp.bfloat16),
                preferred_element_type=jnp.float32) + bias_f_ref[...]
    out_ref[0] = y.astype(out_ref.dtype)


# ---------------------------------------------------------------------------
# One-hot nearest-neighbour gather matrices (built once at trace time)
# ---------------------------------------------------------------------------
def _nearest_matrix(l_in, l_out, dtype=jnp.bfloat16):
    """resize(x)[:, l] == (x @ G)[:, l] == x[:, (l*l_in)//l_out]."""
    idx = (np.arange(l_out) * l_in) // l_out
    g = np.zeros((l_in, l_out), np.float32)
    g[idx, np.arange(l_out)] = 1.0
    return jnp.asarray(g, dtype)


def _up2_then_resize_matrix(l_in, l_out, dtype=jnp.bfloat16):
    """nn.Upsample(2,'nearest') followed by F.interpolate(size=l_out,'nearest')."""
    idx = ((np.arange(l_out) * (2 * l_in)) // l_out) // 2
    g = np.zeros((l_in, l_out), np.float32)
    g[idx, np.arange(l_out)] = 1.0
    return jnp.asarray(g, dtype)


# ---------------------------------------------------------------------------
# Parameter construction (deterministic synthetic, BN folded)
# ---------------------------------------------------------------------------
def _init_cnr(key, cin, cout, split=None):
    k1, k2, k3, k4, k5, k6 = jax.random.split(key, 6)
    w = jax.random.normal(k1, (3, cout, cin), jnp.float32) / np.sqrt(3.0 * cin)
    b = 0.05 * jax.random.normal(k2, (cout,), jnp.float32)
    gamma = 1.0 + 0.1 * jax.random.normal(k3, (cout,), jnp.float32)
    beta = 0.1 * jax.random.normal(k4, (cout,), jnp.float32)
    rmean = 0.05 * jax.random.normal(k5, (cout,), jnp.float32)
    rvar = jax.random.uniform(k6, (cout,), jnp.float32, minval=0.5, maxval=1.5)
    eps = 1e-5
    scale = gamma / jnp.sqrt(rvar + eps)
    shift = (b - rmean) * scale + beta
    p = dict(w=w.astype(jnp.bfloat16), scale=scale, shift=shift)
    if split is not None:
        p['split'] = split
    return p


def _init_pointwise(key, cin, cout):
    k1, k2 = jax.random.split(key)
    w = jax.random.normal(k1, (cout, cin), jnp.float32) / np.sqrt(1.0 * cin)
    b = 0.05 * jax.random.normal(k2, (cout,), jnp.float32)
    return dict(w=w.astype(jnp.bfloat16), b=b)


def _flatten_params(params):
    """Flatten params in the exact order the kernel signature expects;
    apply the feature/skip channel split to the first conv of each stage."""
    flat = []
    for name, has_split in (('c1a', True), ('c1b', False),
                            ('c2a', True), ('c2b', False),
                            ('c3a', True), ('c3b', False)):
        p = params[name]
        w = p['w']                                   # (3, Cout, Cin_total) bf16
        if has_split:
            s = p['split']
            flat += [w[:, :, :s], w[:, :, s:]]
        else:
            flat += [w]
        cout = w.shape[1]
        flat += [p['scale'].reshape(cout, 1), p['shift'].reshape(cout, 1)]
    pf = params['final']
    flat += [pf['w'], pf['b'].reshape(-1, 1)]
    return flat


# ---------------------------------------------------------------------------
# Decoder forward (accepts PyTorch NCL tensors, returns NCL)
# ---------------------------------------------------------------------------
def decoder_forward(params, x, x1, x2, x3):
    B = x.shape[0]
    Lx, L1, L2, L3 = x.shape[2], x1.shape[2], x2.shape[2], x3.shape[2]
    out_ch = params['final']['w'].shape[0]

    g0 = _nearest_matrix(Lx, L3)           # interp(x) -> len(x3)
    m1 = _up2_then_resize_matrix(L3, L2)   # up1's Upsample + interp -> len(x2)
    m2 = _up2_then_resize_matrix(L2, L1)   # up2's Upsample + interp -> len(x1)

    data = [x, x3, x2, x1]
    consts = [g0, m1, m2] + _flatten_params(params)

    def dspec(a):
        return pl.BlockSpec((1,) + a.shape[1:],
                            lambda b, n=a.ndim: (b,) + (0,) * (n - 1))

    def cspec(a):
        return pl.BlockSpec(a.shape, lambda b, n=a.ndim: (0,) * n)

    in_specs = [dspec(a) for a in data] + [cspec(a) for a in consts]

    return pl.pallas_call(
        _decoder_kernel,
        out_shape=jax.ShapeDtypeStruct((B, out_ch, L1), jnp.float32),
        grid=(B,),
        in_specs=in_specs,
        out_specs=pl.BlockSpec((1, out_ch, L1), lambda b: (b, 0, 0)),
        compiler_params=pltpu.CompilerParams(
            dimension_semantics=("parallel",)),   # v7x: one batch elem per TC
    )(*data, *consts)


# ---------------------------------------------------------------------------
# Pure-JAX reference (independent path: concat + full weights + explicit
# pad/repeat/gather), with the same bf16-operand / f32-accumulate policy.
# ---------------------------------------------------------------------------
def _ref_cnr(p, x_bcl, act=True):
    L = x_bcl.shape[-1]
    xb = jnp.pad(x_bcl.astype(jnp.bfloat16), ((0, 0), (0, 0), (1, 1)))
    acc = sum(jnp.einsum('oi,bil->bol', p['w'][k], xb[:, :, k:k + L],
                         preferred_element_type=jnp.float32)
              for k in range(3))
    y = acc * p['scale'][None, :, None] + p['shift'][None, :, None]
    return jnp.where(y >= 0.0, y, 0.2 * y) if act else y


def _ref_resize(x_bcl, l_out):
    l_in = x_bcl.shape[-1]
    idx = (jnp.arange(l_out) * l_in) // l_out
    return x_bcl[:, :, idx]


def decoder_forward_ref(params, x, x1, x2, x3):
    h = jnp.concatenate([_ref_resize(x, x3.shape[-1]), x3], axis=1)
    h = _ref_cnr(params['c1a'], h)
    h = _ref_cnr(params['c1b'], h)
    h = jnp.repeat(h, 2, axis=-1)
    h = jnp.concatenate([_ref_resize(h, x2.shape[-1]), x2], axis=1)
    h = _ref_cnr(params['c2a'], h)
    h = _ref_cnr(params['c2b'], h)
    h = jnp.repeat(h, 2, axis=-1)
    h = jnp.concatenate([_ref_resize(h, x1.shape[-1]), x1], axis=1)
    h = _ref_cnr(params['c3a'], h)
    h = _ref_cnr(params['c3b'], h)
    pf = params['final']
    return (jnp.einsum('oi,bil->bol', pf['w'], h.astype(jnp.bfloat16),
                       preferred_element_type=jnp.float32)
            + pf['b'][None, :, None])


# ---------------------------------------------------------------------------
if __name__ == "__main__":
    key = jax.random.PRNGKey(0)
    in_ch, out_ch = 32, 12
    B, Lx, L1 = 2, 4, 32
    L2, L3 = L1 // 2, L1 // 4
    ks = jax.random.split(key, 11)

    params = {
        # first conv of each stage: input channels = [feature ; skip]
        'c1a': _init_cnr(ks[0], in_ch + in_ch // 2, in_ch // 2, split=in_ch),
        'c1b': _init_cnr(ks[1], in_ch // 2, in_ch // 2),
        'c2a': _init_cnr(ks[2], in_ch // 2 + in_ch // 4, in_ch // 4,
                         split=in_ch // 2),
        'c2b': _init_cnr(ks[3], in_ch // 4, in_ch // 4),
        'c3a': _init_cnr(ks[4], in_ch // 4 + in_ch // 8, in_ch // 8,
                         split=in_ch // 4),
        'c3b': _init_cnr(ks[5], in_ch // 8, in_ch // 8),
        'final': _init_pointwise(ks[6], in_ch // 8, out_ch),
    }

    # PyTorch-layout (NCL) inputs matching the encoder's feature pyramid.
    x = jax.random.normal(ks[7], (B, in_ch, Lx), jnp.float32)
    x1 = jax.random.normal(ks[8], (B, in_ch // 8, L1), jnp.float32)
    x2 = jax.random.normal(ks[9], (B, in_ch // 4, L2), jnp.float32)
    x3 = jax.random.normal(ks[10], (B, in_ch // 2, L3), jnp.float32)

    out = jax.block_until_ready(decoder_forward(params, x, x1, x2, x3))
    ref = jax.block_until_ready(decoder_forward_ref(params, x, x1, x2, x3))

    assert out.shape == (B, out_ch, L1), out.shape
    assert bool(jnp.allclose(out, ref, atol=1e-3, rtol=1e-3)), \
        "mismatch vs reference"
    print("KERNEL_OK")
</pallas_src>

<mosaic_0001>
module attributes {stable_mosaic.version = 11 : i64} {
  func.func @_decoder_kernel(%arg0: i32, %arg1: memref<1x32x4xf32, #tpu.memory_space<vmem>>, %arg2: memref<1x16x8xf32, #tpu.memory_space<vmem>>, %arg3: memref<1x8x16xf32, #tpu.memory_space<vmem>>, %arg4: memref<1x4x32xf32, #tpu.memory_space<vmem>>, %arg5: memref<4x8xbf16, #tpu.memory_space<vmem>>, %arg6: memref<8x16xbf16, #tpu.memory_space<vmem>>, %arg7: memref<16x32xbf16, #tpu.memory_space<vmem>>, %arg8: memref<3x16x32xbf16, #tpu.memory_space<vmem>>, %arg9: memref<3x16x16xbf16, #tpu.memory_space<vmem>>, %arg10: memref<16x1xf32, #tpu.memory_space<vmem>>, %arg11: memref<16x1xf32, #tpu.memory_space<vmem>>, %arg12: memref<3x16x16xbf16, #tpu.memory_space<vmem>>, %arg13: memref<16x1xf32, #tpu.memory_space<vmem>>, %arg14: memref<16x1xf32, #tpu.memory_space<vmem>>, %arg15: memref<3x8x16xbf16, #tpu.memory_space<vmem>>, %arg16: memref<3x8x8xbf16, #tpu.memory_space<vmem>>, %arg17: memref<8x1xf32, #tpu.memory_space<vmem>>, %arg18: memref<8x1xf32, #tpu.memory_space<vmem>>, %arg19: memref<3x8x8xbf16, #tpu.memory_space<vmem>>, %arg20: memref<8x1xf32, #tpu.memory_space<vmem>>, %arg21: memref<8x1xf32, #tpu.memory_space<vmem>>, %arg22: memref<3x4x8xbf16, #tpu.memory_space<vmem>>, %arg23: memref<3x4x4xbf16, #tpu.memory_space<vmem>>, %arg24: memref<4x1xf32, #tpu.memory_space<vmem>>, %arg25: memref<4x1xf32, #tpu.memory_space<vmem>>, %arg26: memref<3x4x4xbf16, #tpu.memory_space<vmem>>, %arg27: memref<4x1xf32, #tpu.memory_space<vmem>>, %arg28: memref<4x1xf32, #tpu.memory_space<vmem>>, %arg29: memref<12x4xbf16, #tpu.memory_space<vmem>>, %arg30: memref<12x1xf32, #tpu.memory_space<vmem>>, %arg31: memref<1x12x32xf32, #tpu.memory_space<vmem>>) attributes {dimension_semantics = [#tpu.dimension_semantics<parallel>], iteration_bounds = array<i64: 2>, scalar_prefetch = 0 : i64, scratch_operands = 0 : i64, tpu.core_type = #tpu.core_type<tc>, window_params = [{transform_indices = @transform_0, window_bounds = array<i64: 1, 32, 4>}, {transform_indices = @transform_1, window_bounds = array<i64: 1, 16, 8>}, {transform_indices = @transform_2, window_bounds = array<i64: 1, 8, 16>}, {transform_indices = @transform_3, window_bounds = array<i64: 1, 4, 32>}, {pipeline_mode = #tpu.pipeline_mode<synchronous>, transform_indices = @transform_4, window_bounds = array<i64: 4, 8>}, {pipeline_mode = #tpu.pipeline_mode<synchronous>, transform_indices = @transform_5, window_bounds = array<i64: 8, 16>}, {pipeline_mode = #tpu.pipeline_mode<synchronous>, transform_indices = @transform_6, window_bounds = array<i64: 16, 32>}, {pipeline_mode = #tpu.pipeline_mode<synchronous>, transform_indices = @transform_7, window_bounds = array<i64: 3, 16, 32>}, {pipeline_mode = #tpu.pipeline_mode<synchronous>, transform_indices = @transform_8, window_bounds = array<i64: 3, 16, 16>}, {pipeline_mode = #tpu.pipeline_mode<synchronous>, transform_indices = @transform_9, window_bounds = array<i64: 16, 1>}, {pipeline_mode = #tpu.pipeline_mode<synchronous>, transform_indices = @transform_10, window_bounds = array<i64: 16, 1>}, {pipeline_mode = #tpu.pipeline_mode<synchronous>, transform_indices = @transform_11, window_bounds = array<i64: 3, 16, 16>}, {pipeline_mode = #tpu.pipeline_mode<synchronous>, transform_indices = @transform_12, window_bounds = array<i64: 16, 1>}, {pipeline_mode = #tpu.pipeline_mode<synchronous>, transform_indices = @transform_13, window_bounds = array<i64: 16, 1>}, {pipeline_mode = #tpu.pipeline_mode<synchronous>, transform_indices = @transform_14, window_bounds = array<i64: 3, 8, 16>}, {pipeline_mode = #tpu.pipeline_mode<synchronous>, transform_indices = @transform_15, window_bounds = array<i64: 3, 8, 8>}, {pipeline_mode = #tpu.pipeline_mode<synchronous>, transform_indices = @transform_16, window_bounds = array<i64: 8, 1>}, {pipeline_mode = #tpu.pipeline_mode<synchronous>, transform_indices = @transform_17, window_bounds = array<i64: 8, 1>}, {pipeline_mode = #tpu.pipeline_mode<synchronous>, transform_indices = @transform_18, window_bounds = array<i64: 3, 8, 8>}, {pipeline_mode = #tpu.pipeline_mode<synchronous>, transform_indices = @transform_19, window_bounds = array<i64: 8, 1>}, {pipeline_mode = #tpu.pipeline_mode<synchronous>, transform_indices = @transform_20, window_bounds = array<i64: 8, 1>}, {pipeline_mode = #tpu.pipeline_mode<synchronous>, transform_indices = @transform_21, window_bounds = array<i64: 3, 4, 8>}, {pipeline_mode = #tpu.pipeline_mode<synchronous>, transform_indices = @transform_22, window_bounds = array<i64: 3, 4, 4>}, {pipeline_mode = #tpu.pipeline_mode<synchronous>, transform_indices = @transform_23, window_bounds = array<i64: 4, 1>}, {pipeline_mode = #tpu.pipeline_mode<synchronous>, transform_indices = @transform_24, window_bounds = array<i64: 4, 1>}, {pipeline_mode = #tpu.pipeline_mode<synchronous>, transform_indices = @transform_25, window_bounds = array<i64: 3, 4, 4>}, {pipeline_mode = #tpu.pipeline_mode<synchronous>, transform_indices = @transform_26, window_bounds = array<i64: 4, 1>}, {pipeline_mode = #tpu.pipeline_mode<synchronous>, transform_indices = @transform_27, window_bounds = array<i64: 4, 1>}, {pipeline_mode = #tpu.pipeline_mode<synchronous>, transform_indices = @transform_28, window_bounds = array<i64: 12, 4>}, {pipeline_mode = #tpu.pipeline_mode<synchronous>, transform_indices = @transform_29, window_bounds = array<i64: 12, 1>}, {transform_indices = @transform_30, window_bounds = array<i64: 1, 12, 32>}]} {
    %c0 = arith.constant 0 : index
    %c0_0 = arith.constant 0 : index
    %c0_1 = arith.constant 0 : index
    %0 = vector.load %arg1[%c0, %c0_0, %c0_1] : memref<1x32x4xf32, #tpu.memory_space<vmem>>, vector<1x32x4xf32>
    %1 = vector.shape_cast %0 : vector<1x32x4xf32> to vector<32x4xf32>
    %2 = arith.truncf %1 : vector<32x4xf32> to vector<32x4xbf16>
    %c0_2 = arith.constant 0 : index
    %c0_3 = arith.constant 0 : index
    %3 = vector.load %arg5[%c0_2, %c0_3] : memref<4x8xbf16, #tpu.memory_space<vmem>>, vector<4x8xbf16>
    %cst = arith.constant dense<0.000000e+00> : vector<32x8xf32>
    %4 = tpu.matmul %2, %3, %cst {dimension_numbers = #tpu.dot_dimension_numbers<[1], [0], [0], [1], [0, 0, 1, 1], [], []>} : vector<32x4xbf16>, vector<4x8xbf16>, vector<32x8xf32> -> vector<32x8xf32>
    %c0_4 = arith.constant 0 : index
    %c0_5 = arith.constant 0 : index
    %c0_6 = arith.constant 0 : index
    %5 = vector.load %arg2[%c0_4, %c0_5, %c0_6] : memref<1x16x8xf32, #tpu.memory_space<vmem>>, vector<1x16x8xf32>
    %6 = vector.shape_cast %5 : vector<1x16x8xf32> to vector<16x8xf32>
    %cst_7 = arith.constant 0.000000e+00 : f32
    %7 = vector.broadcast %cst_7 : f32 to vector<32x1xf32>
    %8 = vector.extract_strided_slice %4 {offsets = [0, 0], sizes = [32, 7], strides = [1, 1]} : vector<32x8xf32> to vector<32x7xf32>
    %9 = tpu.concatenate %7, %8 in 1 : vector<32x1xf32>, vector<32x7xf32> -> vector<32x8xf32>
    %10 = vector.extract_strided_slice %4 {offsets = [0, 1], sizes = [32, 7], strides = [1, 1]} : vector<32x8xf32> to vector<32x7xf32>
    %11 = tpu.concatenate %10, %7 in 1 : vector<32x7xf32>, vector<32x1xf32> -> vector<32x8xf32>
    %c0_8 = arith.constant 0 : index
    %c0_9 = arith.constant 0 : index
    %c0_10 = arith.constant 0 : index
    %12 = vector.load %arg8[%c0_8, %c0_9, %c0_10] : memref<3x16x32xbf16, #tpu.memory_space<vmem>>, vector<1x16x32xbf16>
    %13 = vector.shape_cast %12 : vector<1x16x32xbf16> to vector<16x32xbf16>
    %14 = arith.truncf %9 : vector<32x8xf32> to vector<32x8xbf16>
    %cst_11 = arith.constant dense<0.000000e+00> : vector<16x8xf32>
    %15 = tpu.matmul %13, %14, %cst_11 {dimension_numbers = #tpu.dot_dimension_numbers<[1], [0], [0], [1], [0, 0, 1, 1], [], []>} : vector<16x32xbf16>, vector<32x8xbf16>, vector<16x8xf32> -> vector<16x8xf32>
    %c1 = arith.constant 1 : index
    %c0_12 = arith.constant 0 : index
    %c0_13 = arith.constant 0 : index
    %16 = vector.load %arg8[%c1, %c0_12, %c0_13] : memref<3x16x32xbf16, #tpu.memory_space<vmem>>, vector<1x16x32xbf16>
    %17 = vector.shape_cast %16 : vector<1x16x32xbf16> to vector<16x32xbf16>
    %18 = arith.truncf %4 : vector<32x8xf32> to vector<32x8xbf16>
    %cst_14 = arith.constant dense<0.000000e+00> : vector<16x8xf32>
    %19 = tpu.matmul %17, %18, %cst_14 {dimension_numbers = #tpu.dot_dimension_numbers<[1], [0], [0], [1], [0, 0, 1, 1], [], []>} : vector<16x32xbf16>, vector<32x8xbf16>, vector<16x8xf32> -> vector<16x8xf32>
    %20 = arith.addf %15, %19 : vector<16x8xf32>
    %c2 = arith.constant 2 : index
    %c0_15 = arith.constant 0 : index
    %c0_16 = arith.constant 0 : index
    %21 = vector.load %arg8[%c2, %c0_15, %c0_16] : memref<3x16x32xbf16, #tpu.memory_space<vmem>>, vector<1x16x32xbf16>
    %22 = vector.shape_cast %21 : vector<1x16x32xbf16> to vector<16x32xbf16>
    %23 = arith.truncf %11 : vector<32x8xf32> to vector<32x8xbf16>
    %cst_17 = arith.constant dense<0.000000e+00> : vector<16x8xf32>
    %24 = tpu.matmul %22, %23, %cst_17 {dimension_numbers = #tpu.dot_dimension_numbers<[1], [0], [0], [1], [0, 0, 1, 1], [], []>} : vector<16x32xbf16>, vector<32x8xbf16>, vector<16x8xf32> -> vector<16x8xf32>
    %25 = arith.addf %20, %24 : vector<16x8xf32>
    %cst_18 = arith.constant 0.000000e+00 : f32
    %26 = vector.broadcast %cst_18 : f32 to vector<16x1xf32>
    %27 = vector.extract_strided_slice %6 {offsets = [0, 0], sizes = [16, 7], strides = [1, 1]} : vector<16x8xf32> to vector<16x7xf32>
    %28 = tpu.concatenate %26, %27 in 1 : vector<16x1xf32>, vector<16x7xf32> -> vector<16x8xf32>
    %29 = vector.extract_strided_slice %6 {offsets = [0, 1], sizes = [16, 7], strides = [1, 1]} : vector<16x8xf32> to vector<16x7xf32>
    %30 = tpu.concatenate %29, %26 in 1 : vector<16x7xf32>, vector<16x1xf32> -> vector<16x8xf32>
    %c0_19 = arith.constant 0 : index
    %c0_20 = arith.constant 0 : index
    %c0_21 = arith.constant 0 : index
    %31 = vector.load %arg9[%c0_19, %c0_20, %c0_21] : memref<3x16x16xbf16, #tpu.memory_space<vmem>>, vector<1x16x16xbf16>
    %32 = vector.shape_cast %31 : vector<1x16x16xbf16> to vector<16x16xbf16>
    %33 = arith.truncf %28 : vector<16x8xf32> to vector<16x8xbf16>
    %cst_22 = arith.constant dense<0.000000e+00> : vector<16x8xf32>
    %34 = tpu.matmul %32, %33, %cst_22 {dimension_numbers = #tpu.dot_dimension_numbers<[1], [0], [0], [1], [0, 0, 1, 1], [], []>} : vector<16x16xbf16>, vector<16x8xbf16>, vector<16x8xf32> -> vector<16x8xf32>
    %35 = arith.addf %25, %34 : vector<16x8xf32>
    %c1_23 = arith.constant 1 : index
    %c0_24 = arith.constant 0 : index
    %c0_25 = arith.constant 0 : index
    %36 = vector.load %arg9[%c1_23, %c0_24, %c0_25] : memref<3x16x16xbf16, #tpu.memory_space<vmem>>, vector<1x16x16xbf16>
    %37 = vector.shape_cast %36 : vector<1x16x16xbf16> to vector<16x16xbf16>
    %38 = arith.truncf %6 : vector<16x8xf32> to vector<16x8xbf16>
    %cst_26 = arith.constant dense<0.000000e+00> : vector<16x8xf32>
    %39 = tpu.matmul %37, %38, %cst_26 {dimension_numbers = #tpu.dot_dimension_numbers<[1], [0], [0], [1], [0, 0, 1, 1], [], []>} : vector<16x16xbf16>, vector<16x8xbf16>, vector<16x8xf32> -> vector<16x8xf32>
    %40 = arith.addf %35, %39 : vector<16x8xf32>
    %c2_27 = arith.constant 2 : index
    %c0_28 = arith.constant 0 : index
    %c0_29 = arith.constant 0 : index
    %41 = vector.load %arg9[%c2_27, %c0_28, %c0_29] : memref<3x16x16xbf16, #tpu.memory_space<vmem>>, vector<1x16x16xbf16>
    %42 = vector.shape_cast %41 : vector<1x16x16xbf16> to vector<16x16xbf16>
    %43 = arith.truncf %30 : vector<16x8xf32> to vector<16x8xbf16>
    %cst_30 = arith.constant dense<0.000000e+00> : vector<16x8xf32>
    %44 = tpu.matmul %42, %43, %cst_30 {dimension_numbers = #tpu.dot_dimension_numbers<[1], [0], [0], [1], [0, 0, 1, 1], [], []>} : vector<16x16xbf16>, vector<16x8xbf16>, vector<16x8xf32> -> vector<16x8xf32>
    %45 = arith.addf %40, %44 : vector<16x8xf32>
    %c0_31 = arith.constant 0 : index
    %c0_32 = arith.constant 0 : index
    %46 = vector.load %arg10[%c0_31, %c0_32] : memref<16x1xf32, #tpu.memory_space<vmem>>, vector<16x1xf32>
    %47 = vector.broadcast %46 : vector<16x1xf32> to vector<16x8xf32>
    %48 = arith.mulf %45, %47 : vector<16x8xf32>
    %c0_33 = arith.constant 0 : index
    %c0_34 = arith.constant 0 : index
    %49 = vector.load %arg11[%c0_33, %c0_34] : memref<16x1xf32, #tpu.memory_space<vmem>>, vector<16x1xf32>
    %50 = vector.broadcast %49 : vector<16x1xf32> to vector<16x8xf32>
    %51 = arith.addf %48, %50 : vector<16x8xf32>
    %cst_35 = arith.constant 0.000000e+00 : f32
    %52 = vector.broadcast %cst_35 : f32 to vector<16x8xf32>
    %53 = arith.cmpf oge, %51, %52 : vector<16x8xf32>
    %cst_36 = arith.constant 2.000000e-01 : f32
    %54 = vector.broadcast %cst_36 : f32 to vector<16x8xf32>
    %55 = arith.mulf %54, %51 : vector<16x8xf32>
    %56 = arith.select %53, %51, %55 : vector<16x8xi1>, vector<16x8xf32>
    %cst_37 = arith.constant 0.000000e+00 : f32
    %57 = vector.broadcast %cst_37 : f32 to vector<16x1xf32>
    %58 = vector.extract_strided_slice %56 {offsets = [0, 0], sizes = [16, 7], strides = [1, 1]} : vector<16x8xf32> to vector<16x7xf32>
    %59 = tpu.concatenate %57, %58 in 1 : vector<16x1xf32>, vector<16x7xf32> -> vector<16x8xf32>
    %60 = vector.extract_strided_slice %56 {offsets = [0, 1], sizes = [16, 7], strides = [1, 1]} : vector<16x8xf32> to vector<16x7xf32>
    %61 = tpu.concatenate %60, %57 in 1 : vector<16x7xf32>, vector<16x1xf32> -> vector<16x8xf32>
    %c0_38 = arith.constant 0 : index
    %c0_39 = arith.constant 0 : index
    %c0_40 = arith.constant 0 : index
    %62 = vector.load %arg12[%c0_38, %c0_39, %c0_40] : memref<3x16x16xbf16, #tpu.memory_space<vmem>>, vector<1x16x16xbf16>
    %63 = vector.shape_cast %62 : vector<1x16x16xbf16> to vector<16x16xbf16>
    %64 = arith.truncf %59 : vector<16x8xf32> to vector<16x8xbf16>
    %cst_41 = arith.constant dense<0.000000e+00> : vector<16x8xf32>
    %65 = tpu.matmul %63, %64, %cst_41 {dimension_numbers = #tpu.dot_dimension_numbers<[1], [0], [0], [1], [0, 0, 1, 1], [], []>} : vector<16x16xbf16>, vector<16x8xbf16>, vector<16x8xf32> -> vector<16x8xf32>
    %c1_42 = arith.constant 1 : index
    %c0_43 = arith.constant 0 : index
    %c0_44 = arith.constant 0 : index
    %66 = vector.load %arg12[%c1_42, %c0_43, %c0_44] : memref<3x16x16xbf16, #tpu.memory_space<vmem>>, vector<1x16x16xbf16>
    %67 = vector.shape_cast %66 : vector<1x16x16xbf16> to vector<16x16xbf16>
    %68 = arith.truncf %56 : vector<16x8xf32> to vector<16x8xbf16>
    %cst_45 = arith.constant dense<0.000000e+00> : vector<16x8xf32>
    %69 = tpu.matmul %67, %68, %cst_45 {dimension_numbers = #tpu.dot_dimension_numbers<[1], [0], [0], [1], [0, 0, 1, 1], [], []>} : vector<16x16xbf16>, vector<16x8xbf16>, vector<16x8xf32> -> vector<16x8xf32>
    %70 = arith.addf %65, %69 : vector<16x8xf32>
    %c2_46 = arith.constant 2 : index
    %c0_47 = arith.constant 0 : index
    %c0_48 = arith.constant 0 : index
    %71 = vector.load %arg12[%c2_46, %c0_47, %c0_48] : memref<3x16x16xbf16, #tpu.memory_space<vmem>>, vector<1x16x16xbf16>
    %72 = vector.shape_cast %71 : vector<1x16x16xbf16> to vector<16x16xbf16>
    %73 = arith.truncf %61 : vector<16x8xf32> to vector<16x8xbf16>
    %cst_49 = arith.constant dense<0.000000e+00> : vector<16x8xf32>
    %74 = tpu.matmul %72, %73, %cst_49 {dimension_numbers = #tpu.dot_dimension_numbers<[1], [0], [0], [1], [0, 0, 1, 1], [], []>} : vector<16x16xbf16>, vector<16x8xbf16>, vector<16x8xf32> -> vector<16x8xf32>
    %75 = arith.addf %70, %74 : vector<16x8xf32>
    %c0_50 = arith.constant 0 : index
    %c0_51 = arith.constant 0 : index
    %76 = vector.load %arg13[%c0_50, %c0_51] : memref<16x1xf32, #tpu.memory_space<vmem>>, vector<16x1xf32>
    %77 = vector.broadcast %76 : vector<16x1xf32> to vector<16x8xf32>
    %78 = arith.mulf %75, %77 : vector<16x8xf32>
    %c0_52 = arith.constant 0 : index
    %c0_53 = arith.constant 0 : index
    %79 = vector.load %arg14[%c0_52, %c0_53] : memref<16x1xf32, #tpu.memory_space<vmem>>, vector<16x1xf32>
    %80 = vector.broadcast %79 : vector<16x1xf32> to vector<16x8xf32>
    %81 = arith.addf %78, %80 : vector<16x8xf32>
    %cst_54 = arith.constant 0.000000e+00 : f32
    %82 = vector.broadcast %cst_54 : f32 to vector<16x8xf32>
    %83 = arith.cmpf oge, %81, %82 : vector<16x8xf32>
    %cst_55 = arith.constant 2.000000e-01 : f32
    %84 = vector.broadcast %cst_55 : f32 to vector<16x8xf32>
    %85 = arith.mulf %84, %81 : vector<16x8xf32>
    %86 = arith.select %83, %81, %85 : vector<16x8xi1>, vector<16x8xf32>
    %87 = arith.truncf %86 : vector<16x8xf32> to vector<16x8xbf16>
    %c0_56 = arith.constant 0 : index
    %c0_57 = arith.constant 0 : index
    %88 = vector.load %arg6[%c0_56, %c0_57] : memref<8x16xbf16, #tpu.memory_space<vmem>>, vector<8x16xbf16>
    %cst_58 = arith.constant dense<0.000000e+00> : vector<16x16xf32>
    %89 = tpu.matmul %87, %88, %cst_58 {dimension_numbers = #tpu.dot_dimension_numbers<[1], [0], [0], [1], [0, 0, 1, 1], [], []>} : vector<16x8xbf16>, vector<8x16xbf16>, vector<16x16xf32> -> vector<16x16xf32>
    %c0_59 = arith.constant 0 : index
    %c0_60 = arith.constant 0 : index
    %c0_61 = arith.constant 0 : index
    %90 = vector.load %arg3[%c0_59, %c0_60, %c0_61] : memref<1x8x16xf32, #tpu.memory_space<vmem>>, vector<1x8x16xf32>
    %91 = vector.shape_cast %90 : vector<1x8x16xf32> to vector<8x16xf32>
    %cst_62 = arith.constant 0.000000e+00 : f32
    %92 = vector.broadcast %cst_62 : f32 to vector<16x1xf32>
    %93 = vector.extract_strided_slice %89 {offsets = [0, 0], sizes = [16, 15], strides = [1, 1]} : vector<16x16xf32> to vector<16x15xf32>
    %94 = tpu.concatenate %92, %93 in 1 : vector<16x1xf32>, vector<16x15xf32> -> vector<16x16xf32>
    %95 = vector.extract_strided_slice %89 {offsets = [0, 1], sizes = [16, 15], strides = [1, 1]} : vector<16x16xf32> to vector<16x15xf32>
    %96 = tpu.concatenate %95, %92 in 1 : vector<16x15xf32>, vector<16x1xf32> -> vector<16x16xf32>
    %c0_63 = arith.constant 0 : index
    %c0_64 = arith.constant 0 : index
    %c0_65 = arith.constant 0 : index
    %97 = vector.load %arg15[%c0_63, %c0_64, %c0_65] : memref<3x8x16xbf16, #tpu.memory_space<vmem>>, vector<1x8x16xbf16>
    %98 = vector.shape_cast %97 : vector<1x8x16xbf16> to vector<8x16xbf16>
    %99 = arith.truncf %94 : vector<16x16xf32> to vector<16x16xbf16>
    %cst_66 = arith.constant dense<0.000000e+00> : vector<8x16xf32>
    %100 = tpu.matmul %98, %99, %cst_66 {dimension_numbers = #tpu.dot_dimension_numbers<[1], [0], [0], [1], [0, 0, 1, 1], [], []>} : vector<8x16xbf16>, vector<16x16xbf16>, vector<8x16xf32> -> vector<8x16xf32>
    %c1_67 = arith.constant 1 : index
    %c0_68 = arith.constant 0 : index
    %c0_69 = arith.constant 0 : index
    %101 = vector.load %arg15[%c1_67, %c0_68, %c0_69] : memref<3x8x16xbf16, #tpu.memory_space<vmem>>, vector<1x8x16xbf16>
    %102 = vector.shape_cast %101 : vector<1x8x16xbf16> to vector<8x16xbf16>
    %103 = arith.truncf %89 : vector<16x16xf32> to vector<16x16xbf16>
    %cst_70 = arith.constant dense<0.000000e+00> : vector<8x16xf32>
    %104 = tpu.matmul %102, %103, %cst_70 {dimension_numbers = #tpu.dot_dimension_numbers<[1], [0], [0], [1], [0, 0, 1, 1], [], []>} : vector<8x16xbf16>, vector<16x16xbf16>, vector<8x16xf32> -> vector<8x16xf32>
    %105 = arith.addf %100, %104 : vector<8x16xf32>
    %c2_71 = arith.constant 2 : index
    %c0_72 = arith.constant 0 : index
    %c0_73 = arith.constant 0 : index
    %106 = vector.load %arg15[%c2_71, %c0_72, %c0_73] : memref<3x8x16xbf16, #tpu.memory_space<vmem>>, vector<1x8x16xbf16>
    %107 = vector.shape_cast %106 : vector<1x8x16xbf16> to vector<8x16xbf16>
    %108 = arith.truncf %96 : vector<16x16xf32> to vector<16x16xbf16>
    %cst_74 = arith.constant dense<0.000000e+00> : vector<8x16xf32>
    %109 = tpu.matmul %107, %108, %cst_74 {dimension_numbers = #tpu.dot_dimension_numbers<[1], [0], [0], [1], [0, 0, 1, 1], [], []>} : vector<8x16xbf16>, vector<16x16xbf16>, vector<8x16xf32> -> vector<8x16xf32>
    %110 = arith.addf %105, %109 : vector<8x16xf32>
    %cst_75 = arith.constant 0.000000e+00 : f32
    %111 = vector.broadcast %cst_75 : f32 to vector<8x1xf32>
    %112 = vector.extract_strided_slice %91 {offsets = [0, 0], sizes = [8, 15], strides = [1, 1]} : vector<8x16xf32> to vector<8x15xf32>
    %113 = tpu.concatenate %111, %112 in 1 : vector<8x1xf32>, vector<8x15xf32> -> vector<8x16xf32>
    %114 = vector.extract_strided_slice %91 {offsets = [0, 1], sizes = [8, 15], strides = [1, 1]} : vector<8x16xf32> to vector<8x15xf32>
    %115 = tpu.concatenate %114, %111 in 1 : vector<8x15xf32>, vector<8x1xf32> -> vector<8x16xf32>
    %c0_76 = arith.constant 0 : index
    %c0_77 = arith.constant 0 : index
    %c0_78 = arith.constant 0 : index
    %116 = vector.load %arg16[%c0_76, %c0_77, %c0_78] : memref<3x8x8xbf16, #tpu.memory_space<vmem>>, vector<1x8x8xbf16>
    %117 = vector.shape_cast %116 : vector<1x8x8xbf16> to vector<8x8xbf16>
    %118 = arith.truncf %113 : vector<8x16xf32> to vector<8x16xbf16>
    %cst_79 = arith.constant dense<0.000000e+00> : vector<8x16xf32>
    %119 = tpu.matmul %117, %118, %cst_79 {dimension_numbers = #tpu.dot_dimension_numbers<[1], [0], [0], [1], [0, 0, 1, 1], [], []>} : vector<8x8xbf16>, vector<8x16xbf16>, vector<8x16xf32> -> vector<8x16xf32>
    %120 = arith.addf %110, %119 : vector<8x16xf32>
    %c1_80 = arith.constant 1 : index
    %c0_81 = arith.constant 0 : index
    %c0_82 = arith.constant 0 : index
    %121 = vector.load %arg16[%c1_80, %c0_81, %c0_82] : memref<3x8x8xbf16, #tpu.memory_space<vmem>>, vector<1x8x8xbf16>
    %122 = vector.shape_cast %121 : vector<1x8x8xbf16> to vector<8x8xbf16>
    %123 = arith.truncf %91 : vector<8x16xf32> to vector<8x16xbf16>
    %cst_83 = arith.constant dense<0.000000e+00> : vector<8x16xf32>
    %124 = tpu.matmul %122, %123, %cst_83 {dimension_numbers = #tpu.dot_dimension_numbers<[1], [0], [0], [1], [0, 0, 1, 1], [], []>} : vector<8x8xbf16>, vector<8x16xbf16>, vector<8x16xf32> -> vector<8x16xf32>
    %125 = arith.addf %120, %124 : vector<8x16xf32>
    %c2_84 = arith.constant 2 : index
    %c0_85 = arith.constant 0 : index
    %c0_86 = arith.constant 0 : index
    %126 = vector.load %arg16[%c2_84, %c0_85, %c0_86] : memref<3x8x8xbf16, #tpu.memory_space<vmem>>, vector<1x8x8xbf16>
    %127 = vector.shape_cast %126 : vector<1x8x8xbf16> to vector<8x8xbf16>
    %128 = arith.truncf %115 : vector<8x16xf32> to vector<8x16xbf16>
    %cst_87 = arith.constant dense<0.000000e+00> : vector<8x16xf32>
    %129 = tpu.matmul %127, %128, %cst_87 {dimension_numbers = #tpu.dot_dimension_numbers<[1], [0], [0], [1], [0, 0, 1, 1], [], []>} : vector<8x8xbf16>, vector<8x16xbf16>, vector<8x16xf32> -> vector<8x16xf32>
    %130 = arith.addf %125, %129 : vector<8x16xf32>
    %c0_88 = arith.constant 0 : index
    %c0_89 = arith.constant 0 : index
    %131 = vector.load %arg17[%c0_88, %c0_89] : memref<8x1xf32, #tpu.memory_space<vmem>>, vector<8x1xf32>
    %132 = vector.broadcast %131 : vector<8x1xf32> to vector<8x16xf32>
    %133 = arith.mulf %130, %132 : vector<8x16xf32>
    %c0_90 = arith.constant 0 : index
    %c0_91 = arith.constant 0 : index
    %134 = vector.load %arg18[%c0_90, %c0_91] : memref<8x1xf32, #tpu.memory_space<vmem>>, vector<8x1xf32>
    %135 = vector.broadcast %134 : vector<8x1xf32> to vector<8x16xf32>
    %136 = arith.addf %133, %135 : vector<8x16xf32>
    %cst_92 = arith.constant 0.000000e+00 : f32
    %137 = vector.broadcast %cst_92 : f32 to vector<8x16xf32>
    %138 = arith.cmpf oge, %136, %137 : vector<8x16xf32>
    %cst_93 = arith.constant 2.000000e-01 : f32
    %139 = vector.broadcast %cst_93 : f32 to vector<8x16xf32>
    %140 = arith.mulf %139, %136 : vector<8x16xf32>
    %141 = arith.select %138, %136, %140 : vector<8x16xi1>, vector<8x16xf32>
    %cst_94 = arith.constant 0.000000e+00 : f32
    %142 = vector.broadcast %cst_94 : f32 to vector<8x1xf32>
    %143 = vector.extract_strided_slice %141 {offsets = [0, 0], sizes = [8, 15], strides = [1, 1]} : vector<8x16xf32> to vector<8x15xf32>
    %144 = tpu.concatenate %142, %143 in 1 : vector<8x1xf32>, vector<8x15xf32> -> vector<8x16xf32>
    %145 = vector.extract_strided_slice %141 {offsets = [0, 1], sizes = [8, 15], strides = [1, 1]} : vector<8x16xf32> to vector<8x15xf32>
    %146 = tpu.concatenate %145, %142 in 1 : vector<8x15xf32>, vector<8x1xf32> -> vector<8x16xf32>
    %c0_95 = arith.constant 0 : index
    %c0_96 = arith.constant 0 : index
    %c0_97 = arith.constant 0 : index
    %147 = vector.load %arg19[%c0_95, %c0_96, %c0_97] : memref<3x8x8xbf16, #tpu.memory_space<vmem>>, vector<1x8x8xbf16>
    %148 = vector.shape_cast %147 : vector<1x8x8xbf16> to vector<8x8xbf16>
    %149 = arith.truncf %144 : vector<8x16xf32> to vector<8x16xbf16>
    %cst_98 = arith.constant dense<0.000000e+00> : vector<8x16xf32>
    %150 = tpu.matmul %148, %149, %cst_98 {dimension_numbers = #tpu.dot_dimension_numbers<[1], [0], [0], [1], [0, 0, 1, 1], [], []>} : vector<8x8xbf16>, vector<8x16xbf16>, vector<8x16xf32> -> vector<8x16xf32>
    %c1_99 = arith.constant 1 : index
    %c0_100 = arith.constant 0 : index
    %c0_101 = arith.constant 0 : index
    %151 = vector.load %arg19[%c1_99, %c0_100, %c0_101] : memref<3x8x8xbf16, #tpu.memory_space<vmem>>, vector<1x8x8xbf16>
    %152 = vector.shape_cast %151 : vector<1x8x8xbf16> to vector<8x8xbf16>
    %153 = arith.truncf %141 : vector<8x16xf32> to vector<8x16xbf16>
    %cst_102 = arith.constant dense<0.000000e+00> : vector<8x16xf32>
    %154 = tpu.matmul %152, %153, %cst_102 {dimension_numbers = #tpu.dot_dimension_numbers<[1], [0], [0], [1], [0, 0, 1, 1], [], []>} : vector<8x8xbf16>, vector<8x16xbf16>, vector<8x16xf32> -> vector<8x16xf32>
    %155 = arith.addf %150, %154 : vector<8x16xf32>
    %c2_103 = arith.constant 2 : index
    %c0_104 = arith.constant 0 : index
    %c0_105 = arith.constant 0 : index
    %156 = vector.load %arg19[%c2_103, %c0_104, %c0_105] : memref<3x8x8xbf16, #tpu.memory_space<vmem>>, vector<1x8x8xbf16>
    %157 = vector.shape_cast %156 : vector<1x8x8xbf16> to vector<8x8xbf16>
    %158 = arith.truncf %146 : vector<8x16xf32> to vector<8x16xbf16>
    %cst_106 = arith.constant dense<0.000000e+00> : vector<8x16xf32>
    %159 = tpu.matmul %157, %158, %cst_106 {dimension_numbers = #tpu.dot_dimension_numbers<[1], [0], [0], [1], [0, 0, 1, 1], [], []>} : vector<8x8xbf16>, vector<8x16xbf16>, vector<8x16xf32> -> vector<8x16xf32>
    %160 = arith.addf %155, %159 : vector<8x16xf32>
    %c0_107 = arith.constant 0 : index
    %c0_108 = arith.constant 0 : index
    %161 = vector.load %arg20[%c0_107, %c0_108] : memref<8x1xf32, #tpu.memory_space<vmem>>, vector<8x1xf32>
    %162 = vector.broadcast %161 : vector<8x1xf32> to vector<8x16xf32>
    %163 = arith.mulf %160, %162 : vector<8x16xf32>
    %c0_109 = arith.constant 0 : index
    %c0_110 = arith.constant 0 : index
    %164 = vector.load %arg21[%c0_109, %c0_110] : memref<8x1xf32, #tpu.memory_space<vmem>>, vector<8x1xf32>
    %165 = vector.broadcast %164 : vector<8x1xf32> to vector<8x16xf32>
    %166 = arith.addf %163, %165 : vector<8x16xf32>
    %cst_111 = arith.constant 0.000000e+00 : f32
    %167 = vector.broadcast %cst_111 : f32 to vector<8x16xf32>
    %168 = arith.cmpf oge, %166, %167 : vector<8x16xf32>
    %cst_112 = arith.constant 2.000000e-01 : f32
    %169 = vector.broadcast %cst_112 : f32 to vector<8x16xf32>
    %170 = arith.mulf %169, %166 : vector<8x16xf32>
    %171 = arith.select %168, %166, %170 : vector<8x16xi1>, vector<8x16xf32>
    %172 = arith.truncf %171 : vector<8x16xf32> to vector<8x16xbf16>
    %c0_113 = arith.constant 0 : index
    %c0_114 = arith.constant 0 : index
    %173 = vector.load %arg7[%c0_113, %c0_114] : memref<16x32xbf16, #tpu.memory_space<vmem>>, vector<16x32xbf16>
    %cst_115 = arith.constant dense<0.000000e+00> : vector<8x32xf32>
    %174 = tpu.matmul %172, %173, %cst_115 {dimension_numbers = #tpu.dot_dimension_numbers<[1], [0], [0], [1], [0, 0, 1, 1], [], []>} : vector<8x16xbf16>, vector<16x32xbf16>, vector<8x32xf32> -> vector<8x32xf32>
    %c0_116 = arith.constant 0 : index
    %c0_117 = arith.constant 0 : index
    %c0_118 = arith.constant 0 : index
    %175 = vector.load %arg4[%c0_116, %c0_117, %c0_118] : memref<1x4x32xf32, #tpu.memory_space<vmem>>, vector<1x4x32xf32>
    %176 = vector.shape_cast %175 : vector<1x4x32xf32> to vector<4x32xf32>
    %cst_119 = arith.constant 0.000000e+00 : f32
    %177 = vector.broadcast %cst_119 : f32 to vector<8x1xf32>
    %178 = vector.extract_strided_slice %174 {offsets = [0, 0], sizes = [8, 31], strides = [1, 1]} : vector<8x32xf32> to vector<8x31xf32>
    %179 = tpu.concatenate %177, %178 in 1 : vector<8x1xf32>, vector<8x31xf32> -> vector<8x32xf32>
    %180 = vector.extract_strided_slice %174 {offsets = [0, 1], sizes = [8, 31], strides = [1, 1]} : vector<8x32xf32> to vector<8x31xf32>
    %181 = tpu.concatenate %180, %177 in 1 : vector<8x31xf32>, vector<8x1xf32> -> vector<8x32xf32>
    %c0_120 = arith.constant 0 : index
    %c0_121 = arith.constant 0 : index
    %c0_122 = arith.constant 0 : index
    %182 = vector.load %arg22[%c0_120, %c0_121, %c0_122] : memref<3x4x8xbf16, #tpu.memory_space<vmem>>, vector<1x4x8xbf16>
    %183 = vector.shape_cast %182 : vector<1x4x8xbf16> to vector<4x8xbf16>
    %184 = arith.truncf %179 : vector<8x32xf32> to vector<8x32xbf16>
    %cst_123 = arith.constant dense<0.000000e+00> : vector<4x32xf32>
    %185 = tpu.matmul %183, %184, %cst_123 {dimension_numbers = #tpu.dot_dimension_numbers<[1], [0], [0], [1], [0, 0, 1, 1], [], []>} : vector<4x8xbf16>, vector<8x32xbf16>, vector<4x32xf32> -> vector<4x32xf32>
    %c1_124 = arith.constant 1 : index
    %c0_125 = arith.constant 0 : index
    %c0_126 = arith.constant 0 : index
    %186 = vector.load %arg22[%c1_124, %c0_125, %c0_126] : memref<3x4x8xbf16, #tpu.memory_space<vmem>>, vector<1x4x8xbf16>
    %187 = vector.shape_cast %186 : vector<1x4x8xbf16> to vector<4x8xbf16>
    %188 = arith.truncf %174 : vector<8x32xf32> to vector<8x32xbf16>
    %cst_127 = arith.constant dense<0.000000e+00> : vector<4x32xf32>
    %189 = tpu.matmul %187, %188, %cst_127 {dimension_numbers = #tpu.dot_dimension_numbers<[1], [0], [0], [1], [0, 0, 1, 1], [], []>} : vector<4x8xbf16>, vector<8x32xbf16>, vector<4x32xf32> -> vector<4x32xf32>
    %190 = arith.addf %185, %189 : vector<4x32xf32>
    %c2_128 = arith.constant 2 : index
    %c0_129 = arith.constant 0 : index
    %c0_130 = arith.constant 0 : index
    %191 = vector.load %arg22[%c2_128, %c0_129, %c0_130] : memref<3x4x8xbf16, #tpu.memory_space<vmem>>, vector<1x4x8xbf16>
    %192 = vector.shape_cast %191 : vector<1x4x8xbf16> to vector<4x8xbf16>
    %193 = arith.truncf %181 : vector<8x32xf32> to vector<8x32xbf16>
    %cst_131 = arith.constant dense<0.000000e+00> : vector<4x32xf32>
    %194 = tpu.matmul %192, %193, %cst_131 {dimension_numbers = #tpu.dot_dimension_numbers<[1], [0], [0], [1], [0, 0, 1, 1], [], []>} : vector<4x8xbf16>, vector<8x32xbf16>, vector<4x32xf32> -> vector<4x32xf32>
    %195 = arith.addf %190, %194 : vector<4x32xf32>
    %cst_132 = arith.constant 0.000000e+00 : f32
    %196 = vector.broadcast %cst_132 : f32 to vector<4x1xf32>
    %197 = vector.extract_strided_slice %176 {offsets = [0, 0], sizes = [4, 31], strides = [1, 1]} : vector<4x32xf32> to vector<4x31xf32>
    %198 = tpu.concatenate %196, %197 in 1 : vector<4x1xf32>, vector<4x31xf32> -> vector<4x32xf32>
    %199 = vector.extract_strided_slice %176 {offsets = [0, 1], sizes = [4, 31], strides = [1, 1]} : vector<4x32xf32> to vector<4x31xf32>
    %200 = tpu.concatenate %199, %196 in 1 : vector<4x31xf32>, vector<4x1xf32> -> vector<4x32xf32>
    %c0_133 = arith.constant 0 : index
    %c0_134 = arith.constant 0 : index
    %c0_135 = arith.constant 0 : index
    %201 = vector.load %arg23[%c0_133, %c0_134, %c0_135] : memref<3x4x4xbf16, #tpu.memory_space<vmem>>, vector<1x4x4xbf16>
    %202 = vector.shape_cast %201 : vector<1x4x4xbf16> to vector<4x4xbf16>
    %203 = arith.truncf %198 : vector<4x32xf32> to vector<4x32xbf16>
    %cst_136 = arith.constant dense<0.000000e+00> : vector<4x32xf32>
    %204 = tpu.matmul %202, %203, %cst_136 {dimension_numbers = #tpu.dot_dimension_numbers<[1], [0], [0], [1], [0, 0, 1, 1], [], []>} : vector<4x4xbf16>, vector<4x32xbf16>, vector<4x32xf32> -> vector<4x32xf32>
    %205 = arith.addf %195, %204 : vector<4x32xf32>
    %c1_137 = arith.constant 1 : index
    %c0_138 = arith.constant 0 : index
    %c0_139 = arith.constant 0 : index
    %206 = vector.load %arg23[%c1_137, %c0_138, %c0_139] : memref<3x4x4xbf16, #tpu.memory_space<vmem>>, vector<1x4x4xbf16>
    %207 = vector.shape_cast %206 : vector<1x4x4xbf16> to vector<4x4xbf16>
    %208 = arith.truncf %176 : vector<4x32xf32> to vector<4x32xbf16>
    %cst_140 = arith.constant dense<0.000000e+00> : vector<4x32xf32>
    %209 = tpu.matmul %207, %208, %cst_140 {dimension_numbers = #tpu.dot_dimension_numbers<[1], [0], [0], [1], [0, 0, 1, 1], [], []>} : vector<4x4xbf16>, vector<4x32xbf16>, vector<4x32xf32> -> vector<4x32xf32>
    %210 = arith.addf %205, %209 : vector<4x32xf32>
    %c2_141 = arith.constant 2 : index
    %c0_142 = arith.constant 0 : index
    %c0_143 = arith.constant 0 : index
    %211 = vector.load %arg23[%c2_141, %c0_142, %c0_143] : memref<3x4x4xbf16, #tpu.memory_space<vmem>>, vector<1x4x4xbf16>
    %212 = vector.shape_cast %211 : vector<1x4x4xbf16> to vector<4x4xbf16>
    %213 = arith.truncf %200 : vector<4x32xf32> to vector<4x32xbf16>
    %cst_144 = arith.constant dense<0.000000e+00> : vector<4x32xf32>
    %214 = tpu.matmul %212, %213, %cst_144 {dimension_numbers = #tpu.dot_dimension_numbers<[1], [0], [0], [1], [0, 0, 1, 1], [], []>} : vector<4x4xbf16>, vector<4x32xbf16>, vector<4x32xf32> -> vector<4x32xf32>
    %215 = arith.addf %210, %214 : vector<4x32xf32>
    %c0_145 = arith.constant 0 : index
    %c0_146 = arith.constant 0 : index
    %216 = vector.load %arg24[%c0_145, %c0_146] : memref<4x1xf32, #tpu.memory_space<vmem>>, vector<4x1xf32>
    %217 = vector.broadcast %216 : vector<4x1xf32> to vector<4x32xf32>
    %218 = arith.mulf %215, %217 : vector<4x32xf32>
    %c0_147 = arith.constant 0 : index
    %c0_148 = arith.constant 0 : index
    %219 = vector.load %arg25[%c0_147, %c0_148] : memref<4x1xf32, #tpu.memory_space<vmem>>, vector<4x1xf32>
    %220 = vector.broadcast %219 : vector<4x1xf32> to vector<4x32xf32>
    %221 = arith.addf %218, %220 : vector<4x32xf32>
    %cst_149 = arith.constant 0.000000e+00 : f32
    %222 = vector.broadcast %cst_149 : f32 to vector<4x32xf32>
    %223 = arith.cmpf oge, %221, %222 : vector<4x32xf32>
    %cst_150 = arith.constant 2.000000e-01 : f32
    %224 = vector.broadcast %cst_150 : f32 to vector<4x32xf32>
    %225 = arith.mulf %224, %221 : vector<4x32xf32>
    %226 = arith.select %223, %221, %225 : vector<4x32xi1>, vector<4x32xf32>
    %cst_151 = arith.constant 0.000000e+00 : f32
    %227 = vector.broadcast %cst_151 : f32 to vector<4x1xf32>
    %228 = vector.extract_strided_slice %226 {offsets = [0, 0], sizes = [4, 31], strides = [1, 1]} : vector<4x32xf32> to vector<4x31xf32>
    %229 = tpu.concatenate %227, %228 in 1 : vector<4x1xf32>, vector<4x31xf32> -> vector<4x32xf32>
    %230 = vector.extract_strided_slice %226 {offsets = [0, 1], sizes = [4, 31], strides = [1, 1]} : vector<4x32xf32> to vector<4x31xf32>
    %231 = tpu.concatenate %230, %227 in 1 : vector<4x31xf32>, vector<4x1xf32> -> vector<4x32xf32>
    %c0_152 = arith.constant 0 : index
    %c0_153 = arith.constant 0 : index
    %c0_154 = arith.constant 0 : index
    %232 = vector.load %arg26[%c0_152, %c0_153, %c0_154] : memref<3x4x4xbf16, #tpu.memory_space<vmem>>, vector<1x4x4xbf16>
    %233 = vector.shape_cast %232 : vector<1x4x4xbf16> to vector<4x4xbf16>
    %234 = arith.truncf %229 : vector<4x32xf32> to vector<4x32xbf16>
    %cst_155 = arith.constant dense<0.000000e+00> : vector<4x32xf32>
    %235 = tpu.matmul %233, %234, %cst_155 {dimension_numbers = #tpu.dot_dimension_numbers<[1], [0], [0], [1], [0, 0, 1, 1], [], []>} : vector<4x4xbf16>, vector<4x32xbf16>, vector<4x32xf32> -> vector<4x32xf32>
    %c1_156 = arith.constant 1 : index
    %c0_157 = arith.constant 0 : index
    %c0_158 = arith.constant 0 : index
    %236 = vector.load %arg26[%c1_156, %c0_157, %c0_158] : memref<3x4x4xbf16, #tpu.memory_space<vmem>>, vector<1x4x4xbf16>
    %237 = vector.shape_cast %236 : vector<1x4x4xbf16> to vector<4x4xbf16>
    %238 = arith.truncf %226 : vector<4x32xf32> to vector<4x32xbf16>
    %cst_159 = arith.constant dense<0.000000e+00> : vector<4x32xf32>
    %239 = tpu.matmul %237, %238, %cst_159 {dimension_numbers = #tpu.dot_dimension_numbers<[1], [0], [0], [1], [0, 0, 1, 1], [], []>} : vector<4x4xbf16>, vector<4x32xbf16>, vector<4x32xf32> -> vector<4x32xf32>
    %240 = arith.addf %235, %239 : vector<4x32xf32>
    %c2_160 = arith.constant 2 : index
    %c0_161 = arith.constant 0 : index
    %c0_162 = arith.constant 0 : index
    %241 = vector.load %arg26[%c2_160, %c0_161, %c0_162] : memref<3x4x4xbf16, #tpu.memory_space<vmem>>, vector<1x4x4xbf16>
    %242 = vector.shape_cast %241 : vector<1x4x4xbf16> to vector<4x4xbf16>
    %243 = arith.truncf %231 : vector<4x32xf32> to vector<4x32xbf16>
    %cst_163 = arith.constant dense<0.000000e+00> : vector<4x32xf32>
    %244 = tpu.matmul %242, %243, %cst_163 {dimension_numbers = #tpu.dot_dimension_numbers<[1], [0], [0], [1], [0, 0, 1, 1], [], []>} : vector<4x4xbf16>, vector<4x32xbf16>, vector<4x32xf32> -> vector<4x32xf32>
    %245 = arith.addf %240, %244 : vector<4x32xf32>
    %c0_164 = arith.constant 0 : index
    %c0_165 = arith.constant 0 : index
    %246 = vector.load %arg27[%c0_164, %c0_165] : memref<4x1xf32, #tpu.memory_space<vmem>>, vector<4x1xf32>
    %247 = vector.broadcast %246 : vector<4x1xf32> to vector<4x32xf32>
    %248 = arith.mulf %245, %247 : vector<4x32xf32>
    %c0_166 = arith.constant 0 : index
    %c0_167 = arith.constant 0 : index
    %249 = vector.load %arg28[%c0_166, %c0_167] : memref<4x1xf32, #tpu.memory_space<vmem>>, vector<4x1xf32>
    %250 = vector.broadcast %249 : vector<4x1xf32> to vector<4x32xf32>
    %251 = arith.addf %248, %250 : vector<4x32xf32>
    %cst_168 = arith.constant 0.000000e+00 : f32
    %252 = vector.broadcast %cst_168 : f32 to vector<4x32xf32>
    %253 = arith.cmpf oge, %251, %252 : vector<4x32xf32>
    %cst_169 = arith.constant 2.000000e-01 : f32
    %254 = vector.broadcast %cst_169 : f32 to vector<4x32xf32>
    %255 = arith.mulf %254, %251 : vector<4x32xf32>
    %256 = arith.select %253, %251, %255 : vector<4x32xi1>, vector<4x32xf32>
    %c0_170 = arith.constant 0 : index
    %c0_171 = arith.constant 0 : index
    %257 = vector.load %arg29[%c0_170, %c0_171] : memref<12x4xbf16, #tpu.memory_space<vmem>>, vector<12x4xbf16>
    %258 = arith.truncf %256 : vector<4x32xf32> to vector<4x32xbf16>
    %cst_172 = arith.constant dense<0.000000e+00> : vector<12x32xf32>
    %259 = tpu.matmul %257, %258, %cst_172 {dimension_numbers = #tpu.dot_dimension_numbers<[1], [0], [0], [1], [0, 0, 1, 1], [], []>} : vector<12x4xbf16>, vector<4x32xbf16>, vector<12x32xf32> -> vector<12x32xf32>
    %c0_173 = arith.constant 0 : index
    %c0_174 = arith.constant 0 : index
    %260 = vector.load %arg30[%c0_173, %c0_174] : memref<12x1xf32, #tpu.memory_space<vmem>>, vector<12x1xf32>
    %261 = vector.broadcast %260 : vector<12x1xf32> to vector<12x32xf32>
    %262 = arith.addf %259, %261 : vector<12x32xf32>
    %c0_175 = arith.constant 0 : index
    %c0_176 = arith.constant 0 : index
    %c0_177 = arith.constant 0 : index
    %263 = vector.load %arg31[%c0_175, %c0_176, %c0_177] : memref<1x12x32xf32, #tpu.memory_space<vmem>>, vector<1x12x32xf32>
    %264 = vector.shape_cast %263 : vector<1x12x32xf32> to vector<12x32xf32>
    %265 = vector.shape_cast %262 : vector<12x32xf32> to vector<1x12x32xf32>
    tpu.vector_store %arg31[%c0_175, %c0_176, %c0_177], %265 {strides = array<i32>} : memref<1x12x32xf32, #tpu.memory_space<vmem>>, vector<1x12x32xf32>,
    return
  }
  func.func @transform_0(%arg0: i32) -> (i32, i32, i32) {
    %c0_i32 = arith.constant 0 : i32
    %c0_i32_0 = arith.constant 0 : i32
    %c0_i32_1 = arith.constant 0 : i32
    return %arg0, %c0_i32, %c0_i32_0 : i32, i32, i32
  }
  func.func @transform_1(%arg0: i32) -> (i32, i32, i32) {
    %c0_i32 = arith.constant 0 : i32
    %c0_i32_0 = arith.constant 0 : i32
    %c0_i32_1 = arith.constant 0 : i32
    return %arg0, %c0_i32, %c0_i32_0 : i32, i32, i32
  }
  func.func @transform_2(%arg0: i32) -> (i32, i32, i32) {
    %c0_i32 = arith.constant 0 : i32
    %c0_i32_0 = arith.constant 0 : i32
    %c0_i32_1 = arith.constant 0 : i32
    return %arg0, %c0_i32, %c0_i32_0 : i32, i32, i32
  }
  func.func @transform_3(%arg0: i32) -> (i32, i32, i32) {
    %c0_i32 = arith.constant 0 : i32
    %c0_i32_0 = arith.constant 0 : i32
    %c0_i32_1 = arith.constant 0 : i32
    return %arg0, %c0_i32, %c0_i32_0 : i32, i32, i32
  }
  func.func @transform_4(%arg0: i32) -> (i32, i32) {
    %c0_i32 = arith.constant 0 : i32
    %c0_i32_0 = arith.constant 0 : i32
    %c0_i32_1 = arith.constant 0 : i32
    return %c0_i32, %c0_i32_0 : i32, i32
  }
  func.func @transform_5(%arg0: i32) -> (i32, i32) {
    %c0_i32 = arith.constant 0 : i32
    %c0_i32_0 = arith.constant 0 : i32
    %c0_i32_1 = arith.constant 0 : i32
    return %c0_i32, %c0_i32_0 : i32, i32
  }
  func.func @transform_6(%arg0: i32) -> (i32, i32) {
    %c0_i32 = arith.constant 0 : i32
    %c0_i32_0 = arith.constant 0 : i32
    %c0_i32_1 = arith.constant 0 : i32
    return %c0_i32, %c0_i32_0 : i32, i32
  }
  func.func @transform_7(%arg0: i32) -> (i32, i32, i32) {
    %c0_i32 = arith.constant 0 : i32
    %c0_i32_0 = arith.constant 0 : i32
    %c0_i32_1 = arith.constant 0 : i32
    %c0_i32_2 = arith.constant 0 : i32
    return %c0_i32, %c0_i32_0, %c0_i32_1 : i32, i32, i32
  }
  func.func @transform_8(%arg0: i32) -> (i32, i32, i32) {
    %c0_i32 = arith.constant 0 : i32
    %c0_i32_0 = arith.constant 0 : i32
    %c0_i32_1 = arith.constant 0 : i32
    %c0_i32_2 = arith.constant 0 : i32
    return %c0_i32, %c0_i32_0, %c0_i32_1 : i32, i32, i32
  }
  func.func @transform_9(%arg0: i32) -> (i32, i32) {
    %c0_i32 = arith.constant 0 : i32
    %c0_i32_0 = arith.constant 0 : i32
    %c0_i32_1 = arith.constant 0 : i32
    return %c0_i32, %c0_i32_0 : i32, i32
  }
  func.func @transform_10(%arg0: i32) -> (i32, i32) {
    %c0_i32 = arith.constant 0 : i32
    %c0_i32_0 = arith.constant 0 : i32
    %c0_i32_1 = arith.constant 0 : i32
    return %c0_i32, %c0_i32_0 : i32, i32
  }
  func.func @transform_11(%arg0: i32) -> (i32, i32, i32) {
    %c0_i32 = arith.constant 0 : i32
    %c0_i32_0 = arith.constant 0 : i32
    %c0_i32_1 = arith.constant 0 : i32
    %c0_i32_2 = arith.constant 0 : i32
    return %c0_i32, %c0_i32_0, %c0_i32_1 : i32, i32, i32
  }
  func.func @transform_12(%arg0: i32) -> (i32, i32) {
    %c0_i32 = arith.constant 0 : i32
    %c0_i32_0 = arith.constant 0 : i32
    %c0_i32_1 = arith.constant 0 : i32
    return %c0_i32, %c0_i32_0 : i32, i32
  }
  func.func @transform_13(%arg0: i32) -> (i32, i32) {
    %c0_i32 = arith.constant 0 : i32
    %c0_i32_0 = arith.constant 0 : i32
    %c0_i32_1 = arith.constant 0 : i32
    return %c0_i32, %c0_i32_0 : i32, i32
  }
  func.func @transform_14(%arg0: i32) -> (i32, i32, i32) {
    %c0_i32 = arith.constant 0 : i32
    %c0_i32_0 = arith.constant 0 : i32
    %c0_i32_1 = arith.constant 0 : i32
    %c0_i32_2 = arith.constant 0 : i32
    return %c0_i32, %c0_i32_0, %c0_i32_1 : i32, i32, i32
  }
  func.func @transform_15(%arg0: i32) -> (i32, i32, i32) {
    %c0_i32 = arith.constant 0 : i32
    %c0_i32_0 = arith.constant 0 : i32
    %c0_i32_1 = arith.constant 0 : i32
    %c0_i32_2 = arith.constant 0 : i32
    return %c0_i32, %c0_i32_0, %c0_i32_1 : i32, i32, i32
  }
  func.func @transform_16(%arg0: i32) -> (i32, i32) {
    %c0_i32 = arith.constant 0 : i32
    %c0_i32_0 = arith.constant 0 : i32
    %c0_i32_1 = arith.constant 0 : i32
    return %c0_i32, %c0_i32_0 : i32, i32
  }
  func.func @transform_17(%arg0: i32) -> (i32, i32) {
    %c0_i32 = arith.constant 0 : i32
    %c0_i32_0 = arith.constant 0 : i32
    %c0_i32_1 = arith.constant 0 : i32
    return %c0_i32, %c0_i32_0 : i32, i32
  }
  func.func @transform_18(%arg0: i32) -> (i32, i32, i32) {
    %c0_i32 = arith.constant 0 : i32
    %c0_i32_0 = arith.constant 0 : i32
    %c0_i32_1 = arith.constant 0 : i32
    %c0_i32_2 = arith.constant 0 : i32
    return %c0_i32, %c0_i32_0, %c0_i32_1 : i32, i32, i32
  }
  func.func @transform_19(%arg0: i32) -> (i32, i32) {
    %c0_i32 = arith.constant 0 : i32
    %c0_i32_0 = arith.constant 0 : i32
    %c0_i32_1 = arith.constant 0 : i32
    return %c0_i32, %c0_i32_0 : i32, i32
  }
  func.func @transform_20(%arg0: i32) -> (i32, i32) {
    %c0_i32 = arith.constant 0 : i32
    %c0_i32_0 = arith.constant 0 : i32
    %c0_i32_1 = arith.constant 0 : i32
    return %c0_i32, %c0_i32_0 : i32, i32
  }
  func.func @transform_21(%arg0: i32) -> (i32, i32, i32) {
    %c0_i32 = arith.constant 0 : i32
    %c0_i32_0 = arith.constant 0 : i32
    %c0_i32_1 = arith.constant 0 : i32
    %c0_i32_2 = arith.constant 0 : i32
    return %c0_i32, %c0_i32_0, %c0_i32_1 : i32, i32, i32
  }
  func.func @transform_22(%arg0: i32) -> (i32, i32, i32) {
    %c0_i32 = arith.constant 0 : i32
    %c0_i32_0 = arith.constant 0 : i32
    %c0_i32_1 = arith.constant 0 : i32
    %c0_i32_2 = arith.constant 0 : i32
    return %c0_i32, %c0_i32_0, %c0_i32_1 : i32, i32, i32
  }
  func.func @transform_23(%arg0: i32) -> (i32, i32) {
    %c0_i32 = arith.constant 0 : i32
    %c0_i32_0 = arith.constant 0 : i32
    %c0_i32_1 = arith.constant 0 : i32
    return %c0_i32, %c0_i32_0 : i32, i32
  }
  func.func @transform_24(%arg0: i32) -> (i32, i32) {
    %c0_i32 = arith.constant 0 : i32
    %c0_i32_0 = arith.constant 0 : i32
    %c0_i32_1 = arith.constant 0 : i32
    return %c0_i32, %c0_i32_0 : i32, i32
  }
  func.func @transform_25(%arg0: i32) -> (i32, i32, i32) {
    %c0_i32 = arith.constant 0 : i32
    %c0_i32_0 = arith.constant 0 : i32
    %c0_i32_1 = arith.constant 0 : i32
    %c0_i32_2 = arith.constant 0 : i32
    return %c0_i32, %c0_i32_0, %c0_i32_1 : i32, i32, i32
  }
  func.func @transform_26(%arg0: i32) -> (i32, i32) {
    %c0_i32 = arith.constant 0 : i32
    %c0_i32_0 = arith.constant 0 : i32
    %c0_i32_1 = arith.constant 0 : i32
    return %c0_i32, %c0_i32_0 : i32, i32
  }
  func.func @transform_27(%arg0: i32) -> (i32, i32) {
    %c0_i32 = arith.constant 0 : i32
    %c0_i32_0 = arith.constant 0 : i32
    %c0_i32_1 = arith.constant 0 : i32
    return %c0_i32, %c0_i32_0 : i32, i32
  }
  func.func @transform_28(%arg0: i32) -> (i32, i32) {
    %c0_i32 = arith.constant 0 : i32
    %c0_i32_0 = arith.constant 0 : i32
    %c0_i32_1 = arith.constant 0 : i32
    return %c0_i32, %c0_i32_0 : i32, i32
  }
  func.func @transform_29(%arg0: i32) -> (i32, i32) {
    %c0_i32 = arith.constant 0 : i32
    %c0_i32_0 = arith.constant 0 : i32
    %c0_i32_1 = arith.constant 0 : i32
    return %c0_i32, %c0_i32_0 : i32, i32
  }
  func.func @transform_30(%arg0: i32) -> (i32, i32, i32) {
    %c0_i32 = arith.constant 0 : i32
    %c0_i32_0 = arith.constant 0 : i32
    %c0_i32_1 = arith.constant 0 : i32
    return %arg0, %c0_i32, %c0_i32_0 : i32, i32, i32
  }
}

</mosaic_0001>

<llo_original>
// kernel: tpu_custom_call.1
$region0: #{tpu_custom_call.1}
  #allocation0 [shape = 'u32[]', space=smem, size = 0x4, offset = 0x4, fixed_abs, tag = 'smem constant byte address 0x4 - core index']
  #allocation1 [shape = 'u32[144,128]{1,0:T(1,128)}', space=vmem, size = 0x12000, scoped, tag = 'internal scratch']
  %s0 = inlined_call_operand.smem [shape: u32[31], index: -1, kind: input, shape index: {}]
  %s1 = sld [smem:[%s0]]
  %s2 = scalar_lea.smem %s0, 1
  %s3 = sld [smem:[%s2]]
  %s4 = scalar_lea.smem %s0, 2
  %s5 = sld [smem:[%s4]]
  %s6 = scalar_lea.smem %s0, 3
  %s7 = sld [smem:[%s6]]
  %s8 = scalar_lea.smem %s0, 4
  %s9 = sld [smem:[%s8]]
  %s10 = scalar_lea.smem %s0, 5
  %s11 = sld [smem:[%s10]]
  %s12 = scalar_lea.smem %s0, 6
  %s13 = sld [smem:[%s12]]
  %s14 = scalar_lea.smem %s0, 7
  %s15 = sld [smem:[%s14]]
  %s16 = scalar_lea.smem %s0, 8
  %s17 = sld [smem:[%s16]]
  %s18 = scalar_lea.smem %s0, 9
  %s19 = sld [smem:[%s18]]
  %s20 = scalar_lea.smem %s0, 10
  %s21 = sld [smem:[%s20]]
  %s22 = scalar_lea.smem %s0, 11
  %s23 = sld [smem:[%s22]]
  %s24 = scalar_lea.smem %s0, 12
  %s25 = sld [smem:[%s24]]
  %s26 = scalar_lea.smem %s0, 13
  %s27 = sld [smem:[%s26]]
  %s28 = scalar_lea.smem %s0, 14
  %s29 = sld [smem:[%s28]]
  %s30 = scalar_lea.smem %s0, 15
  %s31 = sld [smem:[%s30]]
  %s32 = scalar_lea.smem %s0, 16
  %s33 = sld [smem:[%s32]]
  %s34 = scalar_lea.smem %s0, 17
  %s35 = sld [smem:[%s34]]
  %s36 = scalar_lea.smem %s0, 18
  %s37 = sld [smem:[%s36]]
  %s38 = scalar_lea.smem %s0, 19
  %s39 = sld [smem:[%s38]]
  %s40 = scalar_lea.smem %s0, 20
  %s41 = sld [smem:[%s40]]
  %s42 = scalar_lea.smem %s0, 21
  %s43 = sld [smem:[%s42]]
  %s44 = scalar_lea.smem %s0, 22
  %s45 = sld [smem:[%s44]]
  %s46 = scalar_lea.smem %s0, 23
  %s47 = sld [smem:[%s46]]
  %s48 = scalar_lea.smem %s0, 24
  %s49 = sld [smem:[%s48]]
  %s50 = scalar_lea.smem %s0, 25
  %s51 = sld [smem:[%s50]]
  %s52 = scalar_lea.smem %s0, 26
  %s53 = sld [smem:[%s52]]
  %s54 = scalar_lea.smem %s0, 27
  %s55 = sld [smem:[%s54]]
  %s56 = scalar_lea.smem %s0, 28
  %s57 = sld [smem:[%s56]]
  %s58 = scalar_lea.smem %s0, 29
  %s59 = sld [smem:[%s58]]
  %s60 = scalar_lea.smem %s0, 30
  %s61 = sld [smem:[%s60]]
  %s62 = sld [smem:[#allocation0]]
  $region153: #{tpu_custom_call.1} parent=0
    _
  %s64 = ssub.s32 1, %s62
  %s65 = scalar_select 0, %s64, %s62
  loop: start=0, step=1, limit=4
  $region2: #{tpu_custom_call.1} parent=0 // loop_pre_header
    _
  $region3: #{tpu_custom_call.1} parent=0 // loop_header
    %s67 = sphi 0, %s71
    %p68 = scmp.ge.s32.totalorder %s67, 4
    %s77 = sphi 0, %s79
    %s80 = sphi 0, %s77
    %s81 = sphi 0, %s80
    %s97 = sphi 0, %s81
    %s103 = sphi 0, %s105
    %s106 = sphi 0, %s103
    %s107 = sphi 0, %s106
    %s123 = sphi 0, %s107
    %s129 = sphi 0, %s131
    %s132 = sphi 0, %s129
    %s133 = sphi 0, %s132
    %s149 = sphi 0, %s133
    %s155 = sphi 0, %s157
    %s158 = sphi 0, %s155
    %s159 = sphi 0, %s158
    %s175 = sphi 0, %s159
    %s179 = sphi 0, %s179
    %s181 = sphi 0, %s179
    %s182 = sphi 0, %s181
    %s196 = sphi 0, %s182
    %s200 = sphi 0, %s200
    %s202 = sphi 0, %s200
    %s203 = sphi 0, %s202
    %s217 = sphi 0, %s203
    %s221 = sphi 0, %s221
    %s223 = sphi 0, %s221
    %s224 = sphi 0, %s223
    %s238 = sphi 0, %s224
    %s242 = sphi 0, %s242
    %s244 = sphi 0, %s242
    %s245 = sphi 0, %s244
    %s259 = sphi 0, %s245
    %s263 = sphi 0, %s263
    %s265 = sphi 0, %s263
    %s266 = sphi 0, %s265
    %s280 = sphi 0, %s266
    %s284 = sphi 0, %s284
    %s286 = sphi 0, %s284
    %s287 = sphi 0, %s286
    %s301 = sphi 0, %s287
    %s305 = sphi 0, %s305
    %s307 = sphi 0, %s305
    %s308 = sphi 0, %s307
    %s322 = sphi 0, %s308
    %s326 = sphi 0, %s326
    %s328 = sphi 0, %s326
    %s329 = sphi 0, %s328
    %s343 = sphi 0, %s329
    %s347 = sphi 0, %s347
    %s349 = sphi 0, %s347
    %s350 = sphi 0, %s349
    %s364 = sphi 0, %s350
    %s368 = sphi 0, %s368
    %s370 = sphi 0, %s368
    %s371 = sphi 0, %s370
    %s385 = sphi 0, %s371
    %s389 = sphi 0, %s389
    %s391 = sphi 0, %s389
    %s392 = sphi 0, %s391
    %s406 = sphi 0, %s392
    %s410 = sphi 0, %s410
    %s412 = sphi 0, %s410
    %s413 = sphi 0, %s412
    %s427 = sphi 0, %s413
    %s431 = sphi 0, %s431
    %s433 = sphi 0, %s431
    %s434 = sphi 0, %s433
    %s448 = sphi 0, %s434
    %s452 = sphi 0, %s452
    %s454 = sphi 0, %s452
    %s455 = sphi 0, %s454
    %s469 = sphi 0, %s455
    %s473 = sphi 0, %s473
    %s475 = sphi 0, %s473
    %s476 = sphi 0, %s475
    %s490 = sphi 0, %s476
    %s494 = sphi 0, %s494
    %s496 = sphi 0, %s494
    %s497 = sphi 0, %s496
    %s511 = sphi 0, %s497
    %s515 = sphi 0, %s515
    %s517 = sphi 0, %s515
    %s518 = sphi 0, %s517
    %s532 = sphi 0, %s518
    %s536 = sphi 0, %s536
    %s538 = sphi 0, %s536
    %s539 = sphi 0, %s538
    %s553 = sphi 0, %s539
    %s557 = sphi 0, %s557
    %s559 = sphi 0, %s557
    %s560 = sphi 0, %s559
    %s574 = sphi 0, %s560
    %s578 = sphi 0, %s578
    %s580 = sphi 0, %s578
    %s581 = sphi 0, %s580
    %s595 = sphi 0, %s581
    %s599 = sphi 0, %s599
    %s601 = sphi 0, %s599
    %s602 = sphi 0, %s601
    %s616 = sphi 0, %s602
    %s620 = sphi 0, %s620
    %s622 = sphi 0, %s620
    %s623 = sphi 0, %s622
    %s637 = sphi 0, %s623
    %s641 = sphi 0, %s641
    %s643 = sphi 0, %s641
    %s644 = sphi 0, %s643
    %s658 = sphi 0, %s644
    %s662 = sphi 0, %s662
    %s664 = sphi 0, %s662
    %s665 = sphi 0, %s664
    %s679 = sphi 0, %s665
    %s683 = sphi 0, %s683
    %s685 = sphi 0, %s683
    %s686 = sphi 0, %s685
    %s700 = sphi 0, %s686
    %s704 = sphi 0, %s704
    %s706 = sphi 0, %s704
    %s707 = sphi 0, %s706
    %s721 = sphi 0, %s707
    %s727 = sphi 0, %s729
    %s730 = sphi 0, %s727
    %s731 = sphi 0, %s730
    %s747 = sphi 0, %s731
  $region4: #{tpu_custom_call.1} parent=0 // loop_header_branch
    %70 = sbr.rel (%p68) target = $region8
  $region5: #{tpu_custom_call.1} parent=0 // loop_body
    %s72 = ssub.s32 %s67, 1
    %s73 = ssub.s32 %s67, 2
    %s74 = sadd.s32 %s67, 1
    %s75 = ssub.s32 %s67, %s74
    %p76 = scmp.eq.s32.totalorder %s75, 0
    %s78 = sadd.s32 %s77, 1
    %s79 = scalar_select %p76, %s77, %s78
    %p82 = pneg %p76
    %p83 = scmp.eq.s32.totalorder %s67, 1
    %p84 = por %p82, %p83
    %p85 = scmp.ne.s32.totalorder %s77, %s80
    %p86 = scmp.eq.s32.totalorder %s67, 0
    %p87 = por %p85, %p86
    %p88 = scmp.ne.s32.totalorder %s77, %s80
    %p89 = scmp.eq.s32.totalorder %s72, 1
    %p90 = por %p88, %p89
    %p91 = scmp.ne.s32.totalorder %s80, %s81
    %p92 = scmp.eq.s32.totalorder %s72, 0
    %p93 = por %p91, %p92
    %p94 = scmp.ne.s32.totalorder %s80, %s81
    %p95 = scmp.eq.s32.totalorder %s73, 1
    %p96 = por %p94, %p95
    %p98 = scmp.ne.s32.totalorder %s81, %s97
    %p99 = scmp.eq.s32.totalorder %s73, 0
    %p100 = por %p98, %p99
    %s101 = ssub.s32 %s67, %s74
    %p102 = scmp.eq.s32.totalorder %s101, 0
    %s104 = sadd.s32 %s103, 1
    %s105 = scalar_select %p102, %s103, %s104
    %p108 = pneg %p102
    %p109 = scmp.eq.s32.totalorder %s67, 1
    %p110 = por %p108, %p109
    %p111 = scmp.ne.s32.totalorder %s103, %s106
    %p112 = scmp.eq.s32.totalorder %s67, 0
    %p113 = por %p111, %p112
    %p114 = scmp.ne.s32.totalorder %s103, %s106
    %p115 = scmp.eq.s32.totalorder %s72, 1
    %p116 = por %p114, %p115
    %p117 = scmp.ne.s32.totalorder %s106, %s107
    %p118 = scmp.eq.s32.totalorder %s72, 0
    %p119 = por %p117, %p118
    %p120 = scmp.ne.s32.totalorder %s106, %s107
    %p121 = scmp.eq.s32.totalorder %s73, 1
    %p122 = por %p120, %p121
    %p124 = scmp.ne.s32.totalorder %s107, %s123
    %p125 = scmp.eq.s32.totalorder %s73, 0
    %p126 = por %p124, %p125
    %s127 = ssub.s32 %s67, %s74
    %p128 = scmp.eq.s32.totalorder %s127, 0
    %s130 = sadd.s32 %s129, 1
    %s131 = scalar_select %p128, %s129, %s130
    %p134 = pneg %p128
    %p135 = scmp.eq.s32.totalorder %s67, 1
    %p136 = por %p134, %p135
    %p137 = scmp.ne.s32.totalorder %s129, %s132
    %p138 = scmp.eq.s32.totalorder %s67, 0
    %p139 = por %p137, %p138
    %p140 = scmp.ne.s32.totalorder %s129, %s132
    %p141 = scmp.eq.s32.totalorder %s72, 1
    %p142 = por %p140, %p141
    %p143 = scmp.ne.s32.totalorder %s132, %s133
    %p144 = scmp.eq.s32.totalorder %s72, 0
    %p145 = por %p143, %p144
    %p146 = scmp.ne.s32.totalorder %s132, %s133
    %p147 = scmp.eq.s32.totalorder %s73, 1
    %p148 = por %p146, %p147
    %p150 = scmp.ne.s32.totalorder %s133, %s149
    %p151 = scmp.eq.s32.totalorder %s73, 0
    %p152 = por %p150, %p151
    %s153 = ssub.s32 %s67, %s74
    %p154 = scmp.eq.s32.totalorder %s153, 0
    %s156 = sadd.s32 %s155, 1
    %s157 = scalar_select %p154, %s155, %s156
    %p160 = pneg %p154
    %p161 = scmp.eq.s32.totalorder %s67, 1
    %p162 = por %p160, %p161
    %p163 = scmp.ne.s32.totalorder %s155, %s158
    %p164 = scmp.eq.s32.totalorder %s67, 0
    %p165 = por %p163, %p164
    %p166 = scmp.ne.s32.totalorder %s155, %s158
    %p167 = scmp.eq.s32.totalorder %s72, 1
    %p168 = por %p166, %p167
    %p169 = scmp.ne.s32.totalorder %s158, %s159
    %p170 = scmp.eq.s32.totalorder %s72, 0
    %p171 = por %p169, %p170
    %p172 = scmp.ne.s32.totalorder %s158, %s159
    %p173 = scmp.eq.s32.totalorder %s73, 1
    %p174 = por %p172, %p173
    %p176 = scmp.ne.s32.totalorder %s159, %s175
    %p177 = scmp.eq.s32.totalorder %s73, 0
    %p178 = por %p176, %p177
    %s180 = sadd.s32 %s179, 1
    %p183 = scmp.eq.s32.totalorder %s67, 1
    %p184 = scmp.ne.s32.totalorder %s179, %s181
    %p185 = scmp.eq.s32.totalorder %s67, 0
    %p186 = por %p184, %p185
    %p187 = scmp.ne.s32.totalorder %s179, %s181
    %p188 = scmp.eq.s32.totalorder %s72, 1
    %p189 = por %p187, %p188
    %p190 = scmp.ne.s32.totalorder %s181, %s182
    %p191 = scmp.eq.s32.totalorder %s72, 0
    %p192 = por %p190, %p191
    %p193 = scmp.ne.s32.totalorder %s181, %s182
    %p194 = scmp.eq.s32.totalorder %s73, 1
    %p195 = por %p193, %p194
    %p197 = scmp.ne.s32.totalorder %s182, %s196
    %p198 = scmp.eq.s32.totalorder %s73, 0
    %p199 = por %p197, %p198
    %s201 = sadd.s32 %s200, 1
    %p204 = scmp.eq.s32.totalorder %s67, 1
    %p205 = scmp.ne.s32.totalorder %s200, %s202
    %p206 = scmp.eq.s32.totalorder %s67, 0
    %p207 = por %p205, %p206
    %p208 = scmp.ne.s32.totalorder %s200, %s202
    %p209 = scmp.eq.s32.totalorder %s72, 1
    %p210 = por %p208, %p209
    %p211 = scmp.ne.s32.totalorder %s202, %s203
    %p212 = scmp.eq.s32.totalorder %s72, 0
    %p213 = por %p211, %p212
    %p214 = scmp.ne.s32.totalorder %s202, %s203
    %p215 = scmp.eq.s32.totalorder %s73, 1
    %p216 = por %p214, %p215
    %p218 = scmp.ne.s32.totalorder %s203, %s217
    %p219 = scmp.eq.s32.totalorder %s73, 0
    %p220 = por %p218, %p219
    %s222 = sadd.s32 %s221, 1
    %p225 = scmp.eq.s32.totalorder %s67, 1
    %p226 = scmp.ne.s32.totalorder %s221, %s223
    %p227 = scmp.eq.s32.totalorder %s67, 0
    %p228 = por %p226, %p227
    %p229 = scmp.ne.s32.totalorder %s221, %s223
    %p230 = scmp.eq.s32.totalorder %s72, 1
    %p231 = por %p229, %p230
    %p232 = scmp.ne.s32.totalorder %s223, %s224
    %p233 = scmp.eq.s32.totalorder %s72, 0
    %p234 = por %p232, %p233
    %p235 = scmp.ne.s32.totalorder %s223, %s224
    %p236 = scmp.eq.s32.totalorder %s73, 1
    %p237 = por %p235, %p236
    %p239 = scmp.ne.s32.totalorder %s224, %s238
    %p240 = scmp.eq.s32.totalorder %s73, 0
    %p241 = por %p239, %p240
    %s243 = sadd.s32 %s242, 1
    %p246 = scmp.eq.s32.totalorder %s67, 1
    %p247 = scmp.ne.s32.totalorder %s242, %s244
    %p248 = scmp.eq.s32.totalorder %s67, 0
    %p249 = por %p247, %p248
    %p250 = scmp.ne.s32.totalorder %s242, %s244
    %p251 = scmp.eq.s32.totalorder %s72, 1
    %p252 = por %p250, %p251
    %p253 = scmp.ne.s32.totalorder %s244, %s245
    %p254 = scmp.eq.s32.totalorder %s72, 0
    %p255 = por %p253, %p254
    %p256 = scmp.ne.s32.totalorder %s244, %s245
    %p257 = scmp.eq.s32.totalorder %s73, 1
    %p258 = por %p256, %p257
    %p260 = scmp.ne.s32.totalorder %s245, %s259
    %p261 = scmp.eq.s32.totalorder %s73, 0
    %p262 = por %p260, %p261
    %s264 = sadd.s32 %s263, 1
    %p267 = scmp.eq.s32.totalorder %s67, 1
    %p268 = scmp.ne.s32.totalorder %s263, %s265
    %p269 = scmp.eq.s32.totalorder %s67, 0
    %p270 = por %p268, %p269
    %p271 = scmp.ne.s32.totalorder %s263, %s265
    %p272 = scmp.eq.s32.totalorder %s72, 1
    %p273 = por %p271, %p272
    %p274 = scmp.ne.s32.totalorder %s265, %s266
    %p275 = scmp.eq.s32.totalorder %s72, 0
    %p276 = por %p274, %p275
    %p277 = scmp.ne.s32.totalorder %s265, %s266
    %p278 = scmp.eq.s32.totalorder %s73, 1
    %p279 = por %p277, %p278
    %p281 = scmp.ne.s32.totalorder %s266, %s280
    %p282 = scmp.eq.s32.totalorder %s73, 0
    %p283 = por %p281, %p282
    %s285 = sadd.s32 %s284, 1
    %p288 = scmp.eq.s32.totalorder %s67, 1
    %p289 = scmp.ne.s32.totalorder %s284, %s286
    %p290 = scmp.eq.s32.totalorder %s67, 0
    %p291 = por %p289, %p290
    %p292 = scmp.ne.s32.totalorder %s284, %s286
    %p293 = scmp.eq.s32.totalorder %s72, 1
    %p294 = por %p292, %p293
    %p295 = scmp.ne.s32.totalorder %s286, %s287
    %p296 = scmp.eq.s32.totalorder %s72, 0
    %p297 = por %p295, %p296
    %p298 = scmp.ne.s32.totalorder %s286, %s287
    %p299 = scmp.eq.s32.totalorder %s73, 1
    %p300 = por %p298, %p299
    %p302 = scmp.ne.s32.totalorder %s287, %s301
    %p303 = scmp.eq.s32.totalorder %s73, 0
    %p304 = por %p302, %p303
    %s306 = sadd.s32 %s305, 1
    %p309 = scmp.eq.s32.totalorder %s67, 1
    %p310 = scmp.ne.s32.totalorder %s305, %s307
    %p311 = scmp.eq.s32.totalorder %s67, 0
    %p312 = por %p310, %p311
    %p313 = scmp.ne.s32.totalorder %s305, %s307
    %p314 = scmp.eq.s32.totalorder %s72, 1
    %p315 = por %p313, %p314
    %p316 = scmp.ne.s32.totalorder %s307, %s308
    %p317 = scmp.eq.s32.totalorder %s72, 0
    %p318 = por %p316, %p317
    %p319 = scmp.ne.s32.totalorder %s307, %s308
    %p320 = scmp.eq.s32.totalorder %s73, 1
    %p321 = por %p319, %p320
    %p323 = scmp.ne.s32.totalorder %s308, %s322
    %p324 = scmp.eq.s32.totalorder %s73, 0
    %p325 = por %p323, %p324
    %s327 = sadd.s32 %s326, 1
    %p330 = scmp.eq.s32.totalorder %s67, 1
    %p331 = scmp.ne.s32.totalorder %s326, %s328
    %p332 = scmp.eq.s32.totalorder %s67, 0
    %p333 = por %p331, %p332
    %p334 = scmp.ne.s32.totalorder %s326, %s328
    %p335 = scmp.eq.s32.totalorder %s72, 1
    %p336 = por %p334, %p335
    %p337 = scmp.ne.s32.totalorder %s328, %s329
    %p338 = scmp.eq.s32.totalorder %s72, 0
    %p339 = por %p337, %p338
    %p340 = scmp.ne.s32.totalorder %s328, %s329
    %p341 = scmp.eq.s32.totalorder %s73, 1
    %p342 = por %p340, %p341
    %p344 = scmp.ne.s32.totalorder %s329, %s343
    %p345 = scmp.eq.s32.totalorder %s73, 0
    %p346 = por %p344, %p345
    %s348 = sadd.s32 %s347, 1
    %p351 = scmp.eq.s32.totalorder %s67, 1
    %p352 = scmp.ne.s32.totalorder %s347, %s349
    %p353 = scmp.eq.s32.totalorder %s67, 0
    %p354 = por %p352, %p353
    %p355 = scmp.ne.s32.totalorder %s347, %s349
    %p356 = scmp.eq.s32.totalorder %s72, 1
    %p357 = por %p355, %p356
    %p358 = scmp.ne.s32.totalorder %s349, %s350
    %p359 = scmp.eq.s32.totalorder %s72, 0
    %p360 = por %p358, %p359
    %p361 = scmp.ne.s32.totalorder %s349, %s350
    %p362 = scmp.eq.s32.totalorder %s73, 1
    %p363 = por %p361, %p362
    %p365 = scmp.ne.s32.totalorder %s350, %s364
    %p366 = scmp.eq.s32.totalorder %s73, 0
    %p367 = por %p365, %p366
    %s369 = sadd.s32 %s368, 1
    %p372 = scmp.eq.s32.totalorder %s67, 1
    %p373 = scmp.ne.s32.totalorder %s368, %s370
    %p374 = scmp.eq.s32.totalorder %s67, 0
    %p375 = por %p373, %p374
    %p376 = scmp.ne.s32.totalorder %s368, %s370
    %p377 = scmp.eq.s32.totalorder %s72, 1
    %p378 = por %p376, %p377
    %p379 = scmp.ne.s32.totalorder %s370, %s371
    %p380 = scmp.eq.s32.totalorder %s72, 0
    %p381 = por %p379, %p380
    %p382 = scmp.ne.s32.totalorder %s370, %s371
    %p383 = scmp.eq.s32.totalorder %s73, 1
    %p384 = por %p382, %p383
    %p386 = scmp.ne.s32.totalorder %s371, %s385
    %p387 = scmp.eq.s32.totalorder %s73, 0
    %p388 = por %p386, %p387
    %s390 = sadd.s32 %s389, 1
    %p393 = scmp.eq.s32.totalorder %s67, 1
    %p394 = scmp.ne.s32.totalorder %s389, %s391
    %p395 = scmp.eq.s32.totalorder %s67, 0
    %p396 = por %p394, %p395
    %p397 = scmp.ne.s32.totalorder %s389, %s391
    %p398 = scmp.eq.s32.totalorder %s72, 1
    %p399 = por %p397, %p398
    %p400 = scmp.ne.s32.totalorder %s391, %s392
    %p401 = scmp.eq.s32.totalorder %s72, 0
    %p402 = por %p400, %p401
    %p403 = scmp.ne.s32.totalorder %s391, %s392
    %p404 = scmp.eq.s32.totalorder %s73, 1
    %p405 = por %p403, %p404
    %p407 = scmp.ne.s32.totalorder %s392, %s406
    %p408 = scmp.eq.s32.totalorder %s73, 0
    %p409 = por %p407, %p408
    %s411 = sadd.s32 %s410, 1
    %p414 = scmp.eq.s32.totalorder %s67, 1
    %p415 = scmp.ne.s32.totalorder %s410, %s412
    %p416 = scmp.eq.s32.totalorder %s67, 0
    %p417 = por %p415, %p416
    %p418 = scmp.ne.s32.totalorder %s410, %s412
    %p419 = scmp.eq.s32.totalorder %s72, 1
    %p420 = por %p418, %p419
    %p421 = scmp.ne.s32.totalorder %s412, %s413
    %p422 = scmp.eq.s32.totalorder %s72, 0
    %p423 = por %p421, %p422
    %p424 = scmp.ne.s32.totalorder %s412, %s413
    %p425 = scmp.eq.s32.totalorder %s73, 1
    %p426 = por %p424, %p425
    %p428 = scmp.ne.s32.totalorder %s413, %s427
    %p429 = scmp.eq.s32.totalorder %s73, 0
    %p430 = por %p428, %p429
    %s432 = sadd.s32 %s431, 1
    %p435 = scmp.eq.s32.totalorder %s67, 1
    %p436 = scmp.ne.s32.totalorder %s431, %s433
    %p437 = scmp.eq.s32.totalorder %s67, 0
    %p438 = por %p436, %p437
    %p439 = scmp.ne.s32.totalorder %s431, %s433
    %p440 = scmp.eq.s32.totalorder %s72, 1
    %p441 = por %p439, %p440
    %p442 = scmp.ne.s32.totalorder %s433, %s434
    %p443 = scmp.eq.s32.totalorder %s72, 0
    %p444 = por %p442, %p443
    %p445 = scmp.ne.s32.totalorder %s433, %s434
    %p446 = scmp.eq.s32.totalorder %s73, 1
    %p447 = por %p445, %p446
    %p449 = scmp.ne.s32.totalorder %s434, %s448
    %p450 = scmp.eq.s32.totalorder %s73, 0
    %p451 = por %p449, %p450
    %s453 = sadd.s32 %s452, 1
    %p456 = scmp.eq.s32.totalorder %s67, 1
    %p457 = scmp.ne.s32.totalorder %s452, %s454
    %p458 = scmp.eq.s32.totalorder %s67, 0
    %p459 = por %p457, %p458
    %p460 = scmp.ne.s32.totalorder %s452, %s454
    %p461 = scmp.eq.s32.totalorder %s72, 1
    %p462 = por %p460, %p461
    %p463 = scmp.ne.s32.totalorder %s454, %s455
    %p464 = scmp.eq.s32.totalorder %s72, 0
    %p465 = por %p463, %p464
    %p466 = scmp.ne.s32.totalorder %s454, %s455
    %p467 = scmp.eq.s32.totalorder %s73, 1
    %p468 = por %p466, %p467
    %p470 = scmp.ne.s32.totalorder %s455, %s469
    %p471 = scmp.eq.s32.totalorder %s73, 0
    %p472 = por %p470, %p471
    %s474 = sadd.s32 %s473, 1
    %p477 = scmp.eq.s32.totalorder %s67, 1
    %p478 = scmp.ne.s32.totalorder %s473, %s475
    %p479 = scmp.eq.s32.totalorder %s67, 0
    %p480 = por %p478, %p479
    %p481 = scmp.ne.s32.totalorder %s473, %s475
    %p482 = scmp.eq.s32.totalorder %s72, 1
    %p483 = por %p481, %p482
    %p484 = scmp.ne.s32.totalorder %s475, %s476
    %p485 = scmp.eq.s32.totalorder %s72, 0
    %p486 = por %p484, %p485
    %p487 = scmp.ne.s32.totalorder %s475, %s476
    %p488 = scmp.eq.s32.totalorder %s73, 1
    %p489 = por %p487, %p488
    %p491 = scmp.ne.s32.totalorder %s476, %s490
    %p492 = scmp.eq.s32.totalorder %s73, 0
    %p493 = por %p491, %p492
    %s495 = sadd.s32 %s494, 1
    %p498 = scmp.eq.s32.totalorder %s67, 1
    %p499 = scmp.ne.s32.totalorder %s494, %s496
    %p500 = scmp.eq.s32.totalorder %s67, 0
    %p501 = por %p499, %p500
    %p502 = scmp.ne.s32.totalorder %s494, %s496
    %p503 = scmp.eq.s32.totalorder %s72, 1
    %p504 = por %p502, %p503
    %p505 = scmp.ne.s32.totalorder %s496, %s497
    %p506 = scmp.eq.s32.totalorder %s72, 0
    %p507 = por %p505, %p506
    %p508 = scmp.ne.s32.totalorder %s496, %s497
    %p509 = scmp.eq.s32.totalorder %s73, 1
    %p510 = por %p508, %p509
    %p512 = scmp.ne.s32.totalorder %s497, %s511
    %p513 = scmp.eq.s32.totalorder %s73, 0
    %p514 = por %p512, %p513
    %s516 = sadd.s32 %s515, 1
    %p519 = scmp.eq.s32.totalorder %s67, 1
    %p520 = scmp.ne.s32.totalorder %s515, %s517
    %p521 = scmp.eq.s32.totalorder %s67, 0
    %p522 = por %p520, %p521
    %p523 = scmp.ne.s32.totalorder %s515, %s517
    %p524 = scmp.eq.s32.totalorder %s72, 1
    %p525 = por %p523, %p524
    %p526 = scmp.ne.s32.totalorder %s517, %s518
    %p527 = scmp.eq.s32.totalorder %s72, 0
    %p528 = por %p526, %p527
    %p529 = scmp.ne.s32.totalorder %s517, %s518
    %p530 = scmp.eq.s32.totalorder %s73, 1
    %p531 = por %p529, %p530
    %p533 = scmp.ne.s32.totalorder %s518, %s532
    %p534 = scmp.eq.s32.totalorder %s73, 0
    %p535 = por %p533, %p534
    %s537 = sadd.s32 %s536, 1
    %p540 = scmp.eq.s32.totalorder %s67, 1
    %p541 = scmp.ne.s32.totalorder %s536, %s538
    %p542 = scmp.eq.s32.totalorder %s67, 0
    %p543 = por %p541, %p542
    %p544 = scmp.ne.s32.totalorder %s536, %s538
    %p545 = scmp.eq.s32.totalorder %s72, 1
    %p546 = por %p544, %p545
    %p547 = scmp.ne.s32.totalorder %s538, %s539
    %p548 = scmp.eq.s32.totalorder %s72, 0
    %p549 = por %p547, %p548
    %p550 = scmp.ne.s32.totalorder %s538, %s539
    %p551 = scmp.eq.s32.totalorder %s73, 1
    %p552 = por %p550, %p551
    %p554 = scmp.ne.s32.totalorder %s539, %s553
    %p555 = scmp.eq.s32.totalorder %s73, 0
    %p556 = por %p554, %p555
    %s558 = sadd.s32 %s557, 1
    %p561 = scmp.eq.s32.totalorder %s67, 1
    %p562 = scmp.ne.s32.totalorder %s557, %s559
    %p563 = scmp.eq.s32.totalorder %s67, 0
    %p564 = por %p562, %p563
    %p565 = scmp.ne.s32.totalorder %s557, %s559
    %p566 = scmp.eq.s32.totalorder %s72, 1
    %p567 = por %p565, %p566
    %p568 = scmp.ne.s32.totalorder %s559, %s560
    %p569 = scmp.eq.s32.totalorder %s72, 0
    %p570 = por %p568, %p569
    %p571 = scmp.ne.s32.totalorder %s559, %s560
    %p572 = scmp.eq.s32.totalorder %s73, 1
    %p573 = por %p571, %p572
    %p575 = scmp.ne.s32.totalorder %s560, %s574
    %p576 = scmp.eq.s32.totalorder %s73, 0
    %p577 = por %p575, %p576
    %s579 = sadd.s32 %s578, 1
    %p582 = scmp.eq.s32.totalorder %s67, 1
    %p583 = scmp.ne.s32.totalorder %s578, %s580
    %p584 = scmp.eq.s32.totalorder %s67, 0
    %p585 = por %p583, %p584
    %p586 = scmp.ne.s32.totalorder %s578, %s580
    %p587 = scmp.eq.s32.totalorder %s72, 1
    %p588 = por %p586, %p587
    %p589 = scmp.ne.s32.totalorder %s580, %s581
    %p590 = scmp.eq.s32.totalorder %s72, 0
    %p591 = por %p589, %p590
    %p592 = scmp.ne.s32.totalorder %s580, %s581
    %p593 = scmp.eq.s32.totalorder %s73, 1
    %p594 = por %p592, %p593
    %p596 = scmp.ne.s32.totalorder %s581, %s595
    %p597 = scmp.eq.s32.totalorder %s73, 0
    %p598 = por %p596, %p597
    %s600 = sadd.s32 %s599, 1
    %p603 = scmp.eq.s32.totalorder %s67, 1
    %p604 = scmp.ne.s32.totalorder %s599, %s601
    %p605 = scmp.eq.s32.totalorder %s67, 0
    %p606 = por %p604, %p605
    %p607 = scmp.ne.s32.totalorder %s599, %s601
    %p608 = scmp.eq.s32.totalorder %s72, 1
    %p609 = por %p607, %p608
    %p610 = scmp.ne.s32.totalorder %s601, %s602
    %p611 = scmp.eq.s32.totalorder %s72, 0
    %p612 = por %p610, %p611
    %p613 = scmp.ne.s32.totalorder %s601, %s602
    %p614 = scmp.eq.s32.totalorder %s73, 1
    %p615 = por %p613, %p614
    %p617 = scmp.ne.s32.totalorder %s602, %s616
    %p618 = scmp.eq.s32.totalorder %s73, 0
    %p619 = por %p617, %p618
    %s621 = sadd.s32 %s620, 1
    %p624 = scmp.eq.s32.totalorder %s67, 1
    %p625 = scmp.ne.s32.totalorder %s620, %s622
    %p626 = scmp.eq.s32.totalorder %s67, 0
    %p627 = por %p625, %p626
    %p628 = scmp.ne.s32.totalorder %s620, %s622
    %p629 = scmp.eq.s32.totalorder %s72, 1
    %p630 = por %p628, %p629
    %p631 = scmp.ne.s32.totalorder %s622, %s623
    %p632 = scmp.eq.s32.totalorder %s72, 0
    %p633 = por %p631, %p632
    %p634 = scmp.ne.s32.totalorder %s622, %s623
    %p635 = scmp.eq.s32.totalorder %s73, 1
    %p636 = por %p634, %p635
    %p638 = scmp.ne.s32.totalorder %s623, %s637
    %p639 = scmp.eq.s32.totalorder %s73, 0
    %p640 = por %p638, %p639
    %s642 = sadd.s32 %s641, 1
    %p645 = scmp.eq.s32.totalorder %s67, 1
    %p646 = scmp.ne.s32.totalorder %s641, %s643
    %p647 = scmp.eq.s32.totalorder %s67, 0
    %p648 = por %p646, %p647
    %p649 = scmp.ne.s32.totalorder %s641, %s643
    %p650 = scmp.eq.s32.totalorder %s72, 1
    %p651 = por %p649, %p650
    %p652 = scmp.ne.s32.totalorder %s643, %s644
    %p653 = scmp.eq.s32.totalorder %s72, 0
    %p654 = por %p652, %p653
    %p655 = scmp.ne.s32.totalorder %s643, %s644
    %p656 = scmp.eq.s32.totalorder %s73, 1
    %p657 = por %p655, %p656
    %p659 = scmp.ne.s32.totalorder %s644, %s658
    %p660 = scmp.eq.s32.totalorder %s73, 0
    %p661 = por %p659, %p660
    %s663 = sadd.s32 %s662, 1
    %p666 = scmp.eq.s32.totalorder %s67, 1
    %p667 = scmp.ne.s32.totalorder %s662, %s664
    %p668 = scmp.eq.s32.totalorder %s67, 0
    %p669 = por %p667, %p668
    %p670 = scmp.ne.s32.totalorder %s662, %s664
    %p671 = scmp.eq.s32.totalorder %s72, 1
    %p672 = por %p670, %p671
    %p673 = scmp.ne.s32.totalorder %s664, %s665
    %p674 = scmp.eq.s32.totalorder %s72, 0
    %p675 = por %p673, %p674
    %p676 = scmp.ne.s32.totalorder %s664, %s665
    %p677 = scmp.eq.s32.totalorder %s73, 1
    %p678 = por %p676, %p677
    %p680 = scmp.ne.s32.totalorder %s665, %s679
    %p681 = scmp.eq.s32.totalorder %s73, 0
    %p682 = por %p680, %p681
    %s684 = sadd.s32 %s683, 1
    %p687 = scmp.eq.s32.totalorder %s67, 1
    %p688 = scmp.ne.s32.totalorder %s683, %s685
    %p689 = scmp.eq.s32.totalorder %s67, 0
    %p690 = por %p688, %p689
    %p691 = scmp.ne.s32.totalorder %s683, %s685
    %p692 = scmp.eq.s32.totalorder %s72, 1
    %p693 = por %p691, %p692
    %p694 = scmp.ne.s32.totalorder %s685, %s686
    %p695 = scmp.eq.s32.totalorder %s72, 0
    %p696 = por %p694, %p695
    %p697 = scmp.ne.s32.totalorder %s685, %s686
    %p698 = scmp.eq.s32.totalorder %s73, 1
    %p699 = por %p697, %p698
    %p701 = scmp.ne.s32.totalorder %s686, %s700
    %p702 = scmp.eq.s32.totalorder %s73, 0
    %p703 = por %p701, %p702
    %s705 = sadd.s32 %s704, 1
    %p708 = scmp.eq.s32.totalorder %s67, 1
    %p709 = scmp.ne.s32.totalorder %s704, %s706
    %p710 = scmp.eq.s32.totalorder %s67, 0
    %p711 = por %p709, %p710
    %p712 = scmp.ne.s32.totalorder %s704, %s706
    %p713 = scmp.eq.s32.totalorder %s72, 1
    %p714 = por %p712, %p713
    %p715 = scmp.ne.s32.totalorder %s706, %s707
    %p716 = scmp.eq.s32.totalorder %s72, 0
    %p717 = por %p715, %p716
    %p718 = scmp.ne.s32.totalorder %s706, %s707
    %p719 = scmp.eq.s32.totalorder %s73, 1
    %p720 = por %p718, %p719
    %p722 = scmp.ne.s32.totalorder %s707, %s721
    %p723 = scmp.eq.s32.totalorder %s73, 0
    %p724 = por %p722, %p723
    %s725 = ssub.s32 %s67, %s74
    %p726 = scmp.eq.s32.totalorder %s725, 0
    %s728 = sadd.s32 %s727, 1
    %s729 = scalar_select %p726, %s727, %s728
    %p732 = pneg %p726
    %p733 = scmp.eq.s32.totalorder %s67, 1
    %p734 = por %p732, %p733
    %p735 = scmp.ne.s32.totalorder %s727, %s730
    %p736 = scmp.eq.s32.totalorder %s67, 0
    %p737 = por %p735, %p736
    %p738 = scmp.ne.s32.totalorder %s727, %s730
    %p739 = scmp.eq.s32.totalorder %s72, 1
    %p740 = por %p738, %p739
    %p741 = scmp.ne.s32.totalorder %s730, %s731
    %p742 = scmp.eq.s32.totalorder %s72, 0
    %p743 = por %p741, %p742
    %p744 = scmp.ne.s32.totalorder %s730, %s731
    %p745 = scmp.eq.s32.totalorder %s73, 1
    %p746 = por %p744, %p745
    %p748 = scmp.ne.s32.totalorder %s731, %s747
    %p749 = scmp.eq.s32.totalorder %s73, 0
    %p750 = por %p748, %p749
    %p751 = scmp.le.s32.totalorder 1, %s67
    %p752 = scmp.lt.s32.totalorder %s67, 3
    %p753 = pnand %p751, %p752
    %p754 = pneg %p753
    // Predicated region
    $region9: #{tpu_custom_call.1} parent=5 // pred_check
      _
    $region10: #{tpu_custom_call.1} parent=5 // pred_check_branch
      %756 = sbr.rel (%p753) target = $region12
    $region11: #{tpu_custom_call.1} parent=5 // pred_region
      %s757 = ssub.s32 %s67, 1
      // Predicated region
      $region13: #{tpu_custom_call.1} parent=11 // pred_check
        %p758 = pneg %p192
      $region14: #{tpu_custom_call.1} parent=11 // pred_check_branch
        %760 = sbr.rel (%p758) target = $region16
      $region15: #{tpu_custom_call.1} parent=11 // pred_region
        _
      $region16: #{tpu_custom_call.1} parent=11 // pred_fallthru
        _
      // Predicated region
      $region17: #{tpu_custom_call.1} parent=11 // pred_check
        %p761 = pneg %p213
      $region18: #{tpu_custom_call.1} parent=11 // pred_check_branch
        %763 = sbr.rel (%p761) target = $region20
      $region19: #{tpu_custom_call.1} parent=11 // pred_region
        _
      $region20: #{tpu_custom_call.1} parent=11 // pred_fallthru
        _
      // Predicated region
      $region21: #{tpu_custom_call.1} parent=11 // pred_check
        %p764 = pneg %p234
      $region22: #{tpu_custom_call.1} parent=11 // pred_check_branch
        %766 = sbr.rel (%p764) target = $region24
      $region23: #{tpu_custom_call.1} parent=11 // pred_region
        _
      $region24: #{tpu_custom_call.1} parent=11 // pred_fallthru
        _
      // Predicated region
      $region25: #{tpu_custom_call.1} parent=11 // pred_check
        %p767 = pneg %p255
      $region26: #{tpu_custom_call.1} parent=11 // pred_check_branch
        %769 = sbr.rel (%p767) target = $region28
      $region27: #{tpu_custom_call.1} parent=11 // pred_region
        _
      $region28: #{tpu_custom_call.1} parent=11 // pred_fallthru
        _
      // Predicated region
      $region29: #{tpu_custom_call.1} parent=11 // pred_check
        %p770 = pneg %p276
      $region30: #{tpu_custom_call.1} parent=11 // pred_check_branch
        %772 = sbr.rel (%p770) target = $region32
      $region31: #{tpu_custom_call.1} parent=11 // pred_region
        _
      $region32: #{tpu_custom_call.1} parent=11 // pred_fallthru
        _
      // Predicated region
      $region33: #{tpu_custom_call.1} parent=11 // pred_check
        %p773 = pneg %p297
      $region34: #{tpu_custom_call.1} parent=11 // pred_check_branch
        %775 = sbr.rel (%p773) target = $region36
      $region35: #{tpu_custom_call.1} parent=11 // pred_region
        _
      $region36: #{tpu_custom_call.1} parent=11 // pred_fallthru
        _
      // Predicated region
      $region37: #{tpu_custom_call.1} parent=11 // pred_check
        %p776 = pneg %p318
      $region38: #{tpu_custom_call.1} parent=11 // pred_check_branch
        %778 = sbr.rel (%p776) target = $region40
      $region39: #{tpu_custom_call.1} parent=11 // pred_region
        _
      $region40: #{tpu_custom_call.1} parent=11 // pred_fallthru
        _
      // Predicated region
      $region41: #{tpu_custom_call.1} parent=11 // pred_check
        %p779 = pneg %p339
      $region42: #{tpu_custom_call.1} parent=11 // pred_check_branch
        %781 = sbr.rel (%p779) target = $region44
      $region43: #{tpu_custom_call.1} parent=11 // pred_region
        _
      $region44: #{tpu_custom_call.1} parent=11 // pred_fallthru
        _
      // Predicated region
      $region45: #{tpu_custom_call.1} parent=11 // pred_check
        %p782 = pneg %p360
      $region46: #{tpu_custom_call.1} parent=11 // pred_check_branch
        %784 = sbr.rel (%p782) target = $region48
      $region47: #{tpu_custom_call.1} parent=11 // pred_region
        _
      $region48: #{tpu_custom_call.1} parent=11 // pred_fallthru
        _
      // Predicated region
      $region49: #{tpu_custom_call.1} parent=11 // pred_check
        %p785 = pneg %p381
      $region50: #{tpu_custom_call.1} parent=11 // pred_check_branch
        %787 = sbr.rel (%p785) target = $region52
      $region51: #{tpu_custom_call.1} parent=11 // pred_region
        _
      $region52: #{tpu_custom_call.1} parent=11 // pred_fallthru
        _
      // Predicated region
      $region53: #{tpu_custom_call.1} parent=11 // pred_check
        %p788 = pneg %p402
      $region54: #{tpu_custom_call.1} parent=11 // pred_check_branch
        %790 = sbr.rel (%p788) target = $region56
      $region55: #{tpu_custom_call.1} parent=11 // pred_region
        _
      $region56: #{tpu_custom_call.1} parent=11 // pred_fallthru
        _
      // Predicated region
      $region57: #{tpu_custom_call.1} parent=11 // pred_check
        %p791 = pneg %p423
      $region58: #{tpu_custom_call.1} parent=11 // pred_check_branch
        %793 = sbr.rel (%p791) target = $region60
      $region59: #{tpu_custom_call.1} parent=11 // pred_region
        _
      $region60: #{tpu_custom_call.1} parent=11 // pred_fallthru
        _
      // Predicated region
      $region61: #{tpu_custom_call.1} parent=11 // pred_check
        %p794 = pneg %p444
      $region62: #{tpu_custom_call.1} parent=11 // pred_check_branch
        %796 = sbr.rel (%p794) target = $region64
      $region63: #{tpu_custom_call.1} parent=11 // pred_region
        _
      $region64: #{tpu_custom_call.1} parent=11 // pred_fallthru
        _
      // Predicated region
      $region65: #{tpu_custom_call.1} parent=11 // pred_check
        %p797 = pneg %p465
      $region66: #{tpu_custom_call.1} parent=11 // pred_check_branch
        %799 = sbr.rel (%p797) target = $region68
      $region67: #{tpu_custom_call.1} parent=11 // pred_region
        _
      $region68: #{tpu_custom_call.1} parent=11 // pred_fallthru
        _
      // Predicated region
      $region69: #{tpu_custom_call.1} parent=11 // pred_check
        %p800 = pneg %p486
      $region70: #{tpu_custom_call.1} parent=11 // pred_check_branch
        %802 = sbr.rel (%p800) target = $region72
      $region71: #{tpu_custom_call.1} parent=11 // pred_region
        _
      $region72: #{tpu_custom_call.1} parent=11 // pred_fallthru
        _
      // Predicated region
      $region73: #{tpu_custom_call.1} parent=11 // pred_check
        %p803 = pneg %p507
      $region74: #{tpu_custom_call.1} parent=11 // pred_check_branch
        %805 = sbr.rel (%p803) target = $region76
      $region75: #{tpu_custom_call.1} parent=11 // pred_region
        _
      $region76: #{tpu_custom_call.1} parent=11 // pred_fallthru
        _
      // Predicated region
      $region77: #{tpu_custom_call.1} parent=11 // pred_check
        %p806 = pneg %p528
      $region78: #{tpu_custom_call.1} parent=11 // pred_check_branch
        %808 = sbr.rel (%p806) target = $region80
      $region79: #{tpu_custom_call.1} parent=11 // pred_region
        _
      $region80: #{tpu_custom_call.1} parent=11 // pred_fallthru
        _
      // Predicated region
      $region81: #{tpu_custom_call.1} parent=11 // pred_check
        %p809 = pneg %p549
      $region82: #{tpu_custom_call.1} parent=11 // pred_check_branch
        %811 = sbr.rel (%p809) target = $region84
      $region83: #{tpu_custom_call.1} parent=11 // pred_region
        _
      $region84: #{tpu_custom_call.1} parent=11 // pred_fallthru
        _
      // Predicated region
      $region85: #{tpu_custom_call.1} parent=11 // pred_check
        %p812 = pneg %p570
      $region86: #{tpu_custom_call.1} parent=11 // pred_check_branch
        %814 = sbr.rel (%p812) target = $region88
      $region87: #{tpu_custom_call.1} parent=11 // pred_region
        _
      $region88: #{tpu_custom_call.1} parent=11 // pred_fallthru
        _
      // Predicated region
      $region89: #{tpu_custom_call.1} parent=11 // pred_check
        %p815 = pneg %p591
      $region90: #{tpu_custom_call.1} parent=11 // pred_check_branch
        %817 = sbr.rel (%p815) target = $region92
      $region91: #{tpu_custom_call.1} parent=11 // pred_region
        _
      $region92: #{tpu_custom_call.1} parent=11 // pred_fallthru
        _
      // Predicated region
      $region93: #{tpu_custom_call.1} parent=11 // pred_check
        %p818 = pneg %p612
      $region94: #{tpu_custom_call.1} parent=11 // pred_check_branch
        %820 = sbr.rel (%p818) target = $region96
      $region95: #{tpu_custom_call.1} parent=11 // pred_region
        _
      $region96: #{tpu_custom_call.1} parent=11 // pred_fallthru
        _
      // Predicated region
      $region97: #{tpu_custom_call.1} parent=11 // pred_check
        %p821 = pneg %p633
      $region98: #{tpu_custom_call.1} parent=11 // pred_check_branch
        %823 = sbr.rel (%p821) target = $region100
      $region99: #{tpu_custom_call.1} parent=11 // pred_region
        _
      $region100: #{tpu_custom_call.1} parent=11 // pred_fallthru
        _
      // Predicated region
      $region101: #{tpu_custom_call.1} parent=11 // pred_check
        %p824 = pneg %p654
      $region102: #{tpu_custom_call.1} parent=11 // pred_check_branch
        %826 = sbr.rel (%p824) target = $region104
      $region103: #{tpu_custom_call.1} parent=11 // pred_region
        _
      $region104: #{tpu_custom_call.1} parent=11 // pred_fallthru
        _
      // Predicated region
      $region105: #{tpu_custom_call.1} parent=11 // pred_check
        %p827 = pneg %p675
      $region106: #{tpu_custom_call.1} parent=11 // pred_check_branch
        %829 = sbr.rel (%p827) target = $region108
      $region107: #{tpu_custom_call.1} parent=11 // pred_region
        _
      $region108: #{tpu_custom_call.1} parent=11 // pred_fallthru
        _
      // Predicated region
      $region109: #{tpu_custom_call.1} parent=11 // pred_check
        %p830 = pneg %p696
      $region110: #{tpu_custom_call.1} parent=11 // pred_check_branch
        %832 = sbr.rel (%p830) target = $region112
      $region111: #{tpu_custom_call.1} parent=11 // pred_region
        _
      $region112: #{tpu_custom_call.1} parent=11 // pred_fallthru
        _
      // Predicated region
      $region113: #{tpu_custom_call.1} parent=11 // pred_check
        %p833 = pneg %p717
      $region114: #{tpu_custom_call.1} parent=11 // pred_check_branch
        %835 = sbr.rel (%p833) target = $region116
      $region115: #{tpu_custom_call.1} parent=11 // pred_region
        _
      $region116: #{tpu_custom_call.1} parent=11 // pred_fallthru
        _
    $region12: #{tpu_custom_call.1} parent=5 // pred_fallthru
      _
    %p836 = scmp.lt.s32.totalorder %s67, 2
    // Predicated region
    $region117: #{tpu_custom_call.1} parent=5 // pred_check
      %p837 = pneg %p836
    $region118: #{tpu_custom_call.1} parent=5 // pred_check_branch
      %839 = sbr.rel (%p837) target = $region120
    $region119: #{tpu_custom_call.1} parent=5 // pred_region
      // Predicated region
      $region121: #{tpu_custom_call.1} parent=119 // pred_check
        %p840 = pneg %p87
      $region122: #{tpu_custom_call.1} parent=119 // pred_check_branch
        %842 = sbr.rel (%p840) target = $region124
      $region123: #{tpu_custom_call.1} parent=119 // pred_region
        %p843 = scmp.lt.s32.totalorder %s67, 1
        %s844 = scalar_select %p843, %s67, 1
        %s845 = smul.addr %s844, 4
        %s846 = smul.addr %s845, 8
        %s847 = scalar_lea.vmem %s1, %s846
      $region124: #{tpu_custom_call.1} parent=119 // pred_fallthru
        _
      // Predicated region
      $region125: #{tpu_custom_call.1} parent=119 // pred_check
        %p848 = pneg %p113
      $region126: #{tpu_custom_call.1} parent=119 // pred_check_branch
        %850 = sbr.rel (%p848) target = $region128
      $region127: #{tpu_custom_call.1} parent=119 // pred_region
        %p851 = scmp.lt.s32.totalorder %s67, 1
        %s852 = scalar_select %p851, %s67, 1
        %s853 = smul.addr %s852, 2
        %s854 = smul.addr %s853, 8
        %s855 = scalar_lea.vmem %s3, %s854
      $region128: #{tpu_custom_call.1} parent=119 // pred_fallthru
        _
      // Predicated region
      $region129: #{tpu_custom_call.1} parent=119 // pred_check
        %p856 = pneg %p139
      $region130: #{tpu_custom_call.1} parent=119 // pred_check_branch
        %858 = sbr.rel (%p856) target = $region132
      $region131: #{tpu_custom_call.1} parent=119 // pred_region
        %p859 = scmp.lt.s32.totalorder %s67, 1
        %s860 = scalar_select %p859, %s67, 1
        %s861 = smul.addr %s860, 8
        %s862 = scalar_lea.vmem %s5, %s861
      $region132: #{tpu_custom_call.1} parent=119 // pred_fallthru
        _
      // Predicated region
      $region133: #{tpu_custom_call.1} parent=119 // pred_check
        %p863 = pneg %p165
      $region134: #{tpu_custom_call.1} parent=119 // pred_check_branch
        %865 = sbr.rel (%p863) target = $region136
      $region135: #{tpu_custom_call.1} parent=119 // pred_region
        %p866 = scmp.lt.s32.totalorder %s67, 1
        %s867 = scalar_select %p866, %s67, 1
        %s868 = smul.addr %s867, 4
        %s869 = scalar_lea.vmem %s7, %s868
      $region136: #{tpu_custom_call.1} parent=119 // pred_fallthru
        _
    $region120: #{tpu_custom_call.1} parent=5 // pred_fallthru
      _
    %p870 = scmp.le.s32.totalorder 1, %s67
    %p871 = scmp.lt.s32.totalorder %s67, 3
    %p872 = pnand %p870, %p871
    %p873 = pneg %p872
    // Predicated region
    $region137: #{tpu_custom_call.1} parent=5 // pred_check
      _
    $region138: #{tpu_custom_call.1} parent=5 // pred_check_branch
      %875 = sbr.rel (%p872) target = $region140
    $region139: #{tpu_custom_call.1} parent=5 // pred_region
      %s876 = ssub.s32 %s67, 1
      %p877 = scmp.lt.s32.totalorder %s72, 1
      %s878 = scalar_select %p877, %s72, 1
      %s879 = smul.addr %s878, 4
      %s880 = smul.addr %s879, 8
      %s881 = scalar_lea.vmem %s1, %s880
      %p882 = pneg %p93
      %p883 = pneg %p90
      %p884 = scmp.lt.s32.totalorder %s72, 1
      %s885 = scalar_select %p884, %s72, 1
      %s886 = smul.addr %s885, 2
      %s887 = smul.addr %s886, 8
      %s888 = scalar_lea.vmem %s3, %s887
      %p889 = pneg %p119
      %p890 = pneg %p116
      %p891 = scmp.lt.s32.totalorder %s72, 1
      %s892 = scalar_select %p891, %s72, 1
      %s893 = smul.addr %s892, 8
      %s894 = scalar_lea.vmem %s5, %s893
      %p895 = pneg %p145
      %p896 = pneg %p142
      %p897 = scmp.lt.s32.totalorder %s72, 1
      %s898 = scalar_select %p897, %s72, 1
      %s899 = smul.addr %s898, 4
      %s900 = scalar_lea.vmem %s7, %s899
      %p901 = pneg %p171
      %p902 = pneg %p168
      %p903 = pneg %p192
      %p904 = pneg %p189
      %p905 = pneg %p213
      %p906 = pneg %p210
      %p907 = pneg %p234
      %p908 = pneg %p231
      %p909 = pneg %p255
      %p910 = pneg %p252
      %p911 = pneg %p276
      %p912 = pneg %p273
      %p913 = pneg %p297
      %p914 = pneg %p294
      %p915 = pneg %p318
      %p916 = pneg %p315
      %p917 = pneg %p339
      %p918 = pneg %p336
      %p919 = pneg %p360
      %p920 = pneg %p357
      %p921 = pneg %p381
      %p922 = pneg %p378
      %p923 = pneg %p402
      %p924 = pneg %p399
      %p925 = pneg %p423
      %p926 = pneg %p420
      %p927 = pneg %p444
      %p928 = pneg %p441
      %p929 = pneg %p465
      %p930 = pneg %p462
      %p931 = pneg %p486
      %p932 = pneg %p483
      %p933 = pneg %p507
      %p934 = pneg %p504
      %p935 = pneg %p528
      %p936 = pneg %p525
      %p937 = pneg %p549
      %p938 = pneg %p546
      %p939 = pneg %p570
      %p940 = pneg %p567
      %p941 = pneg %p591
      %p942 = pneg %p588
      %p943 = pneg %p612
      %p944 = pneg %p609
      %p945 = pneg %p633
      %p946 = pneg %p630
      %p947 = pneg %p654
      %p948 = pneg %p651
      %p949 = pneg %p675
      %p950 = pneg %p672
      %p951 = pneg %p696
      %p952 = pneg %p693
      %p953 = pneg %p717
      %p954 = pneg %p714
      %p955 = pneg %p743
      %p956 = pneg %p740
      %p957 = scmp.lt.s32.totalorder %s72, 1
      %s958 = scalar_select %p957, %s72, 1
      %s959 = smul.addr %s958, 2
      %s960 = smul.addr %s959, 8
      %s961 = scalar_lea.vmem %s61, %s960
      %p962 = scmp.lt.s32.totalorder %s72, 1
      %s963 = scalar_select %p962, %s72, 1
      %s964 = smul.addr %s963, 4
      %s965 = smul.addr %s964, 8
      %s966 = scalar_lea.vmem %s1, %s965
      %p967 = scmp.lt.s32.totalorder %s72, 1
      %s968 = scalar_select %p967, %s72, 1
      %s969 = smul.addr %s968, 2
      %s970 = smul.addr %s969, 8
      %s971 = scalar_lea.vmem %s3, %s970
      %p972 = scmp.lt.s32.totalorder %s72, 1
      %s973 = scalar_select %p972, %s72, 1
      %s974 = smul.addr %s973, 8
      %s975 = scalar_lea.vmem %s5, %s974
      %p976 = scmp.lt.s32.totalorder %s72, 1
      %s977 = scalar_select %p976, %s72, 1
      %s978 = smul.addr %s977, 4
      %s979 = scalar_lea.vmem %s7, %s978
      %p980 = scmp.lt.s32.totalorder %s72, 1
      %s981 = scalar_select %p980, %s72, 1
      %s982 = smul.addr %s981, 2
      %s983 = smul.addr %s982, 8
      %s984 = scalar_lea.vmem %s61, %s983
      %v986 = vld [vmem:[%s966] sm:$0xff]
      %v987 = vld [vmem:[%s966 + $0x8] sm:$0xff]
      %v988 = vld [vmem:[%s966 + $0x10] sm:$0xff]
      %v989 = vld [vmem:[%s966 + $0x18] sm:$0xff]
      %v990 = vpack.c.bf16 %v987, %v986
      %v991 = vpack.c.bf16 %v989, %v988
      %v992 = vld [vmem:[%s9] sm:$0x3]
      %vm993 = vcmask 31744
      %v995 = vsel %vm993, %v990, 0
      %v998 = vsel %vm993, %v991, 0
      %vm1000 = vcmask 1041408
      %v1002 = vsel %vm1000, %v992, 0
      %1004 = vmatprep.subr.bf16.mxu0 0
      %1005 = vmatpush1.bf16.msra.mxu0 %v1002
      %1006 = vmatprep.subr.bf16.mxu0 0
      %1007 = vmatpush1.bf16.msra.mxu0 0
      %1008 = vmatprep.subr.bf16.mxu0 0
      %1009 = vmatpush1.bf16.msra.mxu0 0
      %1010 = vmatprep.subr.bf16.mxu0 0
      %1011 = vmatpush1.bf16.msra.mxu0 0
      %1012 = vmatprep.subr.bf16.mxu0 0
      %1013 = vmatpush1.bf16.msra.mxu0 0
      %1014 = vmatprep.subr.bf16.mxu0 0
      %1015 = vmatpush1.bf16.msra.mxu0 0
      %1016 = vmatprep.subr.bf16.mxu0 0
      %1017 = vmatpush1.bf16.msra.mxu0 0
      %1018 = vmatprep.subr.bf16.mxu0 0
      %1019 = vmatpush1.bf16.msra.mxu0 0
      %1020 = vmatprep.subr.bf16.mxu0 0
      %1021 = vmatpush1.bf16.msra.mxu0 0
      %1022 = vmatprep.subr.bf16.mxu0 0
      %1023 = vmatpush1.bf16.msra.mxu0 0
      %1024 = vmatprep.subr.bf16.mxu0 0
      %1025 = vmatpush1.bf16.msra.mxu0 0
      %1026 = vmatprep.subr.bf16.mxu0 0
      %1027 = vmatpush1.bf16.msra.mxu0 0
      %1028 = vmatprep.subr.bf16.mxu0 0
      %1029 = vmatpush1.bf16.msra.mxu0 0
      %1030 = vmatprep.subr.bf16.mxu0 0
      %1031 = vmatpush1.bf16.msra.mxu0 0
      %1032 = vmatprep.subr.bf16.mxu0 0
      %1033 = vmatpush1.bf16.msra.mxu0 0
      %1034 = vmatprep.subr.bf16.mxu0 0
      %1035 = vmatpush1.bf16.msra.mxu0 0
      %1036 = vmatprep.mubr.bf16.mxu0 0
      %1037 = vmatmul.mubr.bf16.gmra.mrb[0].mxu0 %v995
      %v1038 = vpop.f32.mrb[0].mxu0
      %v1039 = vadd.f32 0.0, %v1038
      %v1040 = vpop.f32.mrb[0].mxu0
      %v1041 = vpop.f32.mrb[0].mxu0
      %v1042 = vadd.f32 0.0, %v1041
      %v1043 = vpop.f32.mrb[0].mxu0
      %1044 = vmatprep.mubr.bf16.mxu0 0
      %1045 = vmatmul.mubr.bf16.gmra.mrb[0].mxu0 %v998
      %v1046 = vpop.f32.mrb[0].mxu0
      %v1047 = vadd.f32 0.0, %v1046
      %v1048 = vpop.f32.mrb[0].mxu0
      %v1049 = vpop.f32.mrb[0].mxu0
      %v1050 = vadd.f32 0.0, %v1049
      %v1051 = vpop.f32.mrb[0].mxu0
      %1052 = vdwg.mxu0
      %v1053 = vld [vmem:[%s971] sm:$0xff]
      %v1054 = vld [vmem:[%s971 + $0x8] sm:$0xff]
      %1059 = vrot.lane.b32.xlu0 %v1039, 1
      %v1060 = vpop.permute.xlu0 %1059
      %1061 = vrot.lane.b32.xlu0 %v1042, 1
      %v1062 = vpop.permute.xlu0 %1061
      %1063 = vrot.lane.b32.xlu0 %v1047, 1
      %v1064 = vpop.permute.xlu0 %1063
      %1065 = vrot.lane.b32.xlu0 %v1050, 1
      %v1066 = vpop.permute.xlu0 %1065
      %vm1071 = vcmask 7168
      %v1072 = vsel %vm1071, 0.0, %v1060
      %v1073 = vsel %vm1071, 0.0, %v1062
      %v1074 = vsel %vm1071, 0.0, %v1064
      %v1075 = vsel %vm1071, 0.0, %v1066
      %1076 = vrot.lane.b32.xlu0 %v1039, 127
      %v1077 = vpop.permute.xlu0 %1076
      %1078 = vrot.lane.b32.xlu0 %v1042, 127
      %v1079 = vpop.permute.xlu0 %1078
      %1080 = vrot.lane.b32.xlu0 %v1047, 127
      %v1081 = vpop.permute.xlu0 %1080
      %1082 = vrot.lane.b32.xlu0 %v1050, 127
      %v1083 = vpop.permute.xlu0 %1082
      %vm1088 = vcmask 56320
      %v1089 = vsel %vm1088, %v1077, 0.0
      %v1090 = vsel %vm1088, %v1079, 0.0
      %v1091 = vsel %vm1088, %v1081, 0.0
      %v1092 = vsel %vm1088, %v1083, 0.0
      %v1093 = vld [vmem:[%s15] sm:$0xf]
      %v1094 = vld [vmem:[%s15 + $0x4] sm:$0xf]
      %v1095 = vpack.c.bf16 %v1073, %v1072
      %v1096 = vpack.c.bf16 %v1075, %v1074
      %s1097 = scalar_lea.vmem %s15, 8
      %v1098 = vld [vmem:[%s1097] sm:$0xf]
      %v1099 = vld [vmem:[%s1097 + $0x4] sm:$0xf]
      %v1100 = vpack.c.bf16 %v1042, %v1039
      %v1101 = vpack.c.bf16 %v1050, %v1047
      %v1104 = vunpack.c.l.b16 %v1098
      %v1105 = vunpack.c.l.b16 %v1099
      %v1106 = vpack.c.b16 %v1105, %v1104
      %vm1107 = vcmask 261120
      %v1109 = vsel %vm1107, %v1106, 0
      %1111 = vmatprep.subr.bf16.mxu0 0
      %1112 = vmatpush1.bf16.msra.mxu0 %v1100
      %1113 = vmatprep.subr.bf16.mxu0 0
      %1114 = vmatpush1.bf16.msra.mxu0 %v1101
      %1115 = vmatprep.subr.bf16.mxu0 0
      %1116 = vmatpush1.bf16.msra.mxu0 0
      %1117 = vmatprep.subr.bf16.mxu0 0
      %1118 = vmatpush1.bf16.msra.mxu0 0
      %1119 = vmatprep.subr.bf16.mxu0 0
      %1120 = vmatpush1.bf16.msra.mxu0 0
      %1121 = vmatprep.subr.bf16.mxu0 0
      %1122 = vmatpush1.bf16.msra.mxu0 0
      %1123 = vmatprep.subr.bf16.mxu0 0
      %1124 = vmatpush1.bf16.msra.mxu0 0
      %1125 = vmatprep.subr.bf16.mxu0 0
      %1126 = vmatpush1.bf16.msra.mxu0 0
      %1127 = vmatprep.subr.bf16.mxu0 0
      %1128 = vmatpush1.bf16.msra.mxu0 0
      %1129 = vmatprep.subr.bf16.mxu0 0
      %1130 = vmatpush1.bf16.msra.mxu0 0
      %1131 = vmatprep.subr.bf16.mxu0 0
      %1132 = vmatpush1.bf16.msra.mxu0 0
      %1133 = vmatprep.subr.bf16.mxu0 0
      %1134 = vmatpush1.bf16.msra.mxu0 0
      %1135 = vmatprep.subr.bf16.mxu0 0
      %1136 = vmatpush1.bf16.msra.mxu0 0
      %1137 = vmatprep.subr.bf16.mxu0 0
      %1138 = vmatpush1.bf16.msra.mxu0 0
      %1139 = vmatprep.subr.bf16.mxu0 0
      %1140 = vmatpush1.bf16.msra.mxu0 0
      %1141 = vmatprep.subr.bf16.mxu0 0
      %1142 = vmatpush1.bf16.msra.mxu0 0
      %1143 = vmatprep.mubr.bf16.mxu0 0
      %1144 = vmatmul.mubr.bf16.gmra.mrb[0].mxu0 %v1109
      %v1145 = vpop.f32.mrb[0].mxu0
      %v1146 = vadd.f32 0.0, %v1145
      %v1147 = vpop.f32.mrb[0].mxu0
      %v1148 = vpop.f32.mrb[0].mxu0
      %v1149 = vadd.f32 0.0, %v1148
      %v1150 = vpop.f32.mrb[0].mxu0
      %1151 = vdwg.mxu0
      %v1154 = vunpack.c.l.b16 %v1093
      %v1155 = vunpack.c.l.b16 %v1094
      %v1156 = vpack.c.b16 %v1155, %v1154
      %v1158 = vsel %vm1107, %v1156, 0
      %1160 = vmatprep.subr.bf16.mxu0 0
      %1161 = vmatpush1.bf16.msra.mxu0 %v1095
      %1162 = vmatprep.subr.bf16.mxu0 0
      %1163 = vmatpush1.bf16.msra.mxu0 %v1096
      %1164 = vmatprep.subr.bf16.mxu0 0
      %1165 = vmatpush1.bf16.msra.mxu0 0
      %1166 = vmatprep.subr.bf16.mxu0 0
      %1167 = vmatpush1.bf16.msra.mxu0 0
      %1168 = vmatprep.subr.bf16.mxu0 0
      %1169 = vmatpush1.bf16.msra.mxu0 0
      %1170 = vmatprep.subr.bf16.mxu0 0
      %1171 = vmatpush1.bf16.msra.mxu0 0
      %1172 = vmatprep.subr.bf16.mxu0 0
      %1173 = vmatpush1.bf16.msra.mxu0 0
      %1174 = vmatprep.subr.bf16.mxu0 0
      %1175 = vmatpush1.bf16.msra.mxu0 0
      %1176 = vmatprep.subr.bf16.mxu0 0
      %1177 = vmatpush1.bf16.msra.mxu0 0
      %1178 = vmatprep.subr.bf16.mxu0 0
      %1179 = vmatpush1.bf16.msra.mxu0 0
      %1180 = vmatprep.subr.bf16.mxu0 0
      %1181 = vmatpush1.bf16.msra.mxu0 0
      %1182 = vmatprep.subr.bf16.mxu0 0
      %1183 = vmatpush1.bf16.msra.mxu0 0
      %1184 = vmatprep.subr.bf16.mxu0 0
      %1185 = vmatpush1.bf16.msra.mxu0 0
      %1186 = vmatprep.subr.bf16.mxu0 0
      %1187 = vmatpush1.bf16.msra.mxu0 0
      %1188 = vmatprep.subr.bf16.mxu0 0
      %1189 = vmatpush1.bf16.msra.mxu0 0
      %1190 = vmatprep.subr.bf16.mxu0 0
      %1191 = vmatpush1.bf16.msra.mxu0 0
      %1192 = vmatprep.mubr.bf16.mxu0 0
      %1193 = vmatmul.mubr.bf16.gmra.mrb[0].mxu0 %v1158
      %v1194 = vpop.f32.mrb[0].mxu0
      %v1195 = vadd.f32 %v1146, %v1194
      %v1196 = vpop.f32.mrb[0].mxu0
      %v1197 = vpop.f32.mrb[0].mxu0
      %v1198 = vadd.f32 %v1149, %v1197
      %v1199 = vpop.f32.mrb[0].mxu0
      %1200 = vdwg.mxu0
      %s1201 = scalar_lea.vmem %s15, 16
      %v1202 = vld [vmem:[%s1201] sm:$0xf]
      %v1203 = vld [vmem:[%s1201 + $0x4] sm:$0xf]
      %v1204 = vpack.c.bf16 %v1090, %v1089
      %v1205 = vpack.c.bf16 %v1092, %v1091
      %v1208 = vunpack.c.l.b16 %v1202
      %v1209 = vunpack.c.l.b16 %v1203
      %v1210 = vpack.c.b16 %v1209, %v1208
      %v1212 = vsel %vm1107, %v1210, 0
      %1214 = vmatprep.subr.bf16.mxu0 0
      %1215 = vmatpush1.bf16.msra.mxu0 %v1204
      %1216 = vmatprep.subr.bf16.mxu0 0
      %1217 = vmatpush1.bf16.msra.mxu0 %v1205
      %1218 = vmatprep.subr.bf16.mxu0 0
      %1219 = vmatpush1.bf16.msra.mxu0 0
      %1220 = vmatprep.subr.bf16.mxu0 0
      %1221 = vmatpush1.bf16.msra.mxu0 0
      %1222 = vmatprep.subr.bf16.mxu0 0
      %1223 = vmatpush1.bf16.msra.mxu0 0
      %1224 = vmatprep.subr.bf16.mxu0 0
      %1225 = vmatpush1.bf16.msra.mxu0 0
      %1226 = vmatprep.subr.bf16.mxu0 0
      %1227 = vmatpush1.bf16.msra.mxu0 0
      %1228 = vmatprep.subr.bf16.mxu0 0
      %1229 = vmatpush1.bf16.msra.mxu0 0
      %1230 = vmatprep.subr.bf16.mxu0 0
      %1231 = vmatpush1.bf16.msra.mxu0 0
      %1232 = vmatprep.subr.bf16.mxu0 0
      %1233 = vmatpush1.bf16.msra.mxu0 0
      %1234 = vmatprep.subr.bf16.mxu0 0
      %1235 = vmatpush1.bf16.msra.mxu0 0
      %1236 = vmatprep.subr.bf16.mxu0 0
      %1237 = vmatpush1.bf16.msra.mxu0 0
      %1238 = vmatprep.subr.bf16.mxu0 0
      %1239 = vmatpush1.bf16.msra.mxu0 0
      %1240 = vmatprep.subr.bf16.mxu0 0
      %1241 = vmatpush1.bf16.msra.mxu0 0
      %1242 = vmatprep.subr.bf16.mxu0 0
      %1243 = vmatpush1.bf16.msra.mxu0 0
      %1244 = vmatprep.subr.bf16.mxu0 0
      %1245 = vmatpush1.bf16.msra.mxu0 0
      %1246 = vmatprep.mubr.bf16.mxu0 0
      %1247 = vmatmul.mubr.bf16.gmra.mrb[0].mxu0 %v1212
      %v1248 = vpop.f32.mrb[0].mxu0
      %v1249 = vadd.f32 0.0, %v1248
      %v1250 = vpop.f32.mrb[0].mxu0
      %v1251 = vpop.f32.mrb[0].mxu0
      %v1252 = vadd.f32 0.0, %v1251
      %v1253 = vpop.f32.mrb[0].mxu0
      %1254 = vdwg.mxu0
      %v1255 = vadd.f32 %v1195, %v1249
      %v1256 = vadd.f32 %v1198, %v1252
      %1259 = vrot.lane.b32.xlu0 %v1053, 1
      %v1260 = vpop.permute.xlu0 %1259
      %1261 = vrot.lane.b32.xlu0 %v1054, 1
      %v1262 = vpop.permute.xlu0 %1261
      %v1265 = vsel %vm1071, 0.0, %v1260
      %v1266 = vsel %vm1071, 0.0, %v1262
      %1267 = vrot.lane.b32.xlu0 %v1053, 127
      %v1268 = vpop.permute.xlu0 %1267
      %1269 = vrot.lane.b32.xlu0 %v1054, 127
      %v1270 = vpop.permute.xlu0 %1269
      %v1273 = vsel %vm1088, %v1268, 0.0
      %v1274 = vsel %vm1088, %v1270, 0.0
      %v1275 = vld [vmem:[%s17] sm:$0xf]
      %v1276 = vld [vmem:[%s17 + $0x4] sm:$0xf]
      %v1277 = vpack.c.bf16 %v1266, %v1265
      %v1280 = vunpack.c.l.b16 %v1275
      %v1281 = vunpack.c.l.b16 %v1276
      %v1282 = vpack.c.b16 %v1281, %v1280
      %vm1283 = vcmask 130048
      %v1285 = vsel %vm1283, %v1282, 0
      %1287 = vmatprep.subr.bf16.mxu0 0
      %1288 = vmatpush1.bf16.msra.mxu0 %v1277
      %1289 = vmatprep.subr.bf16.mxu0 0
      %1290 = vmatpush1.bf16.msra.mxu0 0
      %1291 = vmatprep.subr.bf16.mxu0 0
      %1292 = vmatpush1.bf16.msra.mxu0 0
      %1293 = vmatprep.subr.bf16.mxu0 0
      %1294 = vmatpush1.bf16.msra.mxu0 0
      %1295 = vmatprep.subr.bf16.mxu0 0
      %1296 = vmatpush1.bf16.msra.mxu0 0
      %1297 = vmatprep.subr.bf16.mxu0 0
      %1298 = vmatpush1.bf16.msra.mxu0 0
      %1299 = vmatprep.subr.bf16.mxu0 0
      %1300 = vmatpush1.bf16.msra.mxu0 0
      %1301 = vmatprep.subr.bf16.mxu0 0
      %1302 = vmatpush1.bf16.msra.mxu0 0
      %1303 = vmatprep.subr.bf16.mxu0 0
      %1304 = vmatpush1.bf16.msra.mxu0 0
      %1305 = vmatprep.subr.bf16.mxu0 0
      %1306 = vmatpush1.bf16.msra.mxu0 0
      %1307 = vmatprep.subr.bf16.mxu0 0
      %1308 = vmatpush1.bf16.msra.mxu0 0
      %1309 = vmatprep.subr.bf16.mxu0 0
      %1310 = vmatpush1.bf16.msra.mxu0 0
      %1311 = vmatprep.subr.bf16.mxu0 0
      %1312 = vmatpush1.bf16.msra.mxu0 0
      %1313 = vmatprep.subr.bf16.mxu0 0
      %1314 = vmatpush1.bf16.msra.mxu0 0
      %1315 = vmatprep.subr.bf16.mxu0 0
      %1316 = vmatpush1.bf16.msra.mxu0 0
      %1317 = vmatprep.subr.bf16.mxu0 0
      %1318 = vmatpush1.bf16.msra.mxu0 0
      %1319 = vmatprep.mubr.bf16.mxu0 0
      %1320 = vmatmul.mubr.bf16.gmra.mrb[0].mxu0 %v1285
      %v1321 = vpop.f32.mrb[0].mxu0
      %v1322 = vadd.f32 0.0, %v1321
      %v1323 = vpop.f32.mrb[0].mxu0
      %v1324 = vpop.f32.mrb[0].mxu0
      %v1325 = vadd.f32 0.0, %v1324
      %v1326 = vpop.f32.mrb[0].mxu0
      %1327 = vdwg.mxu0
      %v1328 = vadd.f32 %v1255, %v1322
      %v1329 = vadd.f32 %v1256, %v1325
      %s1330 = scalar_lea.vmem %s17, 8
      %v1331 = vld [vmem:[%s1330] sm:$0xf]
      %v1332 = vld [vmem:[%s1330 + $0x4] sm:$0xf]
      %v1333 = vpack.c.bf16 %v1054, %v1053
      %v1336 = vunpack.c.l.b16 %v1331
      %v1337 = vunpack.c.l.b16 %v1332
      %v1338 = vpack.c.b16 %v1337, %v1336
      %v1340 = vsel %vm1283, %v1338, 0
      %1342 = vmatprep.subr.bf16.mxu0 0
      %1343 = vmatpush1.bf16.msra.mxu0 %v1333
      %1344 = vmatprep.subr.bf16.mxu0 0
      %1345 = vmatpush1.bf16.msra.mxu0 0
      %1346 = vmatprep.subr.bf16.mxu0 0
      %1347 = vmatpush1.bf16.msra.mxu0 0
      %1348 = vmatprep.subr.bf16.mxu0 0
      %1349 = vmatpush1.bf16.msra.mxu0 0
      %1350 = vmatprep.subr.bf16.mxu0 0
      %1351 = vmatpush1.bf16.msra.mxu0 0
      %1352 = vmatprep.subr.bf16.mxu0 0
      %1353 = vmatpush1.bf16.msra.mxu0 0
      %1354 = vmatprep.subr.bf16.mxu0 0
      %1355 = vmatpush1.bf16.msra.mxu0 0
      %1356 = vmatprep.subr.bf16.mxu0 0
      %1357 = vmatpush1.bf16.msra.mxu0 0
      %1358 = vmatprep.subr.bf16.mxu0 0
      %1359 = vmatpush1.bf16.msra.mxu0 0
      %1360 = vmatprep.subr.bf16.mxu0 0
      %1361 = vmatpush1.bf16.msra.mxu0 0
      %1362 = vmatprep.subr.bf16.mxu0 0
      %1363 = vmatpush1.bf16.msra.mxu0 0
      %1364 = vmatprep.subr.bf16.mxu0 0
      %1365 = vmatpush1.bf16.msra.mxu0 0
      %1366 = vmatprep.subr.bf16.mxu0 0
      %1367 = vmatpush1.bf16.msra.mxu0 0
      %1368 = vmatprep.subr.bf16.mxu0 0
      %1369 = vmatpush1.bf16.msra.mxu0 0
      %1370 = vmatprep.subr.bf16.mxu0 0
      %1371 = vmatpush1.bf16.msra.mxu0 0
      %1372 = vmatprep.subr.bf16.mxu0 0
      %1373 = vmatpush1.bf16.msra.mxu0 0
      %1374 = vmatprep.mubr.bf16.mxu0 0
      %1375 = vmatmul.mubr.bf16.gmra.mrb[0].mxu0 %v1340
      %v1376 = vpop.f32.mrb[0].mxu0
      %v1377 = vadd.f32 0.0, %v1376
      %v1378 = vpop.f32.mrb[0].mxu0
      %v1379 = vpop.f32.mrb[0].mxu0
      %v1380 = vadd.f32 0.0, %v1379
      %v1381 = vpop.f32.mrb[0].mxu0
      %1382 = vdwg.mxu0
      %v1383 = vadd.f32 %v1328, %v1377
      %v1384 = vadd.f32 %v1329, %v1380
      %s1385 = scalar_lea.vmem %s17, 16
      %v1386 = vld [vmem:[%s1385] sm:$0xf]
      %v1387 = vld [vmem:[%s1385 + $0x4] sm:$0xf]
      %v1388 = vpack.c.bf16 %v1274, %v1273
      %v1391 = vunpack.c.l.b16 %v1386
      %v1392 = vunpack.c.l.b16 %v1387
      %v1393 = vpack.c.b16 %v1392, %v1391
      %v1395 = vsel %vm1283, %v1393, 0
      %1397 = vmatprep.subr.bf16.mxu0 0
      %1398 = vmatpush1.bf16.msra.mxu0 %v1388
      %1399 = vmatprep.subr.bf16.mxu0 0
      %1400 = vmatpush1.bf16.msra.mxu0 0
      %1401 = vmatprep.subr.bf16.mxu0 0
      %1402 = vmatpush1.bf16.msra.mxu0 0
      %1403 = vmatprep.subr.bf16.mxu0 0
      %1404 = vmatpush1.bf16.msra.mxu0 0
      %1405 = vmatprep.subr.bf16.mxu0 0
      %1406 = vmatpush1.bf16.msra.mxu0 0
      %1407 = vmatprep.subr.bf16.mxu0 0
      %1408 = vmatpush1.bf16.msra.mxu0 0
      %1409 = vmatprep.subr.bf16.mxu0 0
      %1410 = vmatpush1.bf16.msra.mxu0 0
      %1411 = vmatprep.subr.bf16.mxu0 0
      %1412 = vmatpush1.bf16.msra.mxu0 0
      %1413 = vmatprep.subr.bf16.mxu0 0
      %1414 = vmatpush1.bf16.msra.mxu0 0
      %1415 = vmatprep.subr.bf16.mxu0 0
      %1416 = vmatpush1.bf16.msra.mxu0 0
      %1417 = vmatprep.subr.bf16.mxu0 0
      %1418 = vmatpush1.bf16.msra.mxu0 0
      %1419 = vmatprep.subr.bf16.mxu0 0
      %1420 = vmatpush1.bf16.msra.mxu0 0
      %1421 = vmatprep.subr.bf16.mxu0 0
      %1422 = vmatpush1.bf16.msra.mxu0 0
      %1423 = vmatprep.subr.bf16.mxu0 0
      %1424 = vmatpush1.bf16.msra.mxu0 0
      %1425 = vmatprep.subr.bf16.mxu0 0
      %1426 = vmatpush1.bf16.msra.mxu0 0
      %1427 = vmatprep.subr.bf16.mxu0 0
      %1428 = vmatpush1.bf16.msra.mxu0 0
      %1429 = vmatprep.mubr.bf16.mxu0 0
      %1430 = vmatmul.mubr.bf16.gmra.mrb[0].mxu0 %v1395
      %v1431 = vpop.f32.mrb[0].mxu0
      %v1432 = vadd.f32 0.0, %v1431
      %v1433 = vpop.f32.mrb[0].mxu0
      %v1434 = vpop.f32.mrb[0].mxu0
      %v1435 = vadd.f32 0.0, %v1434
      %v1436 = vpop.f32.mrb[0].mxu0
      %1437 = vdwg.mxu0
      %v1438 = vadd.f32 %v1383, %v1432
      %v1439 = vadd.f32 %v1384, %v1435
      %v1440 = vld [vmem:[%s19] sm:$0xff]
      %v1441 = vld [vmem:[%s19 + $0x8] sm:$0xff]
      %1443 = vset.pattern.permute.xlu0 0
      %1444 = vperm.xlu0 %1443, %v1440
      %v1445 = vpop.permute.xlu0 %1444
      %1448 = vset.pattern.permute.xlu0 0
      %1449 = vperm.xlu0 %1448, %v1441
      %v1450 = vpop.permute.xlu0 %1449
      %v1452 = vmul.f32 %v1438, %v1445
      %v1453 = vmul.f32 %v1439, %v1450
      %v1454 = vld [vmem:[%s21] sm:$0xff]
      %v1455 = vld [vmem:[%s21 + $0x8] sm:$0xff]
      %1457 = vset.pattern.permute.xlu0 0
      %1458 = vperm.xlu0 %1457, %v1454
      %v1459 = vpop.permute.xlu0 %1458
      %1462 = vset.pattern.permute.xlu0 0
      %1463 = vperm.xlu0 %1462, %v1455
      %v1464 = vpop.permute.xlu0 %1463
      %v1466 = vadd.f32 %v1452, %v1459
      %v1467 = vadd.f32 %v1453, %v1464
      %vm1468 = vcmp.ge.f32.partialorder %v1466, 0.0
      %vm1469 = vcmp.ge.f32.partialorder %v1467, 0.0
      %v1470 = vmul.f32 %v1466, 0.2
      %v1471 = vmul.f32 %v1467, 0.2
      %v1472 = vsel %vm1468, %v1466, %v1470
      %v1473 = vsel %vm1469, %v1467, %v1471
      %1476 = vrot.lane.b32.xlu0 %v1472, 1
      %v1477 = vpop.permute.xlu0 %1476
      %1478 = vrot.lane.b32.xlu0 %v1473, 1
      %v1479 = vpop.permute.xlu0 %1478
      %v1482 = vsel %vm1071, 0.0, %v1477
      %v1483 = vsel %vm1071, 0.0, %v1479
      %1484 = vrot.lane.b32.xlu0 %v1472, 127
      %v1485 = vpop.permute.xlu0 %1484
      %1486 = vrot.lane.b32.xlu0 %v1473, 127
      %v1487 = vpop.permute.xlu0 %1486
      %v1490 = vsel %vm1088, %v1485, 0.0
      %v1491 = vsel %vm1088, %v1487, 0.0
      %v1492 = vld [vmem:[%s23] sm:$0xf]
      %v1493 = vld [vmem:[%s23 + $0x4] sm:$0xf]
      %v1494 = vpack.c.bf16 %v1483, %v1482
      %s1495 = scalar_lea.vmem %s23, 8
      %v1496 = vld [vmem:[%s1495] sm:$0xf]
      %v1497 = vld [vmem:[%s1495 + $0x4] sm:$0xf]
      %v1498 = vpack.c.bf16 %v1473, %v1472
      %v1501 = vunpack.c.l.b16 %v1496
      %v1502 = vunpack.c.l.b16 %v1497
      %v1503 = vpack.c.b16 %v1502, %v1501
      %v1505 = vsel %vm1283, %v1503, 0
      %1507 = vmatprep.subr.bf16.mxu0 0
      %1508 = vmatpush1.bf16.msra.mxu0 %v1498
      %1509 = vmatprep.subr.bf16.mxu0 0
      %1510 = vmatpush1.bf16.msra.mxu0 0
      %1511 = vmatprep.subr.bf16.mxu0 0
      %1512 = vmatpush1.bf16.msra.mxu0 0
      %1513 = vmatprep.subr.bf16.mxu0 0
      %1514 = vmatpush1.bf16.msra.mxu0 0
      %1515 = vmatprep.subr.bf16.mxu0 0
      %1516 = vmatpush1.bf16.msra.mxu0 0
      %1517 = vmatprep.subr.bf16.mxu0 0
      %1518 = vmatpush1.bf16.msra.mxu0 0
      %1519 = vmatprep.subr.bf16.mxu0 0
      %1520 = vmatpush1.bf16.msra.mxu0 0
      %1521 = vmatprep.subr.bf16.mxu0 0
      %1522 = vmatpush1.bf16.msra.mxu0 0
      %1523 = vmatprep.subr.bf16.mxu0 0
      %1524 = vmatpush1.bf16.msra.mxu0 0
      %1525 = vmatprep.subr.bf16.mxu0 0
      %1526 = vmatpush1.bf16.msra.mxu0 0
      %1527 = vmatprep.subr.bf16.mxu0 0
      %1528 = vmatpush1.bf16.msra.mxu0 0
      %1529 = vmatprep.subr.bf16.mxu0 0
      %1530 = vmatpush1.bf16.msra.mxu0 0
      %1531 = vmatprep.subr.bf16.mxu0 0
      %1532 = vmatpush1.bf16.msra.mxu0 0
      %1533 = vmatprep.subr.bf16.mxu0 0
      %1534 = vmatpush1.bf16.msra.mxu0 0
      %1535 = vmatprep.subr.bf16.mxu0 0
      %1536 = vmatpush1.bf16.msra.mxu0 0
      %1537 = vmatprep.subr.bf16.mxu0 0
      %1538 = vmatpush1.bf16.msra.mxu0 0
      %1539 = vmatprep.mubr.bf16.mxu0 0
      %1540 = vmatmul.mubr.bf16.gmra.mrb[0].mxu0 %v1505
      %v1541 = vpop.f32.mrb[0].mxu0
      %v1542 = vadd.f32 0.0, %v1541
      %v1543 = vpop.f32.mrb[0].mxu0
      %v1544 = vpop.f32.mrb[0].mxu0
      %v1545 = vadd.f32 0.0, %v1544
      %v1546 = vpop.f32.mrb[0].mxu0
      %1547 = vdwg.mxu0
      %v1550 = vunpack.c.l.b16 %v1492
      %v1551 = vunpack.c.l.b16 %v1493
      %v1552 = vpack.c.b16 %v1551, %v1550
      %v1554 = vsel %vm1283, %v1552, 0
      %1556 = vmatprep.subr.bf16.mxu0 0
      %1557 = vmatpush1.bf16.msra.mxu0 %v1494
      %1558 = vmatprep.subr.bf16.mxu0 0
      %1559 = vmatpush1.bf16.msra.mxu0 0
      %1560 = vmatprep.subr.bf16.mxu0 0
      %1561 = vmatpush1.bf16.msra.mxu0 0
      %1562 = vmatprep.subr.bf16.mxu0 0
      %1563 = vmatpush1.bf16.msra.mxu0 0
      %1564 = vmatprep.subr.bf16.mxu0 0
      %1565 = vmatpush1.bf16.msra.mxu0 0
      %1566 = vmatprep.subr.bf16.mxu0 0
      %1567 = vmatpush1.bf16.msra.mxu0 0
      %1568 = vmatprep.subr.bf16.mxu0 0
      %1569 = vmatpush1.bf16.msra.mxu0 0
      %1570 = vmatprep.subr.bf16.mxu0 0
      %1571 = vmatpush1.bf16.msra.mxu0 0
      %1572 = vmatprep.subr.bf16.mxu0 0
      %1573 = vmatpush1.bf16.msra.mxu0 0
      %1574 = vmatprep.subr.bf16.mxu0 0
      %1575 = vmatpush1.bf16.msra.mxu0 0
      %1576 = vmatprep.subr.bf16.mxu0 0
      %1577 = vmatpush1.bf16.msra.mxu0 0
      %1578 = vmatprep.subr.bf16.mxu0 0
      %1579 = vmatpush1.bf16.msra.mxu0 0
      %1580 = vmatprep.subr.bf16.mxu0 0
      %1581 = vmatpush1.bf16.msra.mxu0 0
      %1582 = vmatprep.subr.bf16.mxu0 0
      %1583 = vmatpush1.bf16.msra.mxu0 0
      %1584 = vmatprep.subr.bf16.mxu0 0
      %1585 = vmatpush1.bf16.msra.mxu0 0
      %1586 = vmatprep.subr.bf16.mxu0 0
      %1587 = vmatpush1.bf16.msra.mxu0 0
      %1588 = vmatprep.mubr.bf16.mxu0 0
      %1589 = vmatmul.mubr.bf16.gmra.mrb[0].mxu0 %v1554
      %v1590 = vpop.f32.mrb[0].mxu0
      %v1591 = vadd.f32 %v1542, %v1590
      %v1592 = vpop.f32.mrb[0].mxu0
      %v1593 = vpop.f32.mrb[0].mxu0
      %v1594 = vadd.f32 %v1545, %v1593
      %v1595 = vpop.f32.mrb[0].mxu0
      %1596 = vdwg.mxu0
      %s1597 = scalar_lea.vmem %s23, 16
      %v1598 = vld [vmem:[%s1597] sm:$0xf]
      %v1599 = vld [vmem:[%s1597 + $0x4] sm:$0xf]
      %v1600 = vpack.c.bf16 %v1491, %v1490
      %v1603 = vunpack.c.l.b16 %v1598
      %v1604 = vunpack.c.l.b16 %v1599
      %v1605 = vpack.c.b16 %v1604, %v1603
      %v1607 = vsel %vm1283, %v1605, 0
      %1609 = vmatprep.subr.bf16.mxu0 0
      %1610 = vmatpush1.bf16.msra.mxu0 %v1600
      %1611 = vmatprep.subr.bf16.mxu0 0
      %1612 = vmatpush1.bf16.msra.mxu0 0
      %1613 = vmatprep.subr.bf16.mxu0 0
      %1614 = vmatpush1.bf16.msra.mxu0 0
      %1615 = vmatprep.subr.bf16.mxu0 0
      %1616 = vmatpush1.bf16.msra.mxu0 0
      %1617 = vmatprep.subr.bf16.mxu0 0
      %1618 = vmatpush1.bf16.msra.mxu0 0
      %1619 = vmatprep.subr.bf16.mxu0 0
      %1620 = vmatpush1.bf16.msra.mxu0 0
      %1621 = vmatprep.subr.bf16.mxu0 0
      %1622 = vmatpush1.bf16.msra.mxu0 0
      %1623 = vmatprep.subr.bf16.mxu0 0
      %1624 = vmatpush1.bf16.msra.mxu0 0
      %1625 = vmatprep.subr.bf16.mxu0 0
      %1626 = vmatpush1.bf16.msra.mxu0 0
      %1627 = vmatprep.subr.bf16.mxu0 0
      %1628 = vmatpush1.bf16.msra.mxu0 0
      %1629 = vmatprep.subr.bf16.mxu0 0
      %1630 = vmatpush1.bf16.msra.mxu0 0
      %1631 = vmatprep.subr.bf16.mxu0 0
      %1632 = vmatpush1.bf16.msra.mxu0 0
      %1633 = vmatprep.subr.bf16.mxu0 0
      %1634 = vmatpush1.bf16.msra.mxu0 0
      %1635 = vmatprep.subr.bf16.mxu0 0
      %1636 = vmatpush1.bf16.msra.mxu0 0
      %1637 = vmatprep.subr.bf16.mxu0 0
      %1638 = vmatpush1.bf16.msra.mxu0 0
      %1639 = vmatprep.subr.bf16.mxu0 0
      %1640 = vmatpush1.bf16.msra.mxu0 0
      %1641 = vmatprep.mubr.bf16.mxu0 0
      %1642 = vmatmul.mubr.bf16.gmra.mrb[0].mxu0 %v1607
      %v1643 = vpop.f32.mrb[0].mxu0
      %v1644 = vadd.f32 0.0, %v1643
      %v1645 = vpop.f32.mrb[0].mxu0
      %v1646 = vpop.f32.mrb[0].mxu0
      %v1647 = vadd.f32 0.0, %v1646
      %v1648 = vpop.f32.mrb[0].mxu0
      %1649 = vdwg.mxu0
      %v1650 = vadd.f32 %v1591, %v1644
      %v1651 = vadd.f32 %v1594, %v1647
      %v1652 = vld [vmem:[%s25] sm:$0xff]
      %v1653 = vld [vmem:[%s25 + $0x8] sm:$0xff]
      %1655 = vset.pattern.permute.xlu0 0
      %1656 = vperm.xlu0 %1655, %v1652
      %v1657 = vpop.permute.xlu0 %1656
      %1660 = vset.pattern.permute.xlu0 0
      %1661 = vperm.xlu0 %1660, %v1653
      %v1662 = vpop.permute.xlu0 %1661
      %v1664 = vmul.f32 %v1650, %v1657
      %v1665 = vmul.f32 %v1651, %v1662
      %v1666 = vld [vmem:[%s27] sm:$0xff]
      %v1667 = vld [vmem:[%s27 + $0x8] sm:$0xff]
      %1669 = vset.pattern.permute.xlu0 0
      %1670 = vperm.xlu0 %1669, %v1666
      %v1671 = vpop.permute.xlu0 %1670
      %1674 = vset.pattern.permute.xlu0 0
      %1675 = vperm.xlu0 %1674, %v1667
      %v1676 = vpop.permute.xlu0 %1675
      %v1678 = vadd.f32 %v1664, %v1671
      %v1679 = vadd.f32 %v1665, %v1676
      %vm1680 = vcmp.ge.f32.partialorder %v1678, 0.0
      %vm1681 = vcmp.ge.f32.partialorder %v1679, 0.0
      %v1682 = vmul.f32 %v1678, 0.2
      %v1683 = vmul.f32 %v1679, 0.2
      %v1684 = vsel %vm1680, %v1678, %v1682
      %v1685 = vsel %vm1681, %v1679, %v1683
      %v1686 = vpack.c.bf16 %v1685, %v1684
      %v1687 = vld [vmem:[%s11] sm:$0xf]
      %vm1688 = vcmask 64512
      %v1690 = vsel %vm1688, %v1686, 0
      %vm1692 = vcmask 1043456
      %v1694 = vsel %vm1692, %v1687, 0
      %1696 = vmatprep.subr.bf16.mxu0 0
      %1697 = vmatpush1.bf16.msra.mxu0 %v1694
      %1698 = vmatprep.subr.bf16.mxu0 0
      %1699 = vmatpush1.bf16.msra.mxu0 0
      %1700 = vmatprep.subr.bf16.mxu0 0
      %1701 = vmatpush1.bf16.msra.mxu0 0
      %1702 = vmatprep.subr.bf16.mxu0 0
      %1703 = vmatpush1.bf16.msra.mxu0 0
      %1704 = vmatprep.subr.bf16.mxu0 0
      %1705 = vmatpush1.bf16.msra.mxu0 0
      %1706 = vmatprep.subr.bf16.mxu0 0
      %1707 = vmatpush1.bf16.msra.mxu0 0
      %1708 = vmatprep.subr.bf16.mxu0 0
      %1709 = vmatpush1.bf16.msra.mxu0 0
      %1710 = vmatprep.subr.bf16.mxu0 0
      %1711 = vmatpush1.bf16.msra.mxu0 0
      %1712 = vmatprep.subr.bf16.mxu0 0
      %1713 = vmatpush1.bf16.msra.mxu0 0
      %1714 = vmatprep.subr.bf16.mxu0 0
      %1715 = vmatpush1.bf16.msra.mxu0 0
      %1716 = vmatprep.subr.bf16.mxu0 0
      %1717 = vmatpush1.bf16.msra.mxu0 0
      %1718 = vmatprep.subr.bf16.mxu0 0
      %1719 = vmatpush1.bf16.msra.mxu0 0
      %1720 = vmatprep.subr.bf16.mxu0 0
      %1721 = vmatpush1.bf16.msra.mxu0 0
      %1722 = vmatprep.subr.bf16.mxu0 0
      %1723 = vmatpush1.bf16.msra.mxu0 0
      %1724 = vmatprep.subr.bf16.mxu0 0
      %1725 = vmatpush1.bf16.msra.mxu0 0
      %1726 = vmatprep.subr.bf16.mxu0 0
      %1727 = vmatpush1.bf16.msra.mxu0 0
      %1728 = vmatprep.mubr.bf16.mxu0 0
      %1729 = vmatmul.mubr.bf16.gmra.mrb[0].mxu0 %v1690
      %v1730 = vpop.f32.mrb[0].mxu0
      %v1731 = vadd.f32 0.0, %v1730
      %v1732 = vpop.f32.mrb[0].mxu0
      %v1733 = vpop.f32.mrb[0].mxu0
      %v1734 = vadd.f32 0.0, %v1733
      %v1735 = vpop.f32.mrb[0].mxu0
      %1736 = vdwg.mxu0
      %v1737 = vld [vmem:[%s975] sm:$0xff]
      %1740 = vrot.lane.b32.xlu0 %v1731, 1
      %v1741 = vpop.permute.xlu0 %1740
      %1742 = vrot.lane.b32.xlu0 %v1734, 1
      %v1743 = vpop.permute.xlu0 %1742
      %v1746 = vsel %vm1071, 0.0, %v1741
      %v1747 = vsel %vm1071, 0.0, %v1743
      %1748 = vrot.lane.b32.xlu0 %v1731, 127
      %v1749 = vpop.permute.xlu0 %1748
      %1750 = vrot.lane.b32.xlu0 %v1734, 127
      %v1751 = vpop.permute.xlu0 %1750
      %vm1754 = vcmask 121856
      %v1755 = vsel %vm1754, %v1749, 0.0
      %v1756 = vsel %vm1754, %v1751, 0.0
      %v1757 = vld [vmem:[%s29] sm:$0xf]
      %v1758 = vpack.c.bf16 %v1747, %v1746
      %s1759 = scalar_lea.vmem %s29, 4
      %v1760 = vld [vmem:[%s1759] sm:$0xf]
      %v1761 = vpack.c.bf16 %v1734, %v1731
      %v1763 = vsel %vm1283, %v1760, 0
      %1765 = vmatprep.subr.bf16.mxu0 0
      %1766 = vmatpush1.bf16.msra.mxu0 %v1761
      %1767 = vmatprep.subr.bf16.mxu0 0
      %1768 = vmatpush1.bf16.msra.mxu0 0
      %1769 = vmatprep.subr.bf16.mxu0 0
      %1770 = vmatpush1.bf16.msra.mxu0 0
      %1771 = vmatprep.subr.bf16.mxu0 0
      %1772 = vmatpush1.bf16.msra.mxu0 0
      %1773 = vmatprep.subr.bf16.mxu0 0
      %1774 = vmatpush1.bf16.msra.mxu0 0
      %1775 = vmatprep.subr.bf16.mxu0 0
      %1776 = vmatpush1.bf16.msra.mxu0 0
      %1777 = vmatprep.subr.bf16.mxu0 0
      %1778 = vmatpush1.bf16.msra.mxu0 0
      %1779 = vmatprep.subr.bf16.mxu0 0
      %1780 = vmatpush1.bf16.msra.mxu0 0
      %1781 = vmatprep.subr.bf16.mxu0 0
      %1782 = vmatpush1.bf16.msra.mxu0 0
      %1783 = vmatprep.subr.bf16.mxu0 0
      %1784 = vmatpush1.bf16.msra.mxu0 0
      %1785 = vmatprep.subr.bf16.mxu0 0
      %1786 = vmatpush1.bf16.msra.mxu0 0
      %1787 = vmatprep.subr.bf16.mxu0 0
      %1788 = vmatpush1.bf16.msra.mxu0 0
      %1789 = vmatprep.subr.bf16.mxu0 0
      %1790 = vmatpush1.bf16.msra.mxu0 0
      %1791 = vmatprep.subr.bf16.mxu0 0
      %1792 = vmatpush1.bf16.msra.mxu0 0
      %1793 = vmatprep.subr.bf16.mxu0 0
      %1794 = vmatpush1.bf16.msra.mxu0 0
      %1795 = vmatprep.subr.bf16.mxu0 0
      %1796 = vmatpush1.bf16.msra.mxu0 0
      %1797 = vmatprep.mubr.bf16.mxu0 0
      %1798 = vmatmul.mubr.bf16.gmra.mrb[0].mxu0 %v1763
      %v1799 = vpop.f32.mrb[0].mxu0
      %v1800 = vadd.f32 0.0, %v1799
      %v1801 = vpop.f32.mrb[0].mxu0
      %v1802 = vpop.f32.mrb[0].mxu0
      %v1803 = vpop.f32.mrb[0].mxu0
      %1804 = vdwg.mxu0
      %v1806 = vsel %vm1283, %v1757, 0
      %1808 = vmatprep.subr.bf16.mxu0 0
      %1809 = vmatpush1.bf16.msra.mxu0 %v1758
      %1810 = vmatprep.subr.bf16.mxu0 0
      %1811 = vmatpush1.bf16.msra.mxu0 0
      %1812 = vmatprep.subr.bf16.mxu0 0
      %1813 = vmatpush1.bf16.msra.mxu0 0
      %1814 = vmatprep.subr.bf16.mxu0 0
      %1815 = vmatpush1.bf16.msra.mxu0 0
      %1816 = vmatprep.subr.bf16.mxu0 0
      %1817 = vmatpush1.bf16.msra.mxu0 0
      %1818 = vmatprep.subr.bf16.mxu0 0
      %1819 = vmatpush1.bf16.msra.mxu0 0
      %1820 = vmatprep.subr.bf16.mxu0 0
      %1821 = vmatpush1.bf16.msra.mxu0 0
      %1822 = vmatprep.subr.bf16.mxu0 0
      %1823 = vmatpush1.bf16.msra.mxu0 0
      %1824 = vmatprep.subr.bf16.mxu0 0
      %1825 = vmatpush1.bf16.msra.mxu0 0
      %1826 = vmatprep.subr.bf16.mxu0 0
      %1827 = vmatpush1.bf16.msra.mxu0 0
      %1828 = vmatprep.subr.bf16.mxu0 0
      %1829 = vmatpush1.bf16.msra.mxu0 0
      %1830 = vmatprep.subr.bf16.mxu0 0
      %1831 = vmatpush1.bf16.msra.mxu0 0
      %1832 = vmatprep.subr.bf16.mxu0 0
      %1833 = vmatpush1.bf16.msra.mxu0 0
      %1834 = vmatprep.subr.bf16.mxu0 0
      %1835 = vmatpush1.bf16.msra.mxu0 0
      %1836 = vmatprep.subr.bf16.mxu0 0
      %1837 = vmatpush1.bf16.msra.mxu0 0
      %1838 = vmatprep.subr.bf16.mxu0 0
      %1839 = vmatpush1.bf16.msra.mxu0 0
      %1840 = vmatprep.mubr.bf16.mxu0 0
      %1841 = vmatmul.mubr.bf16.gmra.mrb[0].mxu0 %v1806
      %v1842 = vpop.f32.mrb[0].mxu0
      %v1843 = vadd.f32 %v1800, %v1842
      %v1844 = vpop.f32.mrb[0].mxu0
      %v1845 = vpop.f32.mrb[0].mxu0
      %v1846 = vpop.f32.mrb[0].mxu0
      %1847 = vdwg.mxu0
      %s1848 = scalar_lea.vmem %s29, 8
      %v1849 = vld [vmem:[%s1848] sm:$0xf]
      %v1850 = vpack.c.bf16 %v1756, %v1755
      %v1852 = vsel %vm1283, %v1849, 0
      %1854 = vmatprep.subr.bf16.mxu0 0
      %1855 = vmatpush1.bf16.msra.mxu0 %v1850
      %1856 = vmatprep.subr.bf16.mxu0 0
      %1857 = vmatpush1.bf16.msra.mxu0 0
      %1858 = vmatprep.subr.bf16.mxu0 0
      %1859 = vmatpush1.bf16.msra.mxu0 0
      %1860 = vmatprep.subr.bf16.mxu0 0
      %1861 = vmatpush1.bf16.msra.mxu0 0
      %1862 = vmatprep.subr.bf16.mxu0 0
      %1863 = vmatpush1.bf16.msra.mxu0 0
      %1864 = vmatprep.subr.bf16.mxu0 0
      %1865 = vmatpush1.bf16.msra.mxu0 0
      %1866 = vmatprep.subr.bf16.mxu0 0
      %1867 = vmatpush1.bf16.msra.mxu0 0
      %1868 = vmatprep.subr.bf16.mxu0 0
      %1869 = vmatpush1.bf16.msra.mxu0 0
      %1870 = vmatprep.subr.bf16.mxu0 0
      %1871 = vmatpush1.bf16.msra.mxu0 0
      %1872 = vmatprep.subr.bf16.mxu0 0
      %1873 = vmatpush1.bf16.msra.mxu0 0
      %1874 = vmatprep.subr.bf16.mxu0 0
      %1875 = vmatpush1.bf16.msra.mxu0 0
      %1876 = vmatprep.subr.bf16.mxu0 0
      %1877 = vmatpush1.bf16.msra.mxu0 0
      %1878 = vmatprep.subr.bf16.mxu0 0
      %1879 = vmatpush1.bf16.msra.mxu0 0
      %1880 = vmatprep.subr.bf16.mxu0 0
      %1881 = vmatpush1.bf16.msra.mxu0 0
      %1882 = vmatprep.subr.bf16.mxu0 0
      %1883 = vmatpush1.bf16.msra.mxu0 0
      %1884 = vmatprep.subr.bf16.mxu0 0
      %1885 = vmatpush1.bf16.msra.mxu0 0
      %1886 = vmatprep.mubr.bf16.mxu0 0
      %1887 = vmatmul.mubr.bf16.gmra.mrb[0].mxu0 %v1852
      %v1888 = vpop.f32.mrb[0].mxu0
      %v1889 = vadd.f32 0.0, %v1888
      %v1890 = vpop.f32.mrb[0].mxu0
      %v1891 = vpop.f32.mrb[0].mxu0
      %v1892 = vpop.f32.mrb[0].mxu0
      %1893 = vdwg.mxu0
      %v1894 = vadd.f32 %v1843, %v1889
      %1896 = vrot.lane.b32.xlu0 %v1737, 1
      %v1897 = vpop.permute.xlu0 %1896
      %v1899 = vsel %vm1071, 0.0, %v1897
      %1900 = vrot.lane.b32.xlu0 %v1737, 127
      %v1901 = vpop.permute.xlu0 %1900
      %v1903 = vsel %vm1754, %v1901, 0.0
      %v1904 = vld [vmem:[%s31] sm:$0xf]
      %v1905 = vpack.c.bf16 %v1899, %v1899
      %v1907 = vsel %vm1688, %v1904, 0
      %v1910 = vsel %vm1692, %v1905, 0
      %1912 = vmatprep.subr.bf16.mxu0 0
      %1913 = vmatpush1.bf16.msra.mxu0 %v1910
      %1914 = vmatprep.subr.bf16.mxu0 0
      %1915 = vmatpush1.bf16.msra.mxu0 0
      %1916 = vmatprep.subr.bf16.mxu0 0
      %1917 = vmatpush1.bf16.msra.mxu0 0
      %1918 = vmatprep.subr.bf16.mxu0 0
      %1919 = vmatpush1.bf16.msra.mxu0 0
      %1920 = vmatprep.subr.bf16.mxu0 0
      %1921 = vmatpush1.bf16.msra.mxu0 0
      %1922 = vmatprep.subr.bf16.mxu0 0
      %1923 = vmatpush1.bf16.msra.mxu0 0
      %1924 = vmatprep.subr.bf16.mxu0 0
      %1925 = vmatpush1.bf16.msra.mxu0 0
      %1926 = vmatprep.subr.bf16.mxu0 0
      %1927 = vmatpush1.bf16.msra.mxu0 0
      %1928 = vmatprep.subr.bf16.mxu0 0
      %1929 = vmatpush1.bf16.msra.mxu0 0
      %1930 = vmatprep.subr.bf16.mxu0 0
      %1931 = vmatpush1.bf16.msra.mxu0 0
      %1932 = vmatprep.subr.bf16.mxu0 0
      %1933 = vmatpush1.bf16.msra.mxu0 0
      %1934 = vmatprep.subr.bf16.mxu0 0
      %1935 = vmatpush1.bf16.msra.mxu0 0
      %1936 = vmatprep.subr.bf16.mxu0 0
      %1937 = vmatpush1.bf16.msra.mxu0 0
      %1938 = vmatprep.subr.bf16.mxu0 0
      %1939 = vmatpush1.bf16.msra.mxu0 0
      %1940 = vmatprep.subr.bf16.mxu0 0
      %1941 = vmatpush1.bf16.msra.mxu0 0
      %1942 = vmatprep.subr.bf16.mxu0 0
      %1943 = vmatpush1.bf16.msra.mxu0 0
      %1944 = vmatprep.mubr.bf16.mxu0 0
      %1945 = vmatmul.mubr.bf16.gmra.mrb[0].mxu0 %v1907
      %v1946 = vpop.f32.mrb[0].mxu0
      %v1947 = vadd.f32 0.0, %v1946
      %v1948 = vpop.f32.mrb[0].mxu0
      %v1949 = vpop.f32.mrb[0].mxu0
      %v1950 = vpop.f32.mrb[0].mxu0
      %1951 = vdwg.mxu0
      %v1952 = vadd.f32 %v1894, %v1947
      %s1953 = scalar_lea.vmem %s31, 4
      %v1954 = vld [vmem:[%s1953] sm:$0xf]
      %v1955 = vpack.c.bf16 %v1737, %v1737
      %v1957 = vsel %vm1688, %v1954, 0
      %v1960 = vsel %vm1692, %v1955, 0
      %1962 = vmatprep.subr.bf16.mxu0 0
      %1963 = vmatpush1.bf16.msra.mxu0 %v1960
      %1964 = vmatprep.subr.bf16.mxu0 0
      %1965 = vmatpush1.bf16.msra.mxu0 0
      %1966 = vmatprep.subr.bf16.mxu0 0
      %1967 = vmatpush1.bf16.msra.mxu0 0
      %1968 = vmatprep.subr.bf16.mxu0 0
      %1969 = vmatpush1.bf16.msra.mxu0 0
      %1970 = vmatprep.subr.bf16.mxu0 0
      %1971 = vmatpush1.bf16.msra.mxu0 0
      %1972 = vmatprep.subr.bf16.mxu0 0
      %1973 = vmatpush1.bf16.msra.mxu0 0
      %1974 = vmatprep.subr.bf16.mxu0 0
      %1975 = vmatpush1.bf16.msra.mxu0 0
      %1976 = vmatprep.subr.bf16.mxu0 0
      %1977 = vmatpush1.bf16.msra.mxu0 0
      %1978 = vmatprep.subr.bf16.mxu0 0
      %1979 = vmatpush1.bf16.msra.mxu0 0
      %1980 = vmatprep.subr.bf16.mxu0 0
      %1981 = vmatpush1.bf16.msra.mxu0 0
      %1982 = vmatprep.subr.bf16.mxu0 0
      %1983 = vmatpush1.bf16.msra.mxu0 0
      %1984 = vmatprep.subr.bf16.mxu0 0
      %1985 = vmatpush1.bf16.msra.mxu0 0
      %1986 = vmatprep.subr.bf16.mxu0 0
      %1987 = vmatpush1.bf16.msra.mxu0 0
      %1988 = vmatprep.subr.bf16.mxu0 0
      %1989 = vmatpush1.bf16.msra.mxu0 0
      %1990 = vmatprep.subr.bf16.mxu0 0
      %1991 = vmatpush1.bf16.msra.mxu0 0
      %1992 = vmatprep.subr.bf16.mxu0 0
      %1993 = vmatpush1.bf16.msra.mxu0 0
      %1994 = vmatprep.mubr.bf16.mxu0 0
      %1995 = vmatmul.mubr.bf16.gmra.mrb[0].mxu0 %v1957
      %v1996 = vpop.f32.mrb[0].mxu0
      %v1997 = vadd.f32 0.0, %v1996
      %v1998 = vpop.f32.mrb[0].mxu0
      %v1999 = vpop.f32.mrb[0].mxu0
      %v2000 = vpop.f32.mrb[0].mxu0
      %2001 = vdwg.mxu0
      %v2002 = vadd.f32 %v1952, %v1997
      %s2003 = scalar_lea.vmem %s31, 8
      %v2004 = vld [vmem:[%s2003] sm:$0xf]
      %v2005 = vpack.c.bf16 %v1903, %v1903
      %v2007 = vsel %vm1688, %v2004, 0
      %v2010 = vsel %vm1692, %v2005, 0
      %2012 = vmatprep.subr.bf16.mxu0 0
      %2013 = vmatpush1.bf16.msra.mxu0 %v2010
      %2014 = vmatprep.subr.bf16.mxu0 0
      %2015 = vmatpush1.bf16.msra.mxu0 0
      %2016 = vmatprep.subr.bf16.mxu0 0
      %2017 = vmatpush1.bf16.msra.mxu0 0
      %2018 = vmatprep.subr.bf16.mxu0 0
      %2019 = vmatpush1.bf16.msra.mxu0 0
      %2020 = vmatprep.subr.bf16.mxu0 0
      %2021 = vmatpush1.bf16.msra.mxu0 0
      %2022 = vmatprep.subr.bf16.mxu0 0
      %2023 = vmatpush1.bf16.msra.mxu0 0
      %2024 = vmatprep.subr.bf16.mxu0 0
      %2025 = vmatpush1.bf16.msra.mxu0 0
      %2026 = vmatprep.subr.bf16.mxu0 0
      %2027 = vmatpush1.bf16.msra.mxu0 0
      %2028 = vmatprep.subr.bf16.mxu0 0
      %2029 = vmatpush1.bf16.msra.mxu0 0
      %2030 = vmatprep.subr.bf16.mxu0 0
      %2031 = vmatpush1.bf16.msra.mxu0 0
      %2032 = vmatprep.subr.bf16.mxu0 0
      %2033 = vmatpush1.bf16.msra.mxu0 0
      %2034 = vmatprep.subr.bf16.mxu0 0
      %2035 = vmatpush1.bf16.msra.mxu0 0
      %2036 = vmatprep.subr.bf16.mxu0 0
      %2037 = vmatpush1.bf16.msra.mxu0 0
      %2038 = vmatprep.subr.bf16.mxu0 0
      %2039 = vmatpush1.bf16.msra.mxu0 0
      %2040 = vmatprep.subr.bf16.mxu0 0
      %2041 = vmatpush1.bf16.msra.mxu0 0
      %2042 = vmatprep.subr.bf16.mxu0 0
      %2043 = vmatpush1.bf16.msra.mxu0 0
      %2044 = vmatprep.mubr.bf16.mxu0 0
      %2045 = vmatmul.mubr.bf16.gmra.mrb[0].mxu0 %v2007
      %v2046 = vpop.f32.mrb[0].mxu0
      %v2047 = vadd.f32 0.0, %v2046
      %v2048 = vpop.f32.mrb[0].mxu0
      %v2049 = vpop.f32.mrb[0].mxu0
      %v2050 = vpop.f32.mrb[0].mxu0
      %2051 = vdwg.mxu0
      %v2052 = vadd.f32 %v2002, %v2047
      %v2053 = vld [vmem:[%s33] sm:$0xff]
      %2055 = vset.pattern.permute.xlu0 0
      %2056 = vperm.xlu0 %2055, %v2053
      %v2057 = vpop.permute.xlu0 %2056
      %v2059 = vmul.f32 %v2052, %v2057
      %v2060 = vld [vmem:[%s35] sm:$0xff]
      %2062 = vset.pattern.permute.xlu0 0
      %2063 = vperm.xlu0 %2062, %v2060
      %v2064 = vpop.permute.xlu0 %2063
      %v2066 = vadd.f32 %v2059, %v2064
      %vm2067 = vcmp.ge.f32.partialorder %v2066, 0.0
      %v2068 = vmul.f32 %v2066, 0.2
      %v2069 = vsel %vm2067, %v2066, %v2068
      %2071 = vrot.lane.b32.xlu0 %v2069, 1
      %v2072 = vpop.permute.xlu0 %2071
      %v2074 = vsel %vm1071, 0.0, %v2072
      %2075 = vrot.lane.b32.xlu0 %v2069, 127
      %v2076 = vpop.permute.xlu0 %2075
      %v2078 = vsel %vm1754, %v2076, 0.0
      %v2079 = vld [vmem:[%s37] sm:$0xf]
      %v2080 = vpack.c.bf16 %v2074, %v2074
      %s2081 = scalar_lea.vmem %s37, 4
      %v2082 = vld [vmem:[%s2081] sm:$0xf]
      %v2083 = vpack.c.bf16 %v2069, %v2069
      %v2085 = vsel %vm1688, %v2082, 0
      %v2088 = vsel %vm1692, %v2083, 0
      %2090 = vmatprep.subr.bf16.mxu0 0
      %2091 = vmatpush1.bf16.msra.mxu0 %v2088
      %2092 = vmatprep.subr.bf16.mxu0 0
      %2093 = vmatpush1.bf16.msra.mxu0 0
      %2094 = vmatprep.subr.bf16.mxu0 0
      %2095 = vmatpush1.bf16.msra.mxu0 0
      %2096 = vmatprep.subr.bf16.mxu0 0
      %2097 = vmatpush1.bf16.msra.mxu0 0
      %2098 = vmatprep.subr.bf16.mxu0 0
      %2099 = vmatpush1.bf16.msra.mxu0 0
      %2100 = vmatprep.subr.bf16.mxu0 0
      %2101 = vmatpush1.bf16.msra.mxu0 0
      %2102 = vmatprep.subr.bf16.mxu0 0
      %2103 = vmatpush1.bf16.msra.mxu0 0
      %2104 = vmatprep.subr.bf16.mxu0 0
      %2105 = vmatpush1.bf16.msra.mxu0 0
      %2106 = vmatprep.subr.bf16.mxu0 0
      %2107 = vmatpush1.bf16.msra.mxu0 0
      %2108 = vmatprep.subr.bf16.mxu0 0
      %2109 = vmatpush1.bf16.msra.mxu0 0
      %2110 = vmatprep.subr.bf16.mxu0 0
      %2111 = vmatpush1.bf16.msra.mxu0 0
      %2112 = vmatprep.subr.bf16.mxu0 0
      %2113 = vmatpush1.bf16.msra.mxu0 0
      %2114 = vmatprep.subr.bf16.mxu0 0
      %2115 = vmatpush1.bf16.msra.mxu0 0
      %2116 = vmatprep.subr.bf16.mxu0 0
      %2117 = vmatpush1.bf16.msra.mxu0 0
      %2118 = vmatprep.subr.bf16.mxu0 0
      %2119 = vmatpush1.bf16.msra.mxu0 0
      %2120 = vmatprep.subr.bf16.mxu0 0
      %2121 = vmatpush1.bf16.msra.mxu0 0
      %2122 = vmatprep.mubr.bf16.mxu0 0
      %2123 = vmatmul.mubr.bf16.gmra.mrb[0].mxu0 %v2085
      %v2124 = vpop.f32.mrb[0].mxu0
      %v2125 = vadd.f32 0.0, %v2124
      %v2126 = vpop.f32.mrb[0].mxu0
      %v2127 = vpop.f32.mrb[0].mxu0
      %v2128 = vpop.f32.mrb[0].mxu0
      %2129 = vdwg.mxu0
      %v2131 = vsel %vm1688, %v2079, 0
      %v2134 = vsel %vm1692, %v2080, 0
      %2136 = vmatprep.subr.bf16.mxu0 0
      %2137 = vmatpush1.bf16.msra.mxu0 %v2134
      %2138 = vmatprep.subr.bf16.mxu0 0
      %2139 = vmatpush1.bf16.msra.mxu0 0
      %2140 = vmatprep.subr.bf16.mxu0 0
      %2141 = vmatpush1.bf16.msra.mxu0 0
      %2142 = vmatprep.subr.bf16.mxu0 0
      %2143 = vmatpush1.bf16.msra.mxu0 0
      %2144 = vmatprep.subr.bf16.mxu0 0
      %2145 = vmatpush1.bf16.msra.mxu0 0
      %2146 = vmatprep.subr.bf16.mxu0 0
      %2147 = vmatpush1.bf16.msra.mxu0 0
      %2148 = vmatprep.subr.bf16.mxu0 0
      %2149 = vmatpush1.bf16.msra.mxu0 0
      %2150 = vmatprep.subr.bf16.mxu0 0
      %2151 = vmatpush1.bf16.msra.mxu0 0
      %2152 = vmatprep.subr.bf16.mxu0 0
      %2153 = vmatpush1.bf16.msra.mxu0 0
      %2154 = vmatprep.subr.bf16.mxu0 0
      %2155 = vmatpush1.bf16.msra.mxu0 0
      %2156 = vmatprep.subr.bf16.mxu0 0
      %2157 = vmatpush1.bf16.msra.mxu0 0
      %2158 = vmatprep.subr.bf16.mxu0 0
      %2159 = vmatpush1.bf16.msra.mxu0 0
      %2160 = vmatprep.subr.bf16.mxu0 0
      %2161 = vmatpush1.bf16.msra.mxu0 0
      %2162 = vmatprep.subr.bf16.mxu0 0
      %2163 = vmatpush1.bf16.msra.mxu0 0
      %2164 = vmatprep.subr.bf16.mxu0 0
      %2165 = vmatpush1.bf16.msra.mxu0 0
      %2166 = vmatprep.subr.bf16.mxu0 0
      %2167 = vmatpush1.bf16.msra.mxu0 0
      %2168 = vmatprep.mubr.bf16.mxu0 0
      %2169 = vmatmul.mubr.bf16.gmra.mrb[0].mxu0 %v2131
      %v2170 = vpop.f32.mrb[0].mxu0
      %v2171 = vadd.f32 %v2125, %v2170
      %v2172 = vpop.f32.mrb[0].mxu0
      %v2173 = vpop.f32.mrb[0].mxu0
      %v2174 = vpop.f32.mrb[0].mxu0
      %2175 = vdwg.mxu0
      %s2176 = scalar_lea.vmem %s37, 8
      %v2177 = vld [vmem:[%s2176] sm:$0xf]
      %v2178 = vpack.c.bf16 %v2078, %v2078
      %v2180 = vsel %vm1688, %v2177, 0
      %v2183 = vsel %vm1692, %v2178, 0
      %2185 = vmatprep.subr.bf16.mxu0 0
      %2186 = vmatpush1.bf16.msra.mxu0 %v2183
      %2187 = vmatprep.subr.bf16.mxu0 0
      %2188 = vmatpush1.bf16.msra.mxu0 0
      %2189 = vmatprep.subr.bf16.mxu0 0
      %2190 = vmatpush1.bf16.msra.mxu0 0
      %2191 = vmatprep.subr.bf16.mxu0 0
      %2192 = vmatpush1.bf16.msra.mxu0 0
      %2193 = vmatprep.subr.bf16.mxu0 0
      %2194 = vmatpush1.bf16.msra.mxu0 0
      %2195 = vmatprep.subr.bf16.mxu0 0
      %2196 = vmatpush1.bf16.msra.mxu0 0
      %2197 = vmatprep.subr.bf16.mxu0 0
      %2198 = vmatpush1.bf16.msra.mxu0 0
      %2199 = vmatprep.subr.bf16.mxu0 0
      %2200 = vmatpush1.bf16.msra.mxu0 0
      %2201 = vmatprep.subr.bf16.mxu0 0
      %2202 = vmatpush1.bf16.msra.mxu0 0
      %2203 = vmatprep.subr.bf16.mxu0 0
      %2204 = vmatpush1.bf16.msra.mxu0 0
      %2205 = vmatprep.subr.bf16.mxu0 0
      %2206 = vmatpush1.bf16.msra.mxu0 0
      %2207 = vmatprep.subr.bf16.mxu0 0
      %2208 = vmatpush1.bf16.msra.mxu0 0
      %2209 = vmatprep.subr.bf16.mxu0 0
      %2210 = vmatpush1.bf16.msra.mxu0 0
      %2211 = vmatprep.subr.bf16.mxu0 0
      %2212 = vmatpush1.bf16.msra.mxu0 0
      %2213 = vmatprep.subr.bf16.mxu0 0
      %2214 = vmatpush1.bf16.msra.mxu0 0
      %2215 = vmatprep.subr.bf16.mxu0 0
      %2216 = vmatpush1.bf16.msra.mxu0 0
      %2217 = vmatprep.mubr.bf16.mxu0 0
      %2218 = vmatmul.mubr.bf16.gmra.mrb[0].mxu0 %v2180
      %v2219 = vpop.f32.mrb[0].mxu0
      %v2220 = vadd.f32 0.0, %v2219
      %v2221 = vpop.f32.mrb[0].mxu0
      %v2222 = vpop.f32.mrb[0].mxu0
      %v2223 = vpop.f32.mrb[0].mxu0
      %2224 = vdwg.mxu0
      %v2225 = vadd.f32 %v2171, %v2220
      %v2226 = vld [vmem:[%s39] sm:$0xff]
      %2228 = vset.pattern.permute.xlu0 0
      %2229 = vperm.xlu0 %2228, %v2226
      %v2230 = vpop.permute.xlu0 %2229
      %v2232 = vmul.f32 %v2225, %v2230
      %v2233 = vld [vmem:[%s41] sm:$0xff]
      %2235 = vset.pattern.permute.xlu0 0
      %2236 = vperm.xlu0 %2235, %v2233
      %v2237 = vpop.permute.xlu0 %2236
      %v2239 = vadd.f32 %v2232, %v2237
      %vm2240 = vcmp.ge.f32.partialorder %v2239, 0.0
      %v2241 = vmul.f32 %v2239, 0.2
      %v2242 = vsel %vm2240, %v2239, %v2241
      %v2243 = vpack.c.bf16 %v2242, %v2242
      %v2244 = vld [vmem:[%s13] sm:$0xf]
      %v2245 = vld [vmem:[%s13 + $0x4] sm:$0xf]
      %v2248 = vunpack.c.l.b16 %v2244
      %v2249 = vunpack.c.l.b16 %v2245
      %v2250 = vpack.c.b16 %v2249, %v2248
      %v2253 = vsel %vm1283, %v2243, 0
      %2255 = vmatprep.subr.bf16.mxu0 0
      %2256 = vmatpush1.bf16.msra.mxu0 %v2250
      %2257 = vmatprep.subr.bf16.mxu0 0
      %2258 = vmatpush1.bf16.msra.mxu0 0
      %2259 = vmatprep.subr.bf16.mxu0 0
      %2260 = vmatpush1.bf16.msra.mxu0 0
      %2261 = vmatprep.subr.bf16.mxu0 0
      %2262 = vmatpush1.bf16.msra.mxu0 0
      %2263 = vmatprep.subr.bf16.mxu0 0
      %2264 = vmatpush1.bf16.msra.mxu0 0
      %2265 = vmatprep.subr.bf16.mxu0 0
      %2266 = vmatpush1.bf16.msra.mxu0 0
      %2267 = vmatprep.subr.bf16.mxu0 0
      %2268 = vmatpush1.bf16.msra.mxu0 0
      %2269 = vmatprep.subr.bf16.mxu0 0
      %2270 = vmatpush1.bf16.msra.mxu0 0
      %2271 = vmatprep.subr.bf16.mxu0 0
      %2272 = vmatpush1.bf16.msra.mxu0 0
      %2273 = vmatprep.subr.bf16.mxu0 0
      %2274 = vmatpush1.bf16.msra.mxu0 0
      %2275 = vmatprep.subr.bf16.mxu0 0
      %2276 = vmatpush1.bf16.msra.mxu0 0
      %2277 = vmatprep.subr.bf16.mxu0 0
      %2278 = vmatpush1.bf16.msra.mxu0 0
      %2279 = vmatprep.subr.bf16.mxu0 0
      %2280 = vmatpush1.bf16.msra.mxu0 0
      %2281 = vmatprep.subr.bf16.mxu0 0
      %2282 = vmatpush1.bf16.msra.mxu0 0
      %2283 = vmatprep.subr.bf16.mxu0 0
      %2284 = vmatpush1.bf16.msra.mxu0 0
      %2285 = vmatprep.subr.bf16.mxu0 0
      %2286 = vmatpush1.bf16.msra.mxu0 0
      %2287 = vmatprep.mubr.bf16.mxu0 0
      %2288 = vmatmul.mubr.bf16.gmra.mrb[0].mxu0 %v2253
      %v2289 = vpop.f32.mrb[0].mxu0
      %v2290 = vadd.f32 0.0, %v2289
      %v2291 = vpop.f32.mrb[0].mxu0
      %v2292 = vpop.f32.mrb[0].mxu0
      %v2293 = vpop.f32.mrb[0].mxu0
      %2294 = vdwg.mxu0
      %v2295 = vld [vmem:[%s979] sm:$0xf]
      %2297 = vrot.lane.b32.xlu0 %v2290, 1
      %v2298 = vpop.permute.xlu0 %2297
      %v2300 = vsel %vm1071, 0.0, %v2298
      %2301 = vrot.lane.b32.xlu0 %v2290, 127
      %v2302 = vpop.permute.xlu0 %2301
      %vm2304 = vcmask 252928
      %v2305 = vsel %vm2304, %v2302, 0.0
      %v2306 = vld [vmem:[%s43] sm:$0x3]
      %v2307 = vpack.c.bf16 %v2300, %v2300
      %s2308 = scalar_lea.vmem %s43, 2
      %v2309 = vld [vmem:[%s2308] sm:$0x3]
      %v2310 = vpack.c.bf16 %v2290, %v2290
      %v2312 = vsel %vm1688, %v2309, 0
      %v2315 = vsel %vm1692, %v2310, 0
      %2317 = vmatprep.subr.bf16.mxu0 0
      %2318 = vmatpush1.bf16.msra.mxu0 %v2315
      %2319 = vmatprep.subr.bf16.mxu0 0
      %2320 = vmatpush1.bf16.msra.mxu0 0
      %2321 = vmatprep.subr.bf16.mxu0 0
      %2322 = vmatpush1.bf16.msra.mxu0 0
      %2323 = vmatprep.subr.bf16.mxu0 0
      %2324 = vmatpush1.bf16.msra.mxu0 0
      %2325 = vmatprep.subr.bf16.mxu0 0
      %2326 = vmatpush1.bf16.msra.mxu0 0
      %2327 = vmatprep.subr.bf16.mxu0 0
      %2328 = vmatpush1.bf16.msra.mxu0 0
      %2329 = vmatprep.subr.bf16.mxu0 0
      %2330 = vmatpush1.bf16.msra.mxu0 0
      %2331 = vmatprep.subr.bf16.mxu0 0
      %2332 = vmatpush1.bf16.msra.mxu0 0
      %2333 = vmatprep.subr.bf16.mxu0 0
      %2334 = vmatpush1.bf16.msra.mxu0 0
      %2335 = vmatprep.subr.bf16.mxu0 0
      %2336 = vmatpush1.bf16.msra.mxu0 0
      %2337 = vmatprep.subr.bf16.mxu0 0
      %2338 = vmatpush1.bf16.msra.mxu0 0
      %2339 = vmatprep.subr.bf16.mxu0 0
      %2340 = vmatpush1.bf16.msra.mxu0 0
      %2341 = vmatprep.subr.bf16.mxu0 0
      %2342 = vmatpush1.bf16.msra.mxu0 0
      %2343 = vmatprep.subr.bf16.mxu0 0
      %2344 = vmatpush1.bf16.msra.mxu0 0
      %2345 = vmatprep.subr.bf16.mxu0 0
      %2346 = vmatpush1.bf16.msra.mxu0 0
      %2347 = vmatprep.subr.bf16.mxu0 0
      %2348 = vmatpush1.bf16.msra.mxu0 0
      %2349 = vmatprep.mubr.bf16.mxu0 0
      %2350 = vmatmul.mubr.bf16.gmra.mrb[0].mxu0 %v2312
      %v2351 = vpop.f32.mrb[0].mxu0
      %v2352 = vadd.f32 0.0, %v2351
      %v2353 = vpop.f32.mrb[0].mxu0
      %v2354 = vpop.f32.mrb[0].mxu0
      %v2355 = vpop.f32.mrb[0].mxu0
      %2356 = vdwg.mxu0
      %v2358 = vsel %vm1688, %v2306, 0
      %v2361 = vsel %vm1692, %v2307, 0
      %2363 = vmatprep.subr.bf16.mxu0 0
      %2364 = vmatpush1.bf16.msra.mxu0 %v2361
      %2365 = vmatprep.subr.bf16.mxu0 0
      %2366 = vmatpush1.bf16.msra.mxu0 0
      %2367 = vmatprep.subr.bf16.mxu0 0
      %2368 = vmatpush1.bf16.msra.mxu0 0
      %2369 = vmatprep.subr.bf16.mxu0 0
      %2370 = vmatpush1.bf16.msra.mxu0 0
      %2371 = vmatprep.subr.bf16.mxu0 0
      %2372 = vmatpush1.bf16.msra.mxu0 0
      %2373 = vmatprep.subr.bf16.mxu0 0
      %2374 = vmatpush1.bf16.msra.mxu0 0
      %2375 = vmatprep.subr.bf16.mxu0 0
      %2376 = vmatpush1.bf16.msra.mxu0 0
      %2377 = vmatprep.subr.bf16.mxu0 0
      %2378 = vmatpush1.bf16.msra.mxu0 0
      %2379 = vmatprep.subr.bf16.mxu0 0
      %2380 = vmatpush1.bf16.msra.mxu0 0
      %2381 = vmatprep.subr.bf16.mxu0 0
      %2382 = vmatpush1.bf16.msra.mxu0 0
      %2383 = vmatprep.subr.bf16.mxu0 0
      %2384 = vmatpush1.bf16.msra.mxu0 0
      %2385 = vmatprep.subr.bf16.mxu0 0
      %2386 = vmatpush1.bf16.msra.mxu0 0
      %2387 = vmatprep.subr.bf16.mxu0 0
      %2388 = vmatpush1.bf16.msra.mxu0 0
      %2389 = vmatprep.subr.bf16.mxu0 0
      %2390 = vmatpush1.bf16.msra.mxu0 0
      %2391 = vmatprep.subr.bf16.mxu0 0
      %2392 = vmatpush1.bf16.msra.mxu0 0
      %2393 = vmatprep.subr.bf16.mxu0 0
      %2394 = vmatpush1.bf16.msra.mxu0 0
      %2395 = vmatprep.mubr.bf16.mxu0 0
      %2396 = vmatmul.mubr.bf16.gmra.mrb[0].mxu0 %v2358
      %v2397 = vpop.f32.mrb[0].mxu0
      %v2398 = vadd.f32 %v2352, %v2397
      %v2399 = vpop.f32.mrb[0].mxu0
      %v2400 = vpop.f32.mrb[0].mxu0
      %v2401 = vpop.f32.mrb[0].mxu0
      %2402 = vdwg.mxu0
      %s2403 = scalar_lea.vmem %s43, 4
      %v2404 = vld [vmem:[%s2403] sm:$0x3]
      %v2405 = vpack.c.bf16 %v2305, %v2305
      %v2407 = vsel %vm1688, %v2404, 0
      %v2410 = vsel %vm1692, %v2405, 0
      %2412 = vmatprep.subr.bf16.mxu0 0
      %2413 = vmatpush1.bf16.msra.mxu0 %v2410
      %2414 = vmatprep.subr.bf16.mxu0 0
      %2415 = vmatpush1.bf16.msra.mxu0 0
      %2416 = vmatprep.subr.bf16.mxu0 0
      %2417 = vmatpush1.bf16.msra.mxu0 0
      %2418 = vmatprep.subr.bf16.mxu0 0
      %2419 = vmatpush1.bf16.msra.mxu0 0
      %2420 = vmatprep.subr.bf16.mxu0 0
      %2421 = vmatpush1.bf16.msra.mxu0 0
      %2422 = vmatprep.subr.bf16.mxu0 0
      %2423 = vmatpush1.bf16.msra.mxu0 0
      %2424 = vmatprep.subr.bf16.mxu0 0
      %2425 = vmatpush1.bf16.msra.mxu0 0
      %2426 = vmatprep.subr.bf16.mxu0 0
      %2427 = vmatpush1.bf16.msra.mxu0 0
      %2428 = vmatprep.subr.bf16.mxu0 0
      %2429 = vmatpush1.bf16.msra.mxu0 0
      %2430 = vmatprep.subr.bf16.mxu0 0
      %2431 = vmatpush1.bf16.msra.mxu0 0
      %2432 = vmatprep.subr.bf16.mxu0 0
      %2433 = vmatpush1.bf16.msra.mxu0 0
      %2434 = vmatprep.subr.bf16.mxu0 0
      %2435 = vmatpush1.bf16.msra.mxu0 0
      %2436 = vmatprep.subr.bf16.mxu0 0
      %2437 = vmatpush1.bf16.msra.mxu0 0
      %2438 = vmatprep.subr.bf16.mxu0 0
      %2439 = vmatpush1.bf16.msra.mxu0 0
      %2440 = vmatprep.subr.bf16.mxu0 0
      %2441 = vmatpush1.bf16.msra.mxu0 0
      %2442 = vmatprep.subr.bf16.mxu0 0
      %2443 = vmatpush1.bf16.msra.mxu0 0
      %2444 = vmatprep.mubr.bf16.mxu0 0
      %2445 = vmatmul.mubr.bf16.gmra.mrb[0].mxu0 %v2407
      %v2446 = vpop.f32.mrb[0].mxu0
      %v2447 = vadd.f32 0.0, %v2446
      %v2448 = vpop.f32.mrb[0].mxu0
      %v2449 = vpop.f32.mrb[0].mxu0
      %v2450 = vpop.f32.mrb[0].mxu0
      %2451 = vdwg.mxu0
      %v2452 = vadd.f32 %v2398, %v2447
      %2454 = vrot.lane.b32.xlu0 %v2295, 1
      %v2455 = vpop.permute.xlu0 %2454
      %v2457 = vsel %vm1071, 0.0, %v2455
      %2458 = vrot.lane.b32.xlu0 %v2295, 127
      %v2459 = vpop.permute.xlu0 %2458
      %v2461 = vsel %vm2304, %v2459, 0.0
      %v2462 = vld [vmem:[%s45] sm:$0x3]
      %v2463 = vpack.c.bf16 %v2457, %v2457
      %v2465 = vsel %vm993, %v2462, 0
      %v2468 = vsel %vm1000, %v2463, 0
      %2470 = vmatprep.subr.bf16.mxu0 0
      %2471 = vmatpush1.bf16.msra.mxu0 %v2468
      %2472 = vmatprep.subr.bf16.mxu0 0
      %2473 = vmatpush1.bf16.msra.mxu0 0
      %2474 = vmatprep.subr.bf16.mxu0 0
      %2475 = vmatpush1.bf16.msra.mxu0 0
      %2476 = vmatprep.subr.bf16.mxu0 0
      %2477 = vmatpush1.bf16.msra.mxu0 0
      %2478 = vmatprep.subr.bf16.mxu0 0
      %2479 = vmatpush1.bf16.msra.mxu0 0
      %2480 = vmatprep.subr.bf16.mxu0 0
      %2481 = vmatpush1.bf16.msra.mxu0 0
      %2482 = vmatprep.subr.bf16.mxu0 0
      %2483 = vmatpush1.bf16.msra.mxu0 0
      %2484 = vmatprep.subr.bf16.mxu0 0
      %2485 = vmatpush1.bf16.msra.mxu0 0
      %2486 = vmatprep.subr.bf16.mxu0 0
      %2487 = vmatpush1.bf16.msra.mxu0 0
      %2488 = vmatprep.subr.bf16.mxu0 0
      %2489 = vmatpush1.bf16.msra.mxu0 0
      %2490 = vmatprep.subr.bf16.mxu0 0
      %2491 = vmatpush1.bf16.msra.mxu0 0
      %2492 = vmatprep.subr.bf16.mxu0 0
      %2493 = vmatpush1.bf16.msra.mxu0 0
      %2494 = vmatprep.subr.bf16.mxu0 0
      %2495 = vmatpush1.bf16.msra.mxu0 0
      %2496 = vmatprep.subr.bf16.mxu0 0
      %2497 = vmatpush1.bf16.msra.mxu0 0
      %2498 = vmatprep.subr.bf16.mxu0 0
      %2499 = vmatpush1.bf16.msra.mxu0 0
      %2500 = vmatprep.subr.bf16.mxu0 0
      %2501 = vmatpush1.bf16.msra.mxu0 0
      %2502 = vmatprep.mubr.bf16.mxu0 0
      %2503 = vmatmul.mubr.bf16.gmra.mrb[0].mxu0 %v2465
      %v2504 = vpop.f32.mrb[0].mxu0
      %v2505 = vadd.f32 0.0, %v2504
      %v2506 = vpop.f32.mrb[0].mxu0
      %v2507 = vpop.f32.mrb[0].mxu0
      %v2508 = vpop.f32.mrb[0].mxu0
      %2509 = vdwg.mxu0
      %v2510 = vadd.f32 %v2452, %v2505
      %s2511 = scalar_lea.vmem %s45, 2
      %v2512 = vld [vmem:[%s2511] sm:$0x3]
      %v2513 = vpack.c.bf16 %v2295, %v2295
      %v2515 = vsel %vm993, %v2512, 0
      %v2518 = vsel %vm1000, %v2513, 0
      %2520 = vmatprep.subr.bf16.mxu0 0
      %2521 = vmatpush1.bf16.msra.mxu0 %v2518
      %2522 = vmatprep.subr.bf16.mxu0 0
      %2523 = vmatpush1.bf16.msra.mxu0 0
      %2524 = vmatprep.subr.bf16.mxu0 0
      %2525 = vmatpush1.bf16.msra.mxu0 0
      %2526 = vmatprep.subr.bf16.mxu0 0
      %2527 = vmatpush1.bf16.msra.mxu0 0
      %2528 = vmatprep.subr.bf16.mxu0 0
      %2529 = vmatpush1.bf16.msra.mxu0 0
      %2530 = vmatprep.subr.bf16.mxu0 0
      %2531 = vmatpush1.bf16.msra.mxu0 0
      %2532 = vmatprep.subr.bf16.mxu0 0
      %2533 = vmatpush1.bf16.msra.mxu0 0
      %2534 = vmatprep.subr.bf16.mxu0 0
      %2535 = vmatpush1.bf16.msra.mxu0 0
      %2536 = vmatprep.subr.bf16.mxu0 0
      %2537 = vmatpush1.bf16.msra.mxu0 0
      %2538 = vmatprep.subr.bf16.mxu0 0
      %2539 = vmatpush1.bf16.msra.mxu0 0
      %2540 = vmatprep.subr.bf16.mxu0 0
      %2541 = vmatpush1.bf16.msra.mxu0 0
      %2542 = vmatprep.subr.bf16.mxu0 0
      %2543 = vmatpush1.bf16.msra.mxu0 0
      %2544 = vmatprep.subr.bf16.mxu0 0
      %2545 = vmatpush1.bf16.msra.mxu0 0
      %2546 = vmatprep.subr.bf16.mxu0 0
      %2547 = vmatpush1.bf16.msra.mxu0 0
      %2548 = vmatprep.subr.bf16.mxu0 0
      %2549 = vmatpush1.bf16.msra.mxu0 0
      %2550 = vmatprep.subr.bf16.mxu0 0
      %2551 = vmatpush1.bf16.msra.mxu0 0
      %2552 = vmatprep.mubr.bf16.mxu0 0
      %2553 = vmatmul.mubr.bf16.gmra.mrb[0].mxu0 %v2515
      %v2554 = vpop.f32.mrb[0].mxu0
      %v2555 = vadd.f32 0.0, %v2554
      %v2556 = vpop.f32.mrb[0].mxu0
      %v2557 = vpop.f32.mrb[0].mxu0
      %v2558 = vpop.f32.mrb[0].mxu0
      %2559 = vdwg.mxu0
      %v2560 = vadd.f32 %v2510, %v2555
      %s2561 = scalar_lea.vmem %s45, 4
      %v2562 = vld [vmem:[%s2561] sm:$0x3]
      %v2563 = vpack.c.bf16 %v2461, %v2461
      %v2565 = vsel %vm993, %v2562, 0
      %v2568 = vsel %vm1000, %v2563, 0
      %2570 = vmatprep.subr.bf16.mxu0 0
      %2571 = vmatpush1.bf16.msra.mxu0 %v2568
      %2572 = vmatprep.subr.bf16.mxu0 0
      %2573 = vmatpush1.bf16.msra.mxu0 0
      %2574 = vmatprep.subr.bf16.mxu0 0
      %2575 = vmatpush1.bf16.msra.mxu0 0
      %2576 = vmatprep.subr.bf16.mxu0 0
      %2577 = vmatpush1.bf16.msra.mxu0 0
      %2578 = vmatprep.subr.bf16.mxu0 0
      %2579 = vmatpush1.bf16.msra.mxu0 0
      %2580 = vmatprep.subr.bf16.mxu0 0
      %2581 = vmatpush1.bf16.msra.mxu0 0
      %2582 = vmatprep.subr.bf16.mxu0 0
      %2583 = vmatpush1.bf16.msra.mxu0 0
      %2584 = vmatprep.subr.bf16.mxu0 0
      %2585 = vmatpush1.bf16.msra.mxu0 0
      %2586 = vmatprep.subr.bf16.mxu0 0
      %2587 = vmatpush1.bf16.msra.mxu0 0
      %2588 = vmatprep.subr.bf16.mxu0 0
      %2589 = vmatpush1.bf16.msra.mxu0 0
      %2590 = vmatprep.subr.bf16.mxu0 0
      %2591 = vmatpush1.bf16.msra.mxu0 0
      %2592 = vmatprep.subr.bf16.mxu0 0
      %2593 = vmatpush1.bf16.msra.mxu0 0
      %2594 = vmatprep.subr.bf16.mxu0 0
      %2595 = vmatpush1.bf16.msra.mxu0 0
      %2596 = vmatprep.subr.bf16.mxu0 0
      %2597 = vmatpush1.bf16.msra.mxu0 0
      %2598 = vmatprep.subr.bf16.mxu0 0
      %2599 = vmatpush1.bf16.msra.mxu0 0
      %2600 = vmatprep.subr.bf16.mxu0 0
      %2601 = vmatpush1.bf16.msra.mxu0 0
      %2602 = vmatprep.mubr.bf16.mxu0 0
      %2603 = vmatmul.mubr.bf16.gmra.mrb[0].mxu0 %v2565
      %v2604 = vpop.f32.mrb[0].mxu0
      %v2605 = vadd.f32 0.0, %v2604
      %v2606 = vpop.f32.mrb[0].mxu0
      %v2607 = vpop.f32.mrb[0].mxu0
      %v2608 = vpop.f32.mrb[0].mxu0
      %2609 = vdwg.mxu0
      %v2610 = vadd.f32 %v2560, %v2605
      %v2611 = vld [vmem:[%s47] sm:$0xf]
      %2613 = vset.pattern.permute.xlu0 0
      %2614 = vperm.xlu0 %2613, %v2611
      %v2615 = vpop.permute.xlu0 %2614
      %v2617 = vmul.f32 %v2610, %v2615
      %v2618 = vld [vmem:[%s49] sm:$0xf]
      %2620 = vset.pattern.permute.xlu0 0
      %2621 = vperm.xlu0 %2620, %v2618
      %v2622 = vpop.permute.xlu0 %2621
      %v2624 = vadd.f32 %v2617, %v2622
      %vm2625 = vcmp.ge.f32.partialorder %v2624, 0.0
      %v2626 = vmul.f32 %v2624, 0.2
      %v2627 = vsel %vm2625, %v2624, %v2626
      %2629 = vrot.lane.b32.xlu0 %v2627, 1
      %v2630 = vpop.permute.xlu0 %2629
      %v2632 = vsel %vm1071, 0.0, %v2630
      %2633 = vrot.lane.b32.xlu0 %v2627, 127
      %v2634 = vpop.permute.xlu0 %2633
      %v2636 = vsel %vm2304, %v2634, 0.0
      %v2637 = vld [vmem:[%s51] sm:$0x3]
      %v2638 = vpack.c.bf16 %v2632, %v2632
      %s2639 = scalar_lea.vmem %s51, 2
      %v2640 = vld [vmem:[%s2639] sm:$0x3]
      %v2641 = vpack.c.bf16 %v2627, %v2627
      %v2643 = vsel %vm993, %v2640, 0
      %v2646 = vsel %vm1000, %v2641, 0
      %2648 = vmatprep.subr.bf16.mxu0 0
      %2649 = vmatpush1.bf16.msra.mxu0 %v2646
      %2650 = vmatprep.subr.bf16.mxu0 0
      %2651 = vmatpush1.bf16.msra.mxu0 0
      %2652 = vmatprep.subr.bf16.mxu0 0
      %2653 = vmatpush1.bf16.msra.mxu0 0
      %2654 = vmatprep.subr.bf16.mxu0 0
      %2655 = vmatpush1.bf16.msra.mxu0 0
      %2656 = vmatprep.subr.bf16.mxu0 0
      %2657 = vmatpush1.bf16.msra.mxu0 0
      %2658 = vmatprep.subr.bf16.mxu0 0
      %2659 = vmatpush1.bf16.msra.mxu0 0
      %2660 = vmatprep.subr.bf16.mxu0 0
      %2661 = vmatpush1.bf16.msra.mxu0 0
      %2662 = vmatprep.subr.bf16.mxu0 0
      %2663 = vmatpush1.bf16.msra.mxu0 0
      %2664 = vmatprep.subr.bf16.mxu0 0
      %2665 = vmatpush1.bf16.msra.mxu0 0
      %2666 = vmatprep.subr.bf16.mxu0 0
      %2667 = vmatpush1.bf16.msra.mxu0 0
      %2668 = vmatprep.subr.bf16.mxu0 0
      %2669 = vmatpush1.bf16.msra.mxu0 0
      %2670 = vmatprep.subr.bf16.mxu0 0
      %2671 = vmatpush1.bf16.msra.mxu0 0
      %2672 = vmatprep.subr.bf16.mxu0 0
      %2673 = vmatpush1.bf16.msra.mxu0 0
      %2674 = vmatprep.subr.bf16.mxu0 0
      %2675 = vmatpush1.bf16.msra.mxu0 0
      %2676 = vmatprep.subr.bf16.mxu0 0
      %2677 = vmatpush1.bf16.msra.mxu0 0
      %2678 = vmatprep.subr.bf16.mxu0 0
      %2679 = vmatpush1.bf16.msra.mxu0 0
      %2680 = vmatprep.mubr.bf16.mxu0 0
      %2681 = vmatmul.mubr.bf16.gmra.mrb[0].mxu0 %v2643
      %v2682 = vpop.f32.mrb[0].mxu0
      %v2683 = vadd.f32 0.0, %v2682
      %v2684 = vpop.f32.mrb[0].mxu0
      %v2685 = vpop.f32.mrb[0].mxu0
      %v2686 = vpop.f32.mrb[0].mxu0
      %2687 = vdwg.mxu0
      %v2689 = vsel %vm993, %v2637, 0
      %v2692 = vsel %vm1000, %v2638, 0
      %2694 = vmatprep.subr.bf16.mxu0 0
      %2695 = vmatpush1.bf16.msra.mxu0 %v2692
      %2696 = vmatprep.subr.bf16.mxu0 0
      %2697 = vmatpush1.bf16.msra.mxu0 0
      %2698 = vmatprep.subr.bf16.mxu0 0
      %2699 = vmatpush1.bf16.msra.mxu0 0
      %2700 = vmatprep.subr.bf16.mxu0 0
      %2701 = vmatpush1.bf16.msra.mxu0 0
      %2702 = vmatprep.subr.bf16.mxu0 0
      %2703 = vmatpush1.bf16.msra.mxu0 0
      %2704 = vmatprep.subr.bf16.mxu0 0
      %2705 = vmatpush1.bf16.msra.mxu0 0
      %2706 = vmatprep.subr.bf16.mxu0 0
      %2707 = vmatpush1.bf16.msra.mxu0 0
      %2708 = vmatprep.subr.bf16.mxu0 0
      %2709 = vmatpush1.bf16.msra.mxu0 0
      %2710 = vmatprep.subr.bf16.mxu0 0
      %2711 = vmatpush1.bf16.msra.mxu0 0
      %2712 = vmatprep.subr.bf16.mxu0 0
      %2713 = vmatpush1.bf16.msra.mxu0 0
      %2714 = vmatprep.subr.bf16.mxu0 0
      %2715 = vmatpush1.bf16.msra.mxu0 0
      %2716 = vmatprep.subr.bf16.mxu0 0
      %2717 = vmatpush1.bf16.msra.mxu0 0
      %2718 = vmatprep.subr.bf16.mxu0 0
      %2719 = vmatpush1.bf16.msra.mxu0 0
      %2720 = vmatprep.subr.bf16.mxu0 0
      %2721 = vmatpush1.bf16.msra.mxu0 0
      %2722 = vmatprep.subr.bf16.mxu0 0
      %2723 = vmatpush1.bf16.msra.mxu0 0
      %2724 = vmatprep.subr.bf16.mxu0 0
      %2725 = vmatpush1.bf16.msra.mxu0 0
      %2726 = vmatprep.mubr.bf16.mxu0 0
      %2727 = vmatmul.mubr.bf16.gmra.mrb[0].mxu0 %v2689
      %v2728 = vpop.f32.mrb[0].mxu0
      %v2729 = vadd.f32 %v2683, %v2728
      %v2730 = vpop.f32.mrb[0].mxu0
      %v2731 = vpop.f32.mrb[0].mxu0
      %v2732 = vpop.f32.mrb[0].mxu0
      %2733 = vdwg.mxu0
      %s2734 = scalar_lea.vmem %s51, 4
      %v2735 = vld [vmem:[%s2734] sm:$0x3]
      %v2736 = vpack.c.bf16 %v2636, %v2636
      %v2738 = vsel %vm993, %v2735, 0
      %v2741 = vsel %vm1000, %v2736, 0
      %2743 = vmatprep.subr.bf16.mxu0 0
      %2744 = vmatpush1.bf16.msra.mxu0 %v2741
      %2745 = vmatprep.subr.bf16.mxu0 0
      %2746 = vmatpush1.bf16.msra.mxu0 0
      %2747 = vmatprep.subr.bf16.mxu0 0
      %2748 = vmatpush1.bf16.msra.mxu0 0
      %2749 = vmatprep.subr.bf16.mxu0 0
      %2750 = vmatpush1.bf16.msra.mxu0 0
      %2751 = vmatprep.subr.bf16.mxu0 0
      %2752 = vmatpush1.bf16.msra.mxu0 0
      %2753 = vmatprep.subr.bf16.mxu0 0
      %2754 = vmatpush1.bf16.msra.mxu0 0
      %2755 = vmatprep.subr.bf16.mxu0 0
      %2756 = vmatpush1.bf16.msra.mxu0 0
      %2757 = vmatprep.subr.bf16.mxu0 0
      %2758 = vmatpush1.bf16.msra.mxu0 0
      %2759 = vmatprep.subr.bf16.mxu0 0
      %2760 = vmatpush1.bf16.msra.mxu0 0
      %2761 = vmatprep.subr.bf16.mxu0 0
      %2762 = vmatpush1.bf16.msra.mxu0 0
      %2763 = vmatprep.subr.bf16.mxu0 0
      %2764 = vmatpush1.bf16.msra.mxu0 0
      %2765 = vmatprep.subr.bf16.mxu0 0
      %2766 = vmatpush1.bf16.msra.mxu0 0
      %2767 = vmatprep.subr.bf16.mxu0 0
      %2768 = vmatpush1.bf16.msra.mxu0 0
      %2769 = vmatprep.subr.bf16.mxu0 0
      %2770 = vmatpush1.bf16.msra.mxu0 0
      %2771 = vmatprep.subr.bf16.mxu0 0
      %2772 = vmatpush1.bf16.msra.mxu0 0
      %2773 = vmatprep.subr.bf16.mxu0 0
      %2774 = vmatpush1.bf16.msra.mxu0 0
      %2775 = vmatprep.mubr.bf16.mxu0 0
      %2776 = vmatmul.mubr.bf16.gmra.mrb[0].mxu0 %v2738
      %v2777 = vpop.f32.mrb[0].mxu0
      %v2778 = vadd.f32 0.0, %v2777
      %v2779 = vpop.f32.mrb[0].mxu0
      %v2780 = vpop.f32.mrb[0].mxu0
      %v2781 = vpop.f32.mrb[0].mxu0
      %2782 = vdwg.mxu0
      %v2783 = vadd.f32 %v2729, %v2778
      %v2784 = vld [vmem:[%s53] sm:$0xf]
      %2786 = vset.pattern.permute.xlu0 0
      %2787 = vperm.xlu0 %2786, %v2784
      %v2788 = vpop.permute.xlu0 %2787
      %v2790 = vmul.f32 %v2783, %v2788
      %v2791 = vld [vmem:[%s55] sm:$0xf]
      %2793 = vset.pattern.permute.xlu0 0
      %2794 = vperm.xlu0 %2793, %v2791
      %v2795 = vpop.permute.xlu0 %2794
      %v2797 = vadd.f32 %v2790, %v2795
      %vm2798 = vcmp.ge.f32.partialorder %v2797, 0.0
      %v2799 = vmul.f32 %v2797, 0.2
      %v2800 = vsel %vm2798, %v2797, %v2799
      %v2801 = vld [vmem:[%s57] sm:$0xf]
      %v2802 = vld [vmem:[%s57 + $0x4] sm:$0x3]
      %v2803 = vpack.c.bf16 %v2800, %v2800
      %v2804 = vld [vmem:[%s59] sm:$0xff]
      %v2805 = vld [vmem:[%s59 + $0x8] sm:$0xf]
      %2807 = vset.pattern.permute.xlu0 0
      %2808 = vperm.xlu0 %2807, %v2804
      %v2809 = vpop.permute.xlu0 %2808
      %2812 = vset.pattern.permute.xlu0 0
      %2813 = vperm.xlu0 %2812, %v2805
      %v2814 = vpop.permute.xlu0 %2813
      %v2818 = vunpack.c.l.b16 %v2801
      %v2819 = vunpack.c.l.b16 %v2802
      %v2820 = vpack.c.b16 %v2819, %v2818
      %v2822 = vsel %vm993, %v2820, 0
      %v2825 = vsel %vm1000, %v2803, 0
      %2827 = vmatprep.subr.bf16.mxu0 0
      %2828 = vmatpush1.bf16.msra.mxu0 %v2825
      %2829 = vmatprep.subr.bf16.mxu0 0
      %2830 = vmatpush1.bf16.msra.mxu0 0
      %2831 = vmatprep.subr.bf16.mxu0 0
      %2832 = vmatpush1.bf16.msra.mxu0 0
      %2833 = vmatprep.subr.bf16.mxu0 0
      %2834 = vmatpush1.bf16.msra.mxu0 0
      %2835 = vmatprep.subr.bf16.mxu0 0
      %2836 = vmatpush1.bf16.msra.mxu0 0
      %2837 = vmatprep.subr.bf16.mxu0 0
      %2838 = vmatpush1.bf16.msra.mxu0 0
      %2839 = vmatprep.subr.bf16.mxu0 0
      %2840 = vmatpush1.bf16.msra.mxu0 0
      %2841 = vmatprep.subr.bf16.mxu0 0
      %2842 = vmatpush1.bf16.msra.mxu0 0
      %2843 = vmatprep.subr.bf16.mxu0 0
      %2844 = vmatpush1.bf16.msra.mxu0 0
      %2845 = vmatprep.subr.bf16.mxu0 0
      %2846 = vmatpush1.bf16.msra.mxu0 0
      %2847 = vmatprep.subr.bf16.mxu0 0
      %2848 = vmatpush1.bf16.msra.mxu0 0
      %2849 = vmatprep.subr.bf16.mxu0 0
      %2850 = vmatpush1.bf16.msra.mxu0 0
      %2851 = vmatprep.subr.bf16.mxu0 0
      %2852 = vmatpush1.bf16.msra.mxu0 0
      %2853 = vmatprep.subr.bf16.mxu0 0
      %2854 = vmatpush1.bf16.msra.mxu0 0
      %2855 = vmatprep.subr.bf16.mxu0 0
      %2856 = vmatpush1.bf16.msra.mxu0 0
      %2857 = vmatprep.subr.bf16.mxu0 0
      %2858 = vmatpush1.bf16.msra.mxu0 0
      %2859 = vmatprep.mubr.bf16.mxu0 0
      %2860 = vmatmul.mubr.bf16.gmra.mrb[0].mxu0 %v2822
      %v2861 = vpop.f32.mrb[0].mxu0
      %v2862 = vadd.f32 %v2809, %v2861
      %v2863 = vpop.f32.mrb[0].mxu0
      %v2864 = vpop.f32.mrb[0].mxu0
      %v2865 = vadd.f32 %v2814, %v2864
      %v2866 = vpop.f32.mrb[0].mxu0
      %2867 = vdwg.mxu0
      %2868 = vst.msk [vmem:[%s984] sm:$0xff] %vm1107, %v2862
      %vm2869 = vcmask 257024
      %2870 = vst.msk [vmem:[%s984 + $0x8] sm:$0xf] %vm2869, %v2865
      %p2871 = scmp.lt.s32.totalorder %s72, 1
      %s2872 = scalar_select %p2871, %s72, 1
      %s2873 = smul.addr %s2872, 2
      %s2874 = smul.addr %s2873, 8
      %s2875 = scalar_lea.vmem %s61, %s2874
      // Predicated region
      $region141: #{tpu_custom_call.1} parent=139 // pred_check
        %p2876 = pneg %p740
      $region142: #{tpu_custom_call.1} parent=139 // pred_check_branch
        %2878 = sbr.rel (%p2876) target = $region144
      $region143: #{tpu_custom_call.1} parent=139 // pred_region
        _
      $region144: #{tpu_custom_call.1} parent=139 // pred_fallthru
        _
    $region140: #{tpu_custom_call.1} parent=5 // pred_fallthru
      _
    %p2879 = scmp.le.s32.totalorder 2, %s67
    // Predicated region
    $region145: #{tpu_custom_call.1} parent=5 // pred_check
      %p2880 = pneg %p2879
    $region146: #{tpu_custom_call.1} parent=5 // pred_check_branch
      %2882 = sbr.rel (%p2880) target = $region148
    $region147: #{tpu_custom_call.1} parent=5 // pred_region
      %s2883 = ssub.s32 %s67, 2
      // Predicated region
      $region149: #{tpu_custom_call.1} parent=147 // pred_check
        %p2884 = pneg %p746
      $region150: #{tpu_custom_call.1} parent=147 // pred_check_branch
        %2886 = sbr.rel (%p2884) target = $region152
      $region151: #{tpu_custom_call.1} parent=147 // pred_region
        %p2887 = scmp.lt.s32.totalorder %s73, 1
        %s2888 = scalar_select %p2887, %s73, 1
        %s2889 = smul.addr %s2888, 2
        %s2890 = smul.addr %s2889, 8
        %s2891 = scalar_lea.vmem %s61, %s2890
      $region152: #{tpu_custom_call.1} parent=147 // pred_fallthru
        _
    $region148: #{tpu_custom_call.1} parent=5 // pred_fallthru
      _
  $region6: #{tpu_custom_call.1} parent=0 // loop_footer
    %s71 = sadd.s32 1, %s67
  $region7: #{tpu_custom_call.1} parent=0 // loop_footer_branch
    %66 = sbr.rel target = $region3
  $region8: #{tpu_custom_call.1} parent=0 // loop_exit
    _

</llo_original>
